<compile_context>
chip_gen: v5e
topology: v5e:2x2
jax: 0.10.0
libtpu: 0.0.40
codegen_flags: <defaults>
</compile_context>

<pallas_src>
import jax
import jax.numpy as jnp
from jax import lax
from jax.experimental import pallas as pl
from jax.experimental.pallas import tpu as pltpu

# problem sizes (small, consistent with the module: 1x1 convs over NCHW)
N, C, H, W = 2, 4, 16, 16
NUM_CONVS = 7   # w0, n00, n01, w1, n10, n11, w2


def pdip_kernel(a_ref,    # SMEM: (4,)  PReLU slopes (one scalar per PReLU module)
                w_ref,    # VMEM: (7, C, C) conv weights, each stored (Cin, Cout)
                x_ref,    # VMEM: (C, P) channel-major activations, P = N*H*W
                o_ref):   # VMEM: (C, P)
    x = x_ref[...].astype(jnp.float32)    # (C, P)
    w = w_ref[...].astype(jnp.float32)    # (7, C, C)

    def conv(v, layer):
        # y[cout, p] = sum_cin W[cin, cout] * v[cin, p]  ->  one MXU contraction,
        # contracting lhs dim 0 against rhs dim 0 (no explicit transpose needed).
        return lax.dot_general(
            w[layer], v,
            dimension_numbers=(((0,), (0,)), ((), ())),
            preferred_element_type=jnp.float32,
            precision=lax.Precision.HIGHEST)

    def prelu(v, idx):
        # PyTorch PReLU with a single scalar parameter: max(0,x) + a*min(0,x)
        a = a_ref[idx]
        return jnp.where(v > 0, v, a * v)

    # --- base layer 0 (1x1 conv, no bias) + noise net 0, residual add ---
    x = conv(x, 0)
    h = prelu(conv(x, 1), 0)
    h = prelu(conv(h, 2), 1)
    x = h + x

    # --- base layer 1 + noise net 1, residual add ---
    x = conv(x, 3)
    h = prelu(conv(x, 4), 2)
    h = prelu(conv(h, 5), 3)
    x = h + x

    # --- base last layer (no noise branch) ---
    x = conv(x, 6)

    o_ref[...] = x.astype(o_ref.dtype)


def pdip_forward(x_nchw, alphas, w0, w1, w2, n00, n01, n10, n11):
    n, c, h, w = x_nchw.shape
    p = n * h * w
    # Fold batch into the lane axis: (C, N*H*W). The 8 KiB wrapper-side
    # transpose is noise next to launch overhead.
    x_cp = jnp.transpose(x_nchw, (1, 0, 2, 3)).reshape(c, p).astype(jnp.float32)

    # Seven (Cin, Cout) conv weights stacked into one small VMEM input.
    weights = jnp.stack([w0, n00, n01, w1, n10, n11, w2]).astype(jnp.float32)

    out_cp = pl.pallas_call(
        pdip_kernel,
        out_shape=jax.ShapeDtypeStruct((c, p), jnp.float32),
        # Single grid step: whole-array blocks, one DMA pair each way.
        in_specs=[
            pl.BlockSpec(memory_space=pltpu.MemorySpace.SMEM),   # PReLU slopes
            pl.BlockSpec(memory_space=pltpu.MemorySpace.VMEM),   # (7, C, C) weights
            pl.BlockSpec(memory_space=pltpu.MemorySpace.VMEM),   # (C, P) activations
        ],
        out_specs=pl.BlockSpec(memory_space=pltpu.MemorySpace.VMEM),
    )(alphas.astype(jnp.float32), weights, x_cp)

    # free-ish reshape/transpose back to NCHW
    return jnp.transpose(out_cp.reshape(c, n, h, w), (1, 0, 2, 3))


def pdip_reference(x_nchw, alphas, w0, w1, w2, n00, n01, n10, n11):
    """Pure-JAX reference mirroring the PyTorch forward (weights stored (Cin, Cout))."""
    n, c, h, w = x_nchw.shape
    x = jnp.transpose(x_nchw, (0, 2, 3, 1)).reshape(-1, c).astype(jnp.float32)

    def prelu(v, a):
        return jnp.where(v > 0, v, a * v)

    x = x @ w0
    hh = prelu(prelu(x @ n00, alphas[0]) @ n01, alphas[1])
    x = hh + x
    x = x @ w1
    hh = prelu(prelu(x @ n10, alphas[2]) @ n11, alphas[3])
    x = hh + x
    x = x @ w2
    return jnp.transpose(x.reshape(n, h, w, c), (0, 3, 1, 2))


if __name__ == "__main__":
    key = jax.random.PRNGKey(0)
    keys = jax.random.split(key, 9)

    # deterministic parameter init (synthetic — shapes implied by the module)
    # 1x1 conv weight (Cout, Cin, 1, 1) is stored here directly as (Cin, Cout).
    scale = 0.5
    w0 = scale * jax.random.normal(keys[0], (C, C), jnp.float32)
    w1 = scale * jax.random.normal(keys[1], (C, C), jnp.float32)
    w2 = scale * jax.random.normal(keys[2], (C, C), jnp.float32)
    n00 = scale * jax.random.normal(keys[3], (C, C), jnp.float32)
    n01 = scale * jax.random.normal(keys[4], (C, C), jnp.float32)
    n10 = scale * jax.random.normal(keys[5], (C, C), jnp.float32)
    n11 = scale * jax.random.normal(keys[6], (C, C), jnp.float32)
    # PyTorch PReLU default init: 0.25 (scalar parameter per PReLU module)
    alphas = jnp.full((4,), 0.25, dtype=jnp.float32)

    x = jax.random.normal(keys[7], (N, C, H, W), jnp.float32)

    out = pdip_forward(x, alphas, w0, w1, w2, n00, n01, n10, n11)
    out = jax.block_until_ready(out)

    ref = pdip_reference(x, alphas, w0, w1, w2, n00, n01, n10, n11)
    assert out.shape == (N, C, H, W)
    assert jnp.allclose(out, ref, atol=1e-5, rtol=1e-5)

    print("KERNEL_OK")
</pallas_src>

<mosaic_0001>
module attributes {stable_mosaic.version = 11 : i64} {
  func.func @pdip_kernel(%arg0: memref<4xf32, #tpu.memory_space<smem>>, %arg1: memref<7x4x4xf32, #tpu.memory_space<vmem>>, %arg2: memref<4x512xf32, #tpu.memory_space<vmem>>, %arg3: memref<4x512xf32, #tpu.memory_space<vmem>>) attributes {dimension_semantics = [], scalar_prefetch = 0 : i64, scratch_operands = 0 : i64, tpu.core_type = #tpu.core_type<tc>} {
    %c0 = arith.constant 0 : index
    %c0_0 = arith.constant 0 : index
    %0 = vector.load %arg2[%c0, %c0_0] : memref<4x512xf32, #tpu.memory_space<vmem>>, vector<4x512xf32>
    %c0_1 = arith.constant 0 : index
    %c0_2 = arith.constant 0 : index
    %c0_3 = arith.constant 0 : index
    %1 = vector.load %arg1[%c0_1, %c0_2, %c0_3] : memref<7x4x4xf32, #tpu.memory_space<vmem>>, vector<7x4x4xf32>
    %2 = vector.extract_strided_slice %1 {offsets = [0, 0, 0], sizes = [1, 4, 4], strides = [1, 1, 1]} : vector<7x4x4xf32> to vector<1x4x4xf32>
    %3 = vector.shape_cast %2 : vector<1x4x4xf32> to vector<4x4xf32>
    %cst = arith.constant dense<0.000000e+00> : vector<4x512xf32>
    %4 = tpu.matmul %3, %0, %cst {dimension_numbers = #tpu.dot_dimension_numbers<[0], [0], [1], [1], [0, 1, 1, 1], [], []>, precision = #tpu.contract_precision<fp32>} : vector<4x4xf32>, vector<4x512xf32>, vector<4x512xf32> -> vector<4x512xf32>
    %5 = vector.extract_strided_slice %1 {offsets = [1, 0, 0], sizes = [1, 4, 4], strides = [1, 1, 1]} : vector<7x4x4xf32> to vector<1x4x4xf32>
    %6 = vector.shape_cast %5 : vector<1x4x4xf32> to vector<4x4xf32>
    %cst_4 = arith.constant dense<0.000000e+00> : vector<4x512xf32>
    %7 = tpu.matmul %6, %4, %cst_4 {dimension_numbers = #tpu.dot_dimension_numbers<[0], [0], [1], [1], [0, 1, 1, 1], [], []>, precision = #tpu.contract_precision<fp32>} : vector<4x4xf32>, vector<4x512xf32>, vector<4x512xf32> -> vector<4x512xf32>
    %c0_5 = arith.constant 0 : index
    %8 = memref.load %arg0[%c0_5] : memref<4xf32, #tpu.memory_space<smem>>
    %cst_6 = arith.constant 0.000000e+00 : f32
    %9 = vector.broadcast %cst_6 : f32 to vector<4x512xf32>
    %10 = arith.cmpf ogt, %7, %9 : vector<4x512xf32>
    %11 = vector.broadcast %8 : f32 to vector<4x512xf32>
    %12 = arith.mulf %11, %7 : vector<4x512xf32>
    %13 = arith.select %10, %7, %12 : vector<4x512xi1>, vector<4x512xf32>
    %14 = vector.extract_strided_slice %1 {offsets = [2, 0, 0], sizes = [1, 4, 4], strides = [1, 1, 1]} : vector<7x4x4xf32> to vector<1x4x4xf32>
    %15 = vector.shape_cast %14 : vector<1x4x4xf32> to vector<4x4xf32>
    %cst_7 = arith.constant dense<0.000000e+00> : vector<4x512xf32>
    %16 = tpu.matmul %15, %13, %cst_7 {dimension_numbers = #tpu.dot_dimension_numbers<[0], [0], [1], [1], [0, 1, 1, 1], [], []>, precision = #tpu.contract_precision<fp32>} : vector<4x4xf32>, vector<4x512xf32>, vector<4x512xf32> -> vector<4x512xf32>
    %c1 = arith.constant 1 : index
    %17 = memref.load %arg0[%c1] : memref<4xf32, #tpu.memory_space<smem>>
    %cst_8 = arith.constant 0.000000e+00 : f32
    %18 = vector.broadcast %cst_8 : f32 to vector<4x512xf32>
    %19 = arith.cmpf ogt, %16, %18 : vector<4x512xf32>
    %20 = vector.broadcast %17 : f32 to vector<4x512xf32>
    %21 = arith.mulf %20, %16 : vector<4x512xf32>
    %22 = arith.select %19, %16, %21 : vector<4x512xi1>, vector<4x512xf32>
    %23 = arith.addf %22, %4 : vector<4x512xf32>
    %24 = vector.extract_strided_slice %1 {offsets = [3, 0, 0], sizes = [1, 4, 4], strides = [1, 1, 1]} : vector<7x4x4xf32> to vector<1x4x4xf32>
    %25 = vector.shape_cast %24 : vector<1x4x4xf32> to vector<4x4xf32>
    %cst_9 = arith.constant dense<0.000000e+00> : vector<4x512xf32>
    %26 = tpu.matmul %25, %23, %cst_9 {dimension_numbers = #tpu.dot_dimension_numbers<[0], [0], [1], [1], [0, 1, 1, 1], [], []>, precision = #tpu.contract_precision<fp32>} : vector<4x4xf32>, vector<4x512xf32>, vector<4x512xf32> -> vector<4x512xf32>
    %27 = vector.extract_strided_slice %1 {offsets = [4, 0, 0], sizes = [1, 4, 4], strides = [1, 1, 1]} : vector<7x4x4xf32> to vector<1x4x4xf32>
    %28 = vector.shape_cast %27 : vector<1x4x4xf32> to vector<4x4xf32>
    %cst_10 = arith.constant dense<0.000000e+00> : vector<4x512xf32>
    %29 = tpu.matmul %28, %26, %cst_10 {dimension_numbers = #tpu.dot_dimension_numbers<[0], [0], [1], [1], [0, 1, 1, 1], [], []>, precision = #tpu.contract_precision<fp32>} : vector<4x4xf32>, vector<4x512xf32>, vector<4x512xf32> -> vector<4x512xf32>
    %c2 = arith.constant 2 : index
    %30 = memref.load %arg0[%c2] : memref<4xf32, #tpu.memory_space<smem>>
    %cst_11 = arith.constant 0.000000e+00 : f32
    %31 = vector.broadcast %cst_11 : f32 to vector<4x512xf32>
    %32 = arith.cmpf ogt, %29, %31 : vector<4x512xf32>
    %33 = vector.broadcast %30 : f32 to vector<4x512xf32>
    %34 = arith.mulf %33, %29 : vector<4x512xf32>
    %35 = arith.select %32, %29, %34 : vector<4x512xi1>, vector<4x512xf32>
    %36 = vector.extract_strided_slice %1 {offsets = [5, 0, 0], sizes = [1, 4, 4], strides = [1, 1, 1]} : vector<7x4x4xf32> to vector<1x4x4xf32>
    %37 = vector.shape_cast %36 : vector<1x4x4xf32> to vector<4x4xf32>
    %cst_12 = arith.constant dense<0.000000e+00> : vector<4x512xf32>
    %38 = tpu.matmul %37, %35, %cst_12 {dimension_numbers = #tpu.dot_dimension_numbers<[0], [0], [1], [1], [0, 1, 1, 1], [], []>, precision = #tpu.contract_precision<fp32>} : vector<4x4xf32>, vector<4x512xf32>, vector<4x512xf32> -> vector<4x512xf32>
    %c3 = arith.constant 3 : index
    %39 = memref.load %arg0[%c3] : memref<4xf32, #tpu.memory_space<smem>>
    %cst_13 = arith.constant 0.000000e+00 : f32
    %40 = vector.broadcast %cst_13 : f32 to vector<4x512xf32>
    %41 = arith.cmpf ogt, %38, %40 : vector<4x512xf32>
    %42 = vector.broadcast %39 : f32 to vector<4x512xf32>
    %43 = arith.mulf %42, %38 : vector<4x512xf32>
    %44 = arith.select %41, %38, %43 : vector<4x512xi1>, vector<4x512xf32>
    %45 = arith.addf %44, %26 : vector<4x512xf32>
    %46 = vector.extract_strided_slice %1 {offsets = [6, 0, 0], sizes = [1, 4, 4], strides = [1, 1, 1]} : vector<7x4x4xf32> to vector<1x4x4xf32>
    %47 = vector.shape_cast %46 : vector<1x4x4xf32> to vector<4x4xf32>
    %cst_14 = arith.constant dense<0.000000e+00> : vector<4x512xf32>
    %48 = tpu.matmul %47, %45, %cst_14 {dimension_numbers = #tpu.dot_dimension_numbers<[0], [0], [1], [1], [0, 1, 1, 1], [], []>, precision = #tpu.contract_precision<fp32>} : vector<4x4xf32>, vector<4x512xf32>, vector<4x512xf32> -> vector<4x512xf32>
    %c0_15 = arith.constant 0 : index
    %c0_16 = arith.constant 0 : index
    %49 = vector.load %arg3[%c0_15, %c0_16] : memref<4x512xf32, #tpu.memory_space<vmem>>, vector<4x512xf32>
    tpu.vector_store %arg3[%c0_15, %c0_16], %48 {strides = array<i32>} : memref<4x512xf32, #tpu.memory_space<vmem>>, vector<4x512xf32>,
    return
  }
}

</mosaic_0001>

<llo_original>
// kernel: tpu_custom_call.1
$region0: #{tpu_custom_call.1}
  #allocation0 [shape = 'u32[]', space=smem, size = 0x4, offset = 0x4, fixed_abs, tag = 'smem constant byte address 0x4 - core index']
  #allocation1 [shape = 'u32[72,128]{1,0:T(1,128)}', space=vmem, size = 0x9000, scoped, tag = 'internal scratch']
  %s0 = inlined_call_operand.vmem [shape: f32[4], index: 0, kind: input, shape index: {}]
  %s1 = inlined_call_operand.vmem [shape: f32[7,4,4], index: 1, kind: input, shape index: {}]
  %s2 = inlined_call_operand.vmem [shape: f32[4,512], index: 2, kind: input, shape index: {}]
  %s3 = inlined_call_operand.hbm [shape: f32[4,512], index: 3, kind: output, shape index: {}]
  %s4 = sld [smem:[#allocation0]]
  $region26: #{tpu_custom_call.1} parent=0
    _
  %s6 = ssub.s32 1, %s4
  %s7 = scalar_select 0, %s6, %s4
  $region1: #{tpu_custom_call.1} parent=0
    #allocation2 [shape = 'u8[512]{0}', space=smem, size = 0x200, scoped, tag = 'input window, operand 0, single buffered']
    #allocation3 [shape = 's32[1]{0}', space=sflag, size = 0x4, scoped, tag = 'scoped memory for tpu_custom_call.1']
    #allocation4 [shape = 's32[1]{0}', space=sflag, size = 0x4, scoped, tag = 'scoped memory for tpu_custom_call.1']
    #allocation5 [shape = 'u8[8192]{0}', space=vmem, size = 0x2000, scoped, tag = 'output window, operand 0, single buffered']
    %8 = vsyncpa [#allocation4], 0
    %9 = vsyncpa [#allocation3], 0
    // Predicated region
    $region2: #{tpu_custom_call.1} parent=1 // pred_check
      _
    $region3: #{tpu_custom_call.1} parent=1 // pred_check_branch
      %11 = sbr.rel (0) target = $region5
    $region4: #{tpu_custom_call.1} parent=1 // pred_region
      %13 = vsyncadd [#allocation4], 0
      %s15 = sshll.u32 %s0, 4
      %s16 = int_to_ptr.vmem [resolvable:$true] %s15
      %18 = dma.vmem_to_smem %s16, 16, [#allocation2], [#allocation4]
    $region5: #{tpu_custom_call.1} parent=1 // pred_fallthru
      _
    // Predicated region
    $region6: #{tpu_custom_call.1} parent=1 // pred_check
      _
    $region7: #{tpu_custom_call.1} parent=1 // pred_check_branch
      %20 = sbr.rel (0) target = $region9
    $region8: #{tpu_custom_call.1} parent=1 // pred_region
      _
    $region9: #{tpu_custom_call.1} parent=1 // pred_fallthru
      _
    // Predicated region
    $region10: #{tpu_custom_call.1} parent=1 // pred_check
      _
    $region11: #{tpu_custom_call.1} parent=1 // pred_check_branch
      %22 = sbr.rel (0) target = $region13
    $region12: #{tpu_custom_call.1} parent=1 // pred_region
      _
    $region13: #{tpu_custom_call.1} parent=1 // pred_fallthru
      _
    // Predicated region
    $region14: #{tpu_custom_call.1} parent=1 // pred_check
      _
    $region15: #{tpu_custom_call.1} parent=1 // pred_check_branch
      %24 = sbr.rel (0) target = $region17
    $region16: #{tpu_custom_call.1} parent=1 // pred_region
      %26 = dma.done [#allocation4], 16
    $region17: #{tpu_custom_call.1} parent=1 // pred_fallthru
      _
    %27 = sfence
    %v28 = vld [vmem:[%s2] sm:$0xff]
    %v29 = vld [vmem:[%s2 + $0x8] sm:$0xff]
    %v30 = vld [vmem:[%s1] sm:$0xf]
    %v31 = vld [vmem:[%s1 + $0x4] sm:$0xf]
    %v32 = vld [vmem:[%s1 + $0x8] sm:$0xf]
    %v33 = vld [vmem:[%s1 + $0xc] sm:$0xf]
    %v34 = vld [vmem:[%s1 + $0x10] sm:$0xf]
    %v35 = vld [vmem:[%s1 + $0x14] sm:$0xf]
    %v36 = vld [vmem:[%s1 + $0x18] sm:$0xf]
    %37 = vxpose.xlu0.b32.start [1/16] %v30, 128
    %38 = vxpose.xlu0.b32.cont [2/16] 0.0, 128
    %39 = vxpose.xlu0.b32.cont [3/16] 0.0, 128
    %40 = vxpose.xlu0.b32.cont [4/16] 0.0, 128
    %41 = vxpose.xlu0.b32.cont [5/16] 0.0, 128
    %42 = vxpose.xlu0.b32.cont [6/16] 0.0, 128
    %43 = vxpose.xlu0.b32.cont [7/16] 0.0, 128
    %44 = vxpose.xlu0.b32.cont [8/16] 0.0, 128
    %45 = vxpose.xlu0.b32.cont [9/16] 0.0, 128
    %46 = vxpose.xlu0.b32.cont [10/16] 0.0, 128
    %47 = vxpose.xlu0.b32.cont [11/16] 0.0, 128
    %48 = vxpose.xlu0.b32.cont [12/16] 0.0, 128
    %49 = vxpose.xlu0.b32.cont [13/16] 0.0, 128
    %50 = vxpose.xlu0.b32.cont [14/16] 0.0, 128
    %51 = vxpose.xlu0.b32.cont [15/16] 0.0, 128
    %52 = vxpose.xlu0.b32.end [16/16] 0.0, 128
    %v53 = vpop.trf.xlu0
    %v54 = vpop.trf.xlu0
    %v55 = vpop.trf.xlu0
    %v56 = vpop.trf.xlu0
    %v57 = vpop.trf.xlu0
    %v58 = vpop.trf.xlu0
    %v59 = vpop.trf.xlu0
    %v60 = vpop.trf.xlu0
    %v61 = vpop.trf.xlu0
    %v62 = vpop.trf.xlu0
    %v63 = vpop.trf.xlu0
    %v64 = vpop.trf.xlu0
    %v65 = vpop.trf.xlu0
    %v66 = vpop.trf.xlu0
    %v67 = vpop.trf.xlu0
    %v68 = vpop.trf.xlu0
    %71 = vst [vmem:[#allocation1] ss:$2 sm:$0xff] %v28
    %s72 = scalar_lea.vmem [#allocation1], 16
    %73 = vst [vmem:[%s72] ss:$2 sm:$0xff] %v29
    %v74 = vld.sshfl [vmem:[#allocation1] sm:$0xff pattern:$0x75316420]
    %v75 = vld.sshfl [vmem:[#allocation1 + $0x8] sm:$0xff pattern:$0x75316420]
    %v76 = vld.sshfl [vmem:[#allocation1 + $0x10] sm:$0xff pattern:$0x75316420]
    %v77 = vld.sshfl [vmem:[#allocation1 + $0x18] sm:$0xff pattern:$0x75316420]
    %vm78 = vcmask 31744
    %v80 = vsel %vm78, %v53, 0
    %vm82 = vcmask 1043456
    %v83 = vsel %vm82, %v74, 0
    %v85 = vsel %vm82, %v75, 0
    %v87 = vsel %vm82, %v76, 0
    %v89 = vsel %vm82, %v77, 0
    %91 = vmatpush.msra.mxu0 0.0
    %92 = vmatpush.msra.mxu0 0.0
    %93 = vmatpush.msra.mxu0 0.0
    %94 = vmatpush.msra.mxu0 0.0
    %95 = vmatpush.msra.mxu0 0.0
    %96 = vmatpush.msra.mxu0 0.0
    %97 = vmatpush.msra.mxu0 0.0
    %98 = vmatpush.msra.mxu0 0.0
    %99 = vmatpush.msra.mxu0 0.0
    %100 = vmatpush.msra.mxu0 0.0
    %101 = vmatpush.msra.mxu0 0.0
    %102 = vmatpush.msra.mxu0 0.0
    %103 = vmatpush.msra.mxu0 0.0
    %104 = vmatpush.msra.mxu0 0.0
    %105 = vmatpush.msra.mxu0 0.0
    %v106 = vand.u32 %v83, 4294901760
    %107 = vmatpush.msra.mxu0 %v106
    %v108 = vand.u32 %v80, 4294901760
    %v109 = vsub.f32 %v80, %v108
    %v110 = vand.u32 %v109, 4294901760
    %v111 = vsub.f32 %v109, %v110
    %v112 = vand.u32 %v111, 4294901760
    %113 = vmatmul.f32.gmra.mxu0 %v112
    %v114 = vpop.f32.mrf.mxu0
    %v115 = vadd.f32 0.0, %v114
    %116 = vdwg.mxu0
    %117 = vmatpush.msra.mxu0 0.0
    %118 = vmatpush.msra.mxu0 0.0
    %119 = vmatpush.msra.mxu0 0.0
    %120 = vmatpush.msra.mxu0 0.0
    %121 = vmatpush.msra.mxu0 0.0
    %122 = vmatpush.msra.mxu0 0.0
    %123 = vmatpush.msra.mxu0 0.0
    %124 = vmatpush.msra.mxu0 0.0
    %125 = vmatpush.msra.mxu0 0.0
    %126 = vmatpush.msra.mxu0 0.0
    %127 = vmatpush.msra.mxu0 0.0
    %128 = vmatpush.msra.mxu0 0.0
    %129 = vmatpush.msra.mxu0 0.0
    %130 = vmatpush.msra.mxu0 0.0
    %131 = vmatpush.msra.mxu0 0.0
    %v132 = vand.u32 %v83, 4294901760
    %v133 = vsub.f32 %v83, %v132
    %v134 = vand.u32 %v133, 4294901760
    %v135 = vsub.f32 %v133, %v134
    %v136 = vand.u32 %v135, 4294901760
    %137 = vmatpush.msra.mxu0 %v136
    %v138 = vand.u32 %v80, 4294901760
    %139 = vmatmul.f32.gmra.mxu0 %v138
    %v140 = vpop.f32.mrf.mxu0
    %v141 = vadd.f32 %v115, %v140
    %142 = vdwg.mxu0
    %143 = vmatpush.msra.mxu0 0.0
    %144 = vmatpush.msra.mxu0 0.0
    %145 = vmatpush.msra.mxu0 0.0
    %146 = vmatpush.msra.mxu0 0.0
    %147 = vmatpush.msra.mxu0 0.0
    %148 = vmatpush.msra.mxu0 0.0
    %149 = vmatpush.msra.mxu0 0.0
    %150 = vmatpush.msra.mxu0 0.0
    %151 = vmatpush.msra.mxu0 0.0
    %152 = vmatpush.msra.mxu0 0.0
    %153 = vmatpush.msra.mxu0 0.0
    %154 = vmatpush.msra.mxu0 0.0
    %155 = vmatpush.msra.mxu0 0.0
    %156 = vmatpush.msra.mxu0 0.0
    %157 = vmatpush.msra.mxu0 0.0
    %v158 = vand.u32 %v83, 4294901760
    %v159 = vsub.f32 %v83, %v158
    %160 = vmatpush.msra.mxu0 %v159
    %v161 = vand.u32 %v80, 4294901760
    %v162 = vsub.f32 %v80, %v161
    %163 = vmatmul.f32.gmra.mxu0 %v162
    %v164 = vpop.f32.mrf.mxu0
    %v165 = vadd.f32 %v141, %v164
    %166 = vdwg.mxu0
    %167 = vmatpush.msra.mxu0 0.0
    %168 = vmatpush.msra.mxu0 0.0
    %169 = vmatpush.msra.mxu0 0.0
    %170 = vmatpush.msra.mxu0 0.0
    %171 = vmatpush.msra.mxu0 0.0
    %172 = vmatpush.msra.mxu0 0.0
    %173 = vmatpush.msra.mxu0 0.0
    %174 = vmatpush.msra.mxu0 0.0
    %175 = vmatpush.msra.mxu0 0.0
    %176 = vmatpush.msra.mxu0 0.0
    %177 = vmatpush.msra.mxu0 0.0
    %178 = vmatpush.msra.mxu0 0.0
    %179 = vmatpush.msra.mxu0 0.0
    %180 = vmatpush.msra.mxu0 0.0
    %181 = vmatpush.msra.mxu0 0.0
    %v182 = vand.u32 %v83, 4294901760
    %183 = vmatpush.msra.mxu0 %v182
    %v184 = vand.u32 %v80, 4294901760
    %v185 = vsub.f32 %v80, %v184
    %v186 = vand.u32 %v185, 4294901760
    %187 = vmatmul.f32.gmra.mxu0 %v186
    %v188 = vpop.f32.mrf.mxu0
    %v189 = vadd.f32 %v165, %v188
    %190 = vdwg.mxu0
    %191 = vmatpush.msra.mxu0 0.0
    %192 = vmatpush.msra.mxu0 0.0
    %193 = vmatpush.msra.mxu0 0.0
    %194 = vmatpush.msra.mxu0 0.0
    %195 = vmatpush.msra.mxu0 0.0
    %196 = vmatpush.msra.mxu0 0.0
    %197 = vmatpush.msra.mxu0 0.0
    %198 = vmatpush.msra.mxu0 0.0
    %199 = vmatpush.msra.mxu0 0.0
    %200 = vmatpush.msra.mxu0 0.0
    %201 = vmatpush.msra.mxu0 0.0
    %202 = vmatpush.msra.mxu0 0.0
    %203 = vmatpush.msra.mxu0 0.0
    %204 = vmatpush.msra.mxu0 0.0
    %205 = vmatpush.msra.mxu0 0.0
    %v206 = vand.u32 %v83, 4294901760
    %v207 = vsub.f32 %v83, %v206
    %v208 = vand.u32 %v207, 4294901760
    %209 = vmatpush.msra.mxu0 %v208
    %v210 = vand.u32 %v80, 4294901760
    %211 = vmatmul.f32.gmra.mxu0 %v210
    %v212 = vpop.f32.mrf.mxu0
    %v213 = vadd.f32 %v189, %v212
    %214 = vdwg.mxu0
    %215 = vmatpush.msra.mxu0 0.0
    %216 = vmatpush.msra.mxu0 0.0
    %217 = vmatpush.msra.mxu0 0.0
    %218 = vmatpush.msra.mxu0 0.0
    %219 = vmatpush.msra.mxu0 0.0
    %220 = vmatpush.msra.mxu0 0.0
    %221 = vmatpush.msra.mxu0 0.0
    %222 = vmatpush.msra.mxu0 0.0
    %223 = vmatpush.msra.mxu0 0.0
    %224 = vmatpush.msra.mxu0 0.0
    %225 = vmatpush.msra.mxu0 0.0
    %226 = vmatpush.msra.mxu0 0.0
    %227 = vmatpush.msra.mxu0 0.0
    %228 = vmatpush.msra.mxu0 0.0
    %229 = vmatpush.msra.mxu0 0.0
    %v230 = vand.u32 %v83, 4294901760
    %231 = vmatpush.msra.mxu0 %v230
    %v232 = vand.u32 %v80, 4294901760
    %233 = vmatmul.f32.gmra.mxu0 %v232
    %v234 = vpop.f32.mrf.mxu0
    %v235 = vadd.f32 %v213, %v234
    %236 = vdwg.mxu0
    %237 = vmatpush.msra.mxu0 0.0
    %238 = vmatpush.msra.mxu0 0.0
    %239 = vmatpush.msra.mxu0 0.0
    %240 = vmatpush.msra.mxu0 0.0
    %241 = vmatpush.msra.mxu0 0.0
    %242 = vmatpush.msra.mxu0 0.0
    %243 = vmatpush.msra.mxu0 0.0
    %244 = vmatpush.msra.mxu0 0.0
    %245 = vmatpush.msra.mxu0 0.0
    %246 = vmatpush.msra.mxu0 0.0
    %247 = vmatpush.msra.mxu0 0.0
    %248 = vmatpush.msra.mxu0 0.0
    %249 = vmatpush.msra.mxu0 0.0
    %250 = vmatpush.msra.mxu0 0.0
    %251 = vmatpush.msra.mxu0 0.0
    %v252 = vand.u32 %v85, 4294901760
    %253 = vmatpush.msra.mxu0 %v252
    %v254 = vand.u32 %v80, 4294901760
    %v255 = vsub.f32 %v80, %v254
    %v256 = vand.u32 %v255, 4294901760
    %v257 = vsub.f32 %v255, %v256
    %v258 = vand.u32 %v257, 4294901760
    %259 = vmatmul.f32.gmra.mxu0 %v258
    %v260 = vpop.f32.mrf.mxu0
    %v261 = vadd.f32 0.0, %v260
    %262 = vdwg.mxu0
    %263 = vmatpush.msra.mxu0 0.0
    %264 = vmatpush.msra.mxu0 0.0
    %265 = vmatpush.msra.mxu0 0.0
    %266 = vmatpush.msra.mxu0 0.0
    %267 = vmatpush.msra.mxu0 0.0
    %268 = vmatpush.msra.mxu0 0.0
    %269 = vmatpush.msra.mxu0 0.0
    %270 = vmatpush.msra.mxu0 0.0
    %271 = vmatpush.msra.mxu0 0.0
    %272 = vmatpush.msra.mxu0 0.0
    %273 = vmatpush.msra.mxu0 0.0
    %274 = vmatpush.msra.mxu0 0.0
    %275 = vmatpush.msra.mxu0 0.0
    %276 = vmatpush.msra.mxu0 0.0
    %277 = vmatpush.msra.mxu0 0.0
    %v278 = vand.u32 %v85, 4294901760
    %v279 = vsub.f32 %v85, %v278
    %v280 = vand.u32 %v279, 4294901760
    %v281 = vsub.f32 %v279, %v280
    %v282 = vand.u32 %v281, 4294901760
    %283 = vmatpush.msra.mxu0 %v282
    %v284 = vand.u32 %v80, 4294901760
    %285 = vmatmul.f32.gmra.mxu0 %v284
    %v286 = vpop.f32.mrf.mxu0
    %v287 = vadd.f32 %v261, %v286
    %288 = vdwg.mxu0
    %289 = vmatpush.msra.mxu0 0.0
    %290 = vmatpush.msra.mxu0 0.0
    %291 = vmatpush.msra.mxu0 0.0
    %292 = vmatpush.msra.mxu0 0.0
    %293 = vmatpush.msra.mxu0 0.0
    %294 = vmatpush.msra.mxu0 0.0
    %295 = vmatpush.msra.mxu0 0.0
    %296 = vmatpush.msra.mxu0 0.0
    %297 = vmatpush.msra.mxu0 0.0
    %298 = vmatpush.msra.mxu0 0.0
    %299 = vmatpush.msra.mxu0 0.0
    %300 = vmatpush.msra.mxu0 0.0
    %301 = vmatpush.msra.mxu0 0.0
    %302 = vmatpush.msra.mxu0 0.0
    %303 = vmatpush.msra.mxu0 0.0
    %v304 = vand.u32 %v85, 4294901760
    %v305 = vsub.f32 %v85, %v304
    %306 = vmatpush.msra.mxu0 %v305
    %v307 = vand.u32 %v80, 4294901760
    %v308 = vsub.f32 %v80, %v307
    %309 = vmatmul.f32.gmra.mxu0 %v308
    %v310 = vpop.f32.mrf.mxu0
    %v311 = vadd.f32 %v287, %v310
    %312 = vdwg.mxu0
    %313 = vmatpush.msra.mxu0 0.0
    %314 = vmatpush.msra.mxu0 0.0
    %315 = vmatpush.msra.mxu0 0.0
    %316 = vmatpush.msra.mxu0 0.0
    %317 = vmatpush.msra.mxu0 0.0
    %318 = vmatpush.msra.mxu0 0.0
    %319 = vmatpush.msra.mxu0 0.0
    %320 = vmatpush.msra.mxu0 0.0
    %321 = vmatpush.msra.mxu0 0.0
    %322 = vmatpush.msra.mxu0 0.0
    %323 = vmatpush.msra.mxu0 0.0
    %324 = vmatpush.msra.mxu0 0.0
    %325 = vmatpush.msra.mxu0 0.0
    %326 = vmatpush.msra.mxu0 0.0
    %327 = vmatpush.msra.mxu0 0.0
    %v328 = vand.u32 %v85, 4294901760
    %329 = vmatpush.msra.mxu0 %v328
    %v330 = vand.u32 %v80, 4294901760
    %v331 = vsub.f32 %v80, %v330
    %v332 = vand.u32 %v331, 4294901760
    %333 = vmatmul.f32.gmra.mxu0 %v332
    %v334 = vpop.f32.mrf.mxu0
    %v335 = vadd.f32 %v311, %v334
    %336 = vdwg.mxu0
    %337 = vmatpush.msra.mxu0 0.0
    %338 = vmatpush.msra.mxu0 0.0
    %339 = vmatpush.msra.mxu0 0.0
    %340 = vmatpush.msra.mxu0 0.0
    %341 = vmatpush.msra.mxu0 0.0
    %342 = vmatpush.msra.mxu0 0.0
    %343 = vmatpush.msra.mxu0 0.0
    %344 = vmatpush.msra.mxu0 0.0
    %345 = vmatpush.msra.mxu0 0.0
    %346 = vmatpush.msra.mxu0 0.0
    %347 = vmatpush.msra.mxu0 0.0
    %348 = vmatpush.msra.mxu0 0.0
    %349 = vmatpush.msra.mxu0 0.0
    %350 = vmatpush.msra.mxu0 0.0
    %351 = vmatpush.msra.mxu0 0.0
    %v352 = vand.u32 %v85, 4294901760
    %v353 = vsub.f32 %v85, %v352
    %v354 = vand.u32 %v353, 4294901760
    %355 = vmatpush.msra.mxu0 %v354
    %v356 = vand.u32 %v80, 4294901760
    %357 = vmatmul.f32.gmra.mxu0 %v356
    %v358 = vpop.f32.mrf.mxu0
    %v359 = vadd.f32 %v335, %v358
    %360 = vdwg.mxu0
    %361 = vmatpush.msra.mxu0 0.0
    %362 = vmatpush.msra.mxu0 0.0
    %363 = vmatpush.msra.mxu0 0.0
    %364 = vmatpush.msra.mxu0 0.0
    %365 = vmatpush.msra.mxu0 0.0
    %366 = vmatpush.msra.mxu0 0.0
    %367 = vmatpush.msra.mxu0 0.0
    %368 = vmatpush.msra.mxu0 0.0
    %369 = vmatpush.msra.mxu0 0.0
    %370 = vmatpush.msra.mxu0 0.0
    %371 = vmatpush.msra.mxu0 0.0
    %372 = vmatpush.msra.mxu0 0.0
    %373 = vmatpush.msra.mxu0 0.0
    %374 = vmatpush.msra.mxu0 0.0
    %375 = vmatpush.msra.mxu0 0.0
    %v376 = vand.u32 %v85, 4294901760
    %377 = vmatpush.msra.mxu0 %v376
    %v378 = vand.u32 %v80, 4294901760
    %379 = vmatmul.f32.gmra.mxu0 %v378
    %v380 = vpop.f32.mrf.mxu0
    %v381 = vadd.f32 %v359, %v380
    %382 = vdwg.mxu0
    %383 = vmatpush.msra.mxu0 0.0
    %384 = vmatpush.msra.mxu0 0.0
    %385 = vmatpush.msra.mxu0 0.0
    %386 = vmatpush.msra.mxu0 0.0
    %387 = vmatpush.msra.mxu0 0.0
    %388 = vmatpush.msra.mxu0 0.0
    %389 = vmatpush.msra.mxu0 0.0
    %390 = vmatpush.msra.mxu0 0.0
    %391 = vmatpush.msra.mxu0 0.0
    %392 = vmatpush.msra.mxu0 0.0
    %393 = vmatpush.msra.mxu0 0.0
    %394 = vmatpush.msra.mxu0 0.0
    %395 = vmatpush.msra.mxu0 0.0
    %396 = vmatpush.msra.mxu0 0.0
    %397 = vmatpush.msra.mxu0 0.0
    %v398 = vand.u32 %v87, 4294901760
    %399 = vmatpush.msra.mxu0 %v398
    %v400 = vand.u32 %v80, 4294901760
    %v401 = vsub.f32 %v80, %v400
    %v402 = vand.u32 %v401, 4294901760
    %v403 = vsub.f32 %v401, %v402
    %v404 = vand.u32 %v403, 4294901760
    %405 = vmatmul.f32.gmra.mxu0 %v404
    %v406 = vpop.f32.mrf.mxu0
    %v407 = vadd.f32 0.0, %v406
    %408 = vdwg.mxu0
    %409 = vmatpush.msra.mxu0 0.0
    %410 = vmatpush.msra.mxu0 0.0
    %411 = vmatpush.msra.mxu0 0.0
    %412 = vmatpush.msra.mxu0 0.0
    %413 = vmatpush.msra.mxu0 0.0
    %414 = vmatpush.msra.mxu0 0.0
    %415 = vmatpush.msra.mxu0 0.0
    %416 = vmatpush.msra.mxu0 0.0
    %417 = vmatpush.msra.mxu0 0.0
    %418 = vmatpush.msra.mxu0 0.0
    %419 = vmatpush.msra.mxu0 0.0
    %420 = vmatpush.msra.mxu0 0.0
    %421 = vmatpush.msra.mxu0 0.0
    %422 = vmatpush.msra.mxu0 0.0
    %423 = vmatpush.msra.mxu0 0.0
    %v424 = vand.u32 %v87, 4294901760
    %v425 = vsub.f32 %v87, %v424
    %v426 = vand.u32 %v425, 4294901760
    %v427 = vsub.f32 %v425, %v426
    %v428 = vand.u32 %v427, 4294901760
    %429 = vmatpush.msra.mxu0 %v428
    %v430 = vand.u32 %v80, 4294901760
    %431 = vmatmul.f32.gmra.mxu0 %v430
    %v432 = vpop.f32.mrf.mxu0
    %v433 = vadd.f32 %v407, %v432
    %434 = vdwg.mxu0
    %435 = vmatpush.msra.mxu0 0.0
    %436 = vmatpush.msra.mxu0 0.0
    %437 = vmatpush.msra.mxu0 0.0
    %438 = vmatpush.msra.mxu0 0.0
    %439 = vmatpush.msra.mxu0 0.0
    %440 = vmatpush.msra.mxu0 0.0
    %441 = vmatpush.msra.mxu0 0.0
    %442 = vmatpush.msra.mxu0 0.0
    %443 = vmatpush.msra.mxu0 0.0
    %444 = vmatpush.msra.mxu0 0.0
    %445 = vmatpush.msra.mxu0 0.0
    %446 = vmatpush.msra.mxu0 0.0
    %447 = vmatpush.msra.mxu0 0.0
    %448 = vmatpush.msra.mxu0 0.0
    %449 = vmatpush.msra.mxu0 0.0
    %v450 = vand.u32 %v87, 4294901760
    %v451 = vsub.f32 %v87, %v450
    %452 = vmatpush.msra.mxu0 %v451
    %v453 = vand.u32 %v80, 4294901760
    %v454 = vsub.f32 %v80, %v453
    %455 = vmatmul.f32.gmra.mxu0 %v454
    %v456 = vpop.f32.mrf.mxu0
    %v457 = vadd.f32 %v433, %v456
    %458 = vdwg.mxu0
    %459 = vmatpush.msra.mxu0 0.0
    %460 = vmatpush.msra.mxu0 0.0
    %461 = vmatpush.msra.mxu0 0.0
    %462 = vmatpush.msra.mxu0 0.0
    %463 = vmatpush.msra.mxu0 0.0
    %464 = vmatpush.msra.mxu0 0.0
    %465 = vmatpush.msra.mxu0 0.0
    %466 = vmatpush.msra.mxu0 0.0
    %467 = vmatpush.msra.mxu0 0.0
    %468 = vmatpush.msra.mxu0 0.0
    %469 = vmatpush.msra.mxu0 0.0
    %470 = vmatpush.msra.mxu0 0.0
    %471 = vmatpush.msra.mxu0 0.0
    %472 = vmatpush.msra.mxu0 0.0
    %473 = vmatpush.msra.mxu0 0.0
    %v474 = vand.u32 %v87, 4294901760
    %475 = vmatpush.msra.mxu0 %v474
    %v476 = vand.u32 %v80, 4294901760
    %v477 = vsub.f32 %v80, %v476
    %v478 = vand.u32 %v477, 4294901760
    %479 = vmatmul.f32.gmra.mxu0 %v478
    %v480 = vpop.f32.mrf.mxu0
    %v481 = vadd.f32 %v457, %v480
    %482 = vdwg.mxu0
    %483 = vmatpush.msra.mxu0 0.0
    %484 = vmatpush.msra.mxu0 0.0
    %485 = vmatpush.msra.mxu0 0.0
    %486 = vmatpush.msra.mxu0 0.0
    %487 = vmatpush.msra.mxu0 0.0
    %488 = vmatpush.msra.mxu0 0.0
    %489 = vmatpush.msra.mxu0 0.0
    %490 = vmatpush.msra.mxu0 0.0
    %491 = vmatpush.msra.mxu0 0.0
    %492 = vmatpush.msra.mxu0 0.0
    %493 = vmatpush.msra.mxu0 0.0
    %494 = vmatpush.msra.mxu0 0.0
    %495 = vmatpush.msra.mxu0 0.0
    %496 = vmatpush.msra.mxu0 0.0
    %497 = vmatpush.msra.mxu0 0.0
    %v498 = vand.u32 %v87, 4294901760
    %v499 = vsub.f32 %v87, %v498
    %v500 = vand.u32 %v499, 4294901760
    %501 = vmatpush.msra.mxu0 %v500
    %v502 = vand.u32 %v80, 4294901760
    %503 = vmatmul.f32.gmra.mxu0 %v502
    %v504 = vpop.f32.mrf.mxu0
    %v505 = vadd.f32 %v481, %v504
    %506 = vdwg.mxu0
    %507 = vmatpush.msra.mxu0 0.0
    %508 = vmatpush.msra.mxu0 0.0
    %509 = vmatpush.msra.mxu0 0.0
    %510 = vmatpush.msra.mxu0 0.0
    %511 = vmatpush.msra.mxu0 0.0
    %512 = vmatpush.msra.mxu0 0.0
    %513 = vmatpush.msra.mxu0 0.0
    %514 = vmatpush.msra.mxu0 0.0
    %515 = vmatpush.msra.mxu0 0.0
    %516 = vmatpush.msra.mxu0 0.0
    %517 = vmatpush.msra.mxu0 0.0
    %518 = vmatpush.msra.mxu0 0.0
    %519 = vmatpush.msra.mxu0 0.0
    %520 = vmatpush.msra.mxu0 0.0
    %521 = vmatpush.msra.mxu0 0.0
    %v522 = vand.u32 %v87, 4294901760
    %523 = vmatpush.msra.mxu0 %v522
    %v524 = vand.u32 %v80, 4294901760
    %525 = vmatmul.f32.gmra.mxu0 %v524
    %v526 = vpop.f32.mrf.mxu0
    %v527 = vadd.f32 %v505, %v526
    %528 = vdwg.mxu0
    %529 = vmatpush.msra.mxu0 0.0
    %530 = vmatpush.msra.mxu0 0.0
    %531 = vmatpush.msra.mxu0 0.0
    %532 = vmatpush.msra.mxu0 0.0
    %533 = vmatpush.msra.mxu0 0.0
    %534 = vmatpush.msra.mxu0 0.0
    %535 = vmatpush.msra.mxu0 0.0
    %536 = vmatpush.msra.mxu0 0.0
    %537 = vmatpush.msra.mxu0 0.0
    %538 = vmatpush.msra.mxu0 0.0
    %539 = vmatpush.msra.mxu0 0.0
    %540 = vmatpush.msra.mxu0 0.0
    %541 = vmatpush.msra.mxu0 0.0
    %542 = vmatpush.msra.mxu0 0.0
    %543 = vmatpush.msra.mxu0 0.0
    %v544 = vand.u32 %v89, 4294901760
    %545 = vmatpush.msra.mxu0 %v544
    %v546 = vand.u32 %v80, 4294901760
    %v547 = vsub.f32 %v80, %v546
    %v548 = vand.u32 %v547, 4294901760
    %v549 = vsub.f32 %v547, %v548
    %v550 = vand.u32 %v549, 4294901760
    %551 = vmatmul.f32.gmra.mxu0 %v550
    %v552 = vpop.f32.mrf.mxu0
    %v553 = vadd.f32 0.0, %v552
    %554 = vdwg.mxu0
    %555 = vmatpush.msra.mxu0 0.0
    %556 = vmatpush.msra.mxu0 0.0
    %557 = vmatpush.msra.mxu0 0.0
    %558 = vmatpush.msra.mxu0 0.0
    %559 = vmatpush.msra.mxu0 0.0
    %560 = vmatpush.msra.mxu0 0.0
    %561 = vmatpush.msra.mxu0 0.0
    %562 = vmatpush.msra.mxu0 0.0
    %563 = vmatpush.msra.mxu0 0.0
    %564 = vmatpush.msra.mxu0 0.0
    %565 = vmatpush.msra.mxu0 0.0
    %566 = vmatpush.msra.mxu0 0.0
    %567 = vmatpush.msra.mxu0 0.0
    %568 = vmatpush.msra.mxu0 0.0
    %569 = vmatpush.msra.mxu0 0.0
    %v570 = vand.u32 %v89, 4294901760
    %v571 = vsub.f32 %v89, %v570
    %v572 = vand.u32 %v571, 4294901760
    %v573 = vsub.f32 %v571, %v572
    %v574 = vand.u32 %v573, 4294901760
    %575 = vmatpush.msra.mxu0 %v574
    %v576 = vand.u32 %v80, 4294901760
    %577 = vmatmul.f32.gmra.mxu0 %v576
    %v578 = vpop.f32.mrf.mxu0
    %v579 = vadd.f32 %v553, %v578
    %580 = vdwg.mxu0
    %581 = vmatpush.msra.mxu0 0.0
    %582 = vmatpush.msra.mxu0 0.0
    %583 = vmatpush.msra.mxu0 0.0
    %584 = vmatpush.msra.mxu0 0.0
    %585 = vmatpush.msra.mxu0 0.0
    %586 = vmatpush.msra.mxu0 0.0
    %587 = vmatpush.msra.mxu0 0.0
    %588 = vmatpush.msra.mxu0 0.0
    %589 = vmatpush.msra.mxu0 0.0
    %590 = vmatpush.msra.mxu0 0.0
    %591 = vmatpush.msra.mxu0 0.0
    %592 = vmatpush.msra.mxu0 0.0
    %593 = vmatpush.msra.mxu0 0.0
    %594 = vmatpush.msra.mxu0 0.0
    %595 = vmatpush.msra.mxu0 0.0
    %v596 = vand.u32 %v89, 4294901760
    %v597 = vsub.f32 %v89, %v596
    %598 = vmatpush.msra.mxu0 %v597
    %v599 = vand.u32 %v80, 4294901760
    %v600 = vsub.f32 %v80, %v599
    %601 = vmatmul.f32.gmra.mxu0 %v600
    %v602 = vpop.f32.mrf.mxu0
    %v603 = vadd.f32 %v579, %v602
    %604 = vdwg.mxu0
    %605 = vmatpush.msra.mxu0 0.0
    %606 = vmatpush.msra.mxu0 0.0
    %607 = vmatpush.msra.mxu0 0.0
    %608 = vmatpush.msra.mxu0 0.0
    %609 = vmatpush.msra.mxu0 0.0
    %610 = vmatpush.msra.mxu0 0.0
    %611 = vmatpush.msra.mxu0 0.0
    %612 = vmatpush.msra.mxu0 0.0
    %613 = vmatpush.msra.mxu0 0.0
    %614 = vmatpush.msra.mxu0 0.0
    %615 = vmatpush.msra.mxu0 0.0
    %616 = vmatpush.msra.mxu0 0.0
    %617 = vmatpush.msra.mxu0 0.0
    %618 = vmatpush.msra.mxu0 0.0
    %619 = vmatpush.msra.mxu0 0.0
    %v620 = vand.u32 %v89, 4294901760
    %621 = vmatpush.msra.mxu0 %v620
    %v622 = vand.u32 %v80, 4294901760
    %v623 = vsub.f32 %v80, %v622
    %v624 = vand.u32 %v623, 4294901760
    %625 = vmatmul.f32.gmra.mxu0 %v624
    %v626 = vpop.f32.mrf.mxu0
    %v627 = vadd.f32 %v603, %v626
    %628 = vdwg.mxu0
    %629 = vmatpush.msra.mxu0 0.0
    %630 = vmatpush.msra.mxu0 0.0
    %631 = vmatpush.msra.mxu0 0.0
    %632 = vmatpush.msra.mxu0 0.0
    %633 = vmatpush.msra.mxu0 0.0
    %634 = vmatpush.msra.mxu0 0.0
    %635 = vmatpush.msra.mxu0 0.0
    %636 = vmatpush.msra.mxu0 0.0
    %637 = vmatpush.msra.mxu0 0.0
    %638 = vmatpush.msra.mxu0 0.0
    %639 = vmatpush.msra.mxu0 0.0
    %640 = vmatpush.msra.mxu0 0.0
    %641 = vmatpush.msra.mxu0 0.0
    %642 = vmatpush.msra.mxu0 0.0
    %643 = vmatpush.msra.mxu0 0.0
    %v644 = vand.u32 %v89, 4294901760
    %v645 = vsub.f32 %v89, %v644
    %v646 = vand.u32 %v645, 4294901760
    %647 = vmatpush.msra.mxu0 %v646
    %v648 = vand.u32 %v80, 4294901760
    %649 = vmatmul.f32.gmra.mxu0 %v648
    %v650 = vpop.f32.mrf.mxu0
    %v651 = vadd.f32 %v627, %v650
    %652 = vdwg.mxu0
    %653 = vmatpush.msra.mxu0 0.0
    %654 = vmatpush.msra.mxu0 0.0
    %655 = vmatpush.msra.mxu0 0.0
    %656 = vmatpush.msra.mxu0 0.0
    %657 = vmatpush.msra.mxu0 0.0
    %658 = vmatpush.msra.mxu0 0.0
    %659 = vmatpush.msra.mxu0 0.0
    %660 = vmatpush.msra.mxu0 0.0
    %661 = vmatpush.msra.mxu0 0.0
    %662 = vmatpush.msra.mxu0 0.0
    %663 = vmatpush.msra.mxu0 0.0
    %664 = vmatpush.msra.mxu0 0.0
    %665 = vmatpush.msra.mxu0 0.0
    %666 = vmatpush.msra.mxu0 0.0
    %667 = vmatpush.msra.mxu0 0.0
    %v668 = vand.u32 %v89, 4294901760
    %669 = vmatpush.msra.mxu0 %v668
    %v670 = vand.u32 %v80, 4294901760
    %671 = vmatmul.f32.gmra.mxu0 %v670
    %v672 = vpop.f32.mrf.mxu0
    %v673 = vadd.f32 %v651, %v672
    %674 = vdwg.mxu0
    %675 = vxpose.xlu0.b32.start [1/16] %v31, 128
    %676 = vxpose.xlu0.b32.cont [2/16] 0.0, 128
    %677 = vxpose.xlu0.b32.cont [3/16] 0.0, 128
    %678 = vxpose.xlu0.b32.cont [4/16] 0.0, 128
    %679 = vxpose.xlu0.b32.cont [5/16] 0.0, 128
    %680 = vxpose.xlu0.b32.cont [6/16] 0.0, 128
    %681 = vxpose.xlu0.b32.cont [7/16] 0.0, 128
    %682 = vxpose.xlu0.b32.cont [8/16] 0.0, 128
    %683 = vxpose.xlu0.b32.cont [9/16] 0.0, 128
    %684 = vxpose.xlu0.b32.cont [10/16] 0.0, 128
    %685 = vxpose.xlu0.b32.cont [11/16] 0.0, 128
    %686 = vxpose.xlu0.b32.cont [12/16] 0.0, 128
    %687 = vxpose.xlu0.b32.cont [13/16] 0.0, 128
    %688 = vxpose.xlu0.b32.cont [14/16] 0.0, 128
    %689 = vxpose.xlu0.b32.cont [15/16] 0.0, 128
    %690 = vxpose.xlu0.b32.end [16/16] 0.0, 128
    %v691 = vpop.trf.xlu0
    %v692 = vpop.trf.xlu0
    %v693 = vpop.trf.xlu0
    %v694 = vpop.trf.xlu0
    %v695 = vpop.trf.xlu0
    %v696 = vpop.trf.xlu0
    %v697 = vpop.trf.xlu0
    %v698 = vpop.trf.xlu0
    %v699 = vpop.trf.xlu0
    %v700 = vpop.trf.xlu0
    %v701 = vpop.trf.xlu0
    %v702 = vpop.trf.xlu0
    %v703 = vpop.trf.xlu0
    %v704 = vpop.trf.xlu0
    %v705 = vpop.trf.xlu0
    %v706 = vpop.trf.xlu0
    %v708 = vsel %vm78, %v691, 0
    %v711 = vsel %vm82, %v235, 0
    %v714 = vsel %vm82, %v381, 0
    %v717 = vsel %vm82, %v527, 0
    %v720 = vsel %vm82, %v673, 0
    %722 = vmatpush.msra.mxu0 0.0
    %723 = vmatpush.msra.mxu0 0.0
    %724 = vmatpush.msra.mxu0 0.0
    %725 = vmatpush.msra.mxu0 0.0
    %726 = vmatpush.msra.mxu0 0.0
    %727 = vmatpush.msra.mxu0 0.0
    %728 = vmatpush.msra.mxu0 0.0
    %729 = vmatpush.msra.mxu0 0.0
    %730 = vmatpush.msra.mxu0 0.0
    %731 = vmatpush.msra.mxu0 0.0
    %732 = vmatpush.msra.mxu0 0.0
    %733 = vmatpush.msra.mxu0 0.0
    %734 = vmatpush.msra.mxu0 0.0
    %735 = vmatpush.msra.mxu0 0.0
    %736 = vmatpush.msra.mxu0 0.0
    %v737 = vand.u32 %v711, 4294901760
    %738 = vmatpush.msra.mxu0 %v737
    %v739 = vand.u32 %v708, 4294901760
    %v740 = vsub.f32 %v708, %v739
    %v741 = vand.u32 %v740, 4294901760
    %v742 = vsub.f32 %v740, %v741
    %v743 = vand.u32 %v742, 4294901760
    %744 = vmatmul.f32.gmra.mxu0 %v743
    %v745 = vpop.f32.mrf.mxu0
    %v746 = vadd.f32 0.0, %v745
    %747 = vdwg.mxu0
    %748 = vmatpush.msra.mxu0 0.0
    %749 = vmatpush.msra.mxu0 0.0
    %750 = vmatpush.msra.mxu0 0.0
    %751 = vmatpush.msra.mxu0 0.0
    %752 = vmatpush.msra.mxu0 0.0
    %753 = vmatpush.msra.mxu0 0.0
    %754 = vmatpush.msra.mxu0 0.0
    %755 = vmatpush.msra.mxu0 0.0
    %756 = vmatpush.msra.mxu0 0.0
    %757 = vmatpush.msra.mxu0 0.0
    %758 = vmatpush.msra.mxu0 0.0
    %759 = vmatpush.msra.mxu0 0.0
    %760 = vmatpush.msra.mxu0 0.0
    %761 = vmatpush.msra.mxu0 0.0
    %762 = vmatpush.msra.mxu0 0.0
    %v763 = vand.u32 %v711, 4294901760
    %v764 = vsub.f32 %v711, %v763
    %v765 = vand.u32 %v764, 4294901760
    %v766 = vsub.f32 %v764, %v765
    %v767 = vand.u32 %v766, 4294901760
    %768 = vmatpush.msra.mxu0 %v767
    %v769 = vand.u32 %v708, 4294901760
    %770 = vmatmul.f32.gmra.mxu0 %v769
    %v771 = vpop.f32.mrf.mxu0
    %v772 = vadd.f32 %v746, %v771
    %773 = vdwg.mxu0
    %774 = vmatpush.msra.mxu0 0.0
    %775 = vmatpush.msra.mxu0 0.0
    %776 = vmatpush.msra.mxu0 0.0
    %777 = vmatpush.msra.mxu0 0.0
    %778 = vmatpush.msra.mxu0 0.0
    %779 = vmatpush.msra.mxu0 0.0
    %780 = vmatpush.msra.mxu0 0.0
    %781 = vmatpush.msra.mxu0 0.0
    %782 = vmatpush.msra.mxu0 0.0
    %783 = vmatpush.msra.mxu0 0.0
    %784 = vmatpush.msra.mxu0 0.0
    %785 = vmatpush.msra.mxu0 0.0
    %786 = vmatpush.msra.mxu0 0.0
    %787 = vmatpush.msra.mxu0 0.0
    %788 = vmatpush.msra.mxu0 0.0
    %v789 = vand.u32 %v711, 4294901760
    %v790 = vsub.f32 %v711, %v789
    %791 = vmatpush.msra.mxu0 %v790
    %v792 = vand.u32 %v708, 4294901760
    %v793 = vsub.f32 %v708, %v792
    %794 = vmatmul.f32.gmra.mxu0 %v793
    %v795 = vpop.f32.mrf.mxu0
    %v796 = vadd.f32 %v772, %v795
    %797 = vdwg.mxu0
    %798 = vmatpush.msra.mxu0 0.0
    %799 = vmatpush.msra.mxu0 0.0
    %800 = vmatpush.msra.mxu0 0.0
    %801 = vmatpush.msra.mxu0 0.0
    %802 = vmatpush.msra.mxu0 0.0
    %803 = vmatpush.msra.mxu0 0.0
    %804 = vmatpush.msra.mxu0 0.0
    %805 = vmatpush.msra.mxu0 0.0
    %806 = vmatpush.msra.mxu0 0.0
    %807 = vmatpush.msra.mxu0 0.0
    %808 = vmatpush.msra.mxu0 0.0
    %809 = vmatpush.msra.mxu0 0.0
    %810 = vmatpush.msra.mxu0 0.0
    %811 = vmatpush.msra.mxu0 0.0
    %812 = vmatpush.msra.mxu0 0.0
    %v813 = vand.u32 %v711, 4294901760
    %814 = vmatpush.msra.mxu0 %v813
    %v815 = vand.u32 %v708, 4294901760
    %v816 = vsub.f32 %v708, %v815
    %v817 = vand.u32 %v816, 4294901760
    %818 = vmatmul.f32.gmra.mxu0 %v817
    %v819 = vpop.f32.mrf.mxu0
    %v820 = vadd.f32 %v796, %v819
    %821 = vdwg.mxu0
    %822 = vmatpush.msra.mxu0 0.0
    %823 = vmatpush.msra.mxu0 0.0
    %824 = vmatpush.msra.mxu0 0.0
    %825 = vmatpush.msra.mxu0 0.0
    %826 = vmatpush.msra.mxu0 0.0
    %827 = vmatpush.msra.mxu0 0.0
    %828 = vmatpush.msra.mxu0 0.0
    %829 = vmatpush.msra.mxu0 0.0
    %830 = vmatpush.msra.mxu0 0.0
    %831 = vmatpush.msra.mxu0 0.0
    %832 = vmatpush.msra.mxu0 0.0
    %833 = vmatpush.msra.mxu0 0.0
    %834 = vmatpush.msra.mxu0 0.0
    %835 = vmatpush.msra.mxu0 0.0
    %836 = vmatpush.msra.mxu0 0.0
    %v837 = vand.u32 %v711, 4294901760
    %v838 = vsub.f32 %v711, %v837
    %v839 = vand.u32 %v838, 4294901760
    %840 = vmatpush.msra.mxu0 %v839
    %v841 = vand.u32 %v708, 4294901760
    %842 = vmatmul.f32.gmra.mxu0 %v841
    %v843 = vpop.f32.mrf.mxu0
    %v844 = vadd.f32 %v820, %v843
    %845 = vdwg.mxu0
    %846 = vmatpush.msra.mxu0 0.0
    %847 = vmatpush.msra.mxu0 0.0
    %848 = vmatpush.msra.mxu0 0.0
    %849 = vmatpush.msra.mxu0 0.0
    %850 = vmatpush.msra.mxu0 0.0
    %851 = vmatpush.msra.mxu0 0.0
    %852 = vmatpush.msra.mxu0 0.0
    %853 = vmatpush.msra.mxu0 0.0
    %854 = vmatpush.msra.mxu0 0.0
    %855 = vmatpush.msra.mxu0 0.0
    %856 = vmatpush.msra.mxu0 0.0
    %857 = vmatpush.msra.mxu0 0.0
    %858 = vmatpush.msra.mxu0 0.0
    %859 = vmatpush.msra.mxu0 0.0
    %860 = vmatpush.msra.mxu0 0.0
    %v861 = vand.u32 %v711, 4294901760
    %862 = vmatpush.msra.mxu0 %v861
    %v863 = vand.u32 %v708, 4294901760
    %864 = vmatmul.f32.gmra.mxu0 %v863
    %v865 = vpop.f32.mrf.mxu0
    %v866 = vadd.f32 %v844, %v865
    %867 = vdwg.mxu0
    %868 = vmatpush.msra.mxu0 0.0
    %869 = vmatpush.msra.mxu0 0.0
    %870 = vmatpush.msra.mxu0 0.0
    %871 = vmatpush.msra.mxu0 0.0
    %872 = vmatpush.msra.mxu0 0.0
    %873 = vmatpush.msra.mxu0 0.0
    %874 = vmatpush.msra.mxu0 0.0
    %875 = vmatpush.msra.mxu0 0.0
    %876 = vmatpush.msra.mxu0 0.0
    %877 = vmatpush.msra.mxu0 0.0
    %878 = vmatpush.msra.mxu0 0.0
    %879 = vmatpush.msra.mxu0 0.0
    %880 = vmatpush.msra.mxu0 0.0
    %881 = vmatpush.msra.mxu0 0.0
    %882 = vmatpush.msra.mxu0 0.0
    %v883 = vand.u32 %v714, 4294901760
    %884 = vmatpush.msra.mxu0 %v883
    %v885 = vand.u32 %v708, 4294901760
    %v886 = vsub.f32 %v708, %v885
    %v887 = vand.u32 %v886, 4294901760
    %v888 = vsub.f32 %v886, %v887
    %v889 = vand.u32 %v888, 4294901760
    %890 = vmatmul.f32.gmra.mxu0 %v889
    %v891 = vpop.f32.mrf.mxu0
    %v892 = vadd.f32 0.0, %v891
    %893 = vdwg.mxu0
    %894 = vmatpush.msra.mxu0 0.0
    %895 = vmatpush.msra.mxu0 0.0
    %896 = vmatpush.msra.mxu0 0.0
    %897 = vmatpush.msra.mxu0 0.0
    %898 = vmatpush.msra.mxu0 0.0
    %899 = vmatpush.msra.mxu0 0.0
    %900 = vmatpush.msra.mxu0 0.0
    %901 = vmatpush.msra.mxu0 0.0
    %902 = vmatpush.msra.mxu0 0.0
    %903 = vmatpush.msra.mxu0 0.0
    %904 = vmatpush.msra.mxu0 0.0
    %905 = vmatpush.msra.mxu0 0.0
    %906 = vmatpush.msra.mxu0 0.0
    %907 = vmatpush.msra.mxu0 0.0
    %908 = vmatpush.msra.mxu0 0.0
    %v909 = vand.u32 %v714, 4294901760
    %v910 = vsub.f32 %v714, %v909
    %v911 = vand.u32 %v910, 4294901760
    %v912 = vsub.f32 %v910, %v911
    %v913 = vand.u32 %v912, 4294901760
    %914 = vmatpush.msra.mxu0 %v913
    %v915 = vand.u32 %v708, 4294901760
    %916 = vmatmul.f32.gmra.mxu0 %v915
    %v917 = vpop.f32.mrf.mxu0
    %v918 = vadd.f32 %v892, %v917
    %919 = vdwg.mxu0
    %920 = vmatpush.msra.mxu0 0.0
    %921 = vmatpush.msra.mxu0 0.0
    %922 = vmatpush.msra.mxu0 0.0
    %923 = vmatpush.msra.mxu0 0.0
    %924 = vmatpush.msra.mxu0 0.0
    %925 = vmatpush.msra.mxu0 0.0
    %926 = vmatpush.msra.mxu0 0.0
    %927 = vmatpush.msra.mxu0 0.0
    %928 = vmatpush.msra.mxu0 0.0
    %929 = vmatpush.msra.mxu0 0.0
    %930 = vmatpush.msra.mxu0 0.0
    %931 = vmatpush.msra.mxu0 0.0
    %932 = vmatpush.msra.mxu0 0.0
    %933 = vmatpush.msra.mxu0 0.0
    %934 = vmatpush.msra.mxu0 0.0
    %v935 = vand.u32 %v714, 4294901760
    %v936 = vsub.f32 %v714, %v935
    %937 = vmatpush.msra.mxu0 %v936
    %v938 = vand.u32 %v708, 4294901760
    %v939 = vsub.f32 %v708, %v938
    %940 = vmatmul.f32.gmra.mxu0 %v939
    %v941 = vpop.f32.mrf.mxu0
    %v942 = vadd.f32 %v918, %v941
    %943 = vdwg.mxu0
    %944 = vmatpush.msra.mxu0 0.0
    %945 = vmatpush.msra.mxu0 0.0
    %946 = vmatpush.msra.mxu0 0.0
    %947 = vmatpush.msra.mxu0 0.0
    %948 = vmatpush.msra.mxu0 0.0
    %949 = vmatpush.msra.mxu0 0.0
    %950 = vmatpush.msra.mxu0 0.0
    %951 = vmatpush.msra.mxu0 0.0
    %952 = vmatpush.msra.mxu0 0.0
    %953 = vmatpush.msra.mxu0 0.0
    %954 = vmatpush.msra.mxu0 0.0
    %955 = vmatpush.msra.mxu0 0.0
    %956 = vmatpush.msra.mxu0 0.0
    %957 = vmatpush.msra.mxu0 0.0
    %958 = vmatpush.msra.mxu0 0.0
    %v959 = vand.u32 %v714, 4294901760
    %960 = vmatpush.msra.mxu0 %v959
    %v961 = vand.u32 %v708, 4294901760
    %v962 = vsub.f32 %v708, %v961
    %v963 = vand.u32 %v962, 4294901760
    %964 = vmatmul.f32.gmra.mxu0 %v963
    %v965 = vpop.f32.mrf.mxu0
    %v966 = vadd.f32 %v942, %v965
    %967 = vdwg.mxu0
    %968 = vmatpush.msra.mxu0 0.0
    %969 = vmatpush.msra.mxu0 0.0
    %970 = vmatpush.msra.mxu0 0.0
    %971 = vmatpush.msra.mxu0 0.0
    %972 = vmatpush.msra.mxu0 0.0
    %973 = vmatpush.msra.mxu0 0.0
    %974 = vmatpush.msra.mxu0 0.0
    %975 = vmatpush.msra.mxu0 0.0
    %976 = vmatpush.msra.mxu0 0.0
    %977 = vmatpush.msra.mxu0 0.0
    %978 = vmatpush.msra.mxu0 0.0
    %979 = vmatpush.msra.mxu0 0.0
    %980 = vmatpush.msra.mxu0 0.0
    %981 = vmatpush.msra.mxu0 0.0
    %982 = vmatpush.msra.mxu0 0.0
    %v983 = vand.u32 %v714, 4294901760
    %v984 = vsub.f32 %v714, %v983
    %v985 = vand.u32 %v984, 4294901760
    %986 = vmatpush.msra.mxu0 %v985
    %v987 = vand.u32 %v708, 4294901760
    %988 = vmatmul.f32.gmra.mxu0 %v987
    %v989 = vpop.f32.mrf.mxu0
    %v990 = vadd.f32 %v966, %v989
    %991 = vdwg.mxu0
    %992 = vmatpush.msra.mxu0 0.0
    %993 = vmatpush.msra.mxu0 0.0
    %994 = vmatpush.msra.mxu0 0.0
    %995 = vmatpush.msra.mxu0 0.0
    %996 = vmatpush.msra.mxu0 0.0
    %997 = vmatpush.msra.mxu0 0.0
    %998 = vmatpush.msra.mxu0 0.0
    %999 = vmatpush.msra.mxu0 0.0
    %1000 = vmatpush.msra.mxu0 0.0
    %1001 = vmatpush.msra.mxu0 0.0
    %1002 = vmatpush.msra.mxu0 0.0
    %1003 = vmatpush.msra.mxu0 0.0
    %1004 = vmatpush.msra.mxu0 0.0
    %1005 = vmatpush.msra.mxu0 0.0
    %1006 = vmatpush.msra.mxu0 0.0
    %v1007 = vand.u32 %v714, 4294901760
    %1008 = vmatpush.msra.mxu0 %v1007
    %v1009 = vand.u32 %v708, 4294901760
    %1010 = vmatmul.f32.gmra.mxu0 %v1009
    %v1011 = vpop.f32.mrf.mxu0
    %v1012 = vadd.f32 %v990, %v1011
    %1013 = vdwg.mxu0
    %1014 = vmatpush.msra.mxu0 0.0
    %1015 = vmatpush.msra.mxu0 0.0
    %1016 = vmatpush.msra.mxu0 0.0
    %1017 = vmatpush.msra.mxu0 0.0
    %1018 = vmatpush.msra.mxu0 0.0
    %1019 = vmatpush.msra.mxu0 0.0
    %1020 = vmatpush.msra.mxu0 0.0
    %1021 = vmatpush.msra.mxu0 0.0
    %1022 = vmatpush.msra.mxu0 0.0
    %1023 = vmatpush.msra.mxu0 0.0
    %1024 = vmatpush.msra.mxu0 0.0
    %1025 = vmatpush.msra.mxu0 0.0
    %1026 = vmatpush.msra.mxu0 0.0
    %1027 = vmatpush.msra.mxu0 0.0
    %1028 = vmatpush.msra.mxu0 0.0
    %v1029 = vand.u32 %v717, 4294901760
    %1030 = vmatpush.msra.mxu0 %v1029
    %v1031 = vand.u32 %v708, 4294901760
    %v1032 = vsub.f32 %v708, %v1031
    %v1033 = vand.u32 %v1032, 4294901760
    %v1034 = vsub.f32 %v1032, %v1033
    %v1035 = vand.u32 %v1034, 4294901760
    %1036 = vmatmul.f32.gmra.mxu0 %v1035
    %v1037 = vpop.f32.mrf.mxu0
    %v1038 = vadd.f32 0.0, %v1037
    %1039 = vdwg.mxu0
    %1040 = vmatpush.msra.mxu0 0.0
    %1041 = vmatpush.msra.mxu0 0.0
    %1042 = vmatpush.msra.mxu0 0.0
    %1043 = vmatpush.msra.mxu0 0.0
    %1044 = vmatpush.msra.mxu0 0.0
    %1045 = vmatpush.msra.mxu0 0.0
    %1046 = vmatpush.msra.mxu0 0.0
    %1047 = vmatpush.msra.mxu0 0.0
    %1048 = vmatpush.msra.mxu0 0.0
    %1049 = vmatpush.msra.mxu0 0.0
    %1050 = vmatpush.msra.mxu0 0.0
    %1051 = vmatpush.msra.mxu0 0.0
    %1052 = vmatpush.msra.mxu0 0.0
    %1053 = vmatpush.msra.mxu0 0.0
    %1054 = vmatpush.msra.mxu0 0.0
    %v1055 = vand.u32 %v717, 4294901760
    %v1056 = vsub.f32 %v717, %v1055
    %v1057 = vand.u32 %v1056, 4294901760
    %v1058 = vsub.f32 %v1056, %v1057
    %v1059 = vand.u32 %v1058, 4294901760
    %1060 = vmatpush.msra.mxu0 %v1059
    %v1061 = vand.u32 %v708, 4294901760
    %1062 = vmatmul.f32.gmra.mxu0 %v1061
    %v1063 = vpop.f32.mrf.mxu0
    %v1064 = vadd.f32 %v1038, %v1063
    %1065 = vdwg.mxu0
    %1066 = vmatpush.msra.mxu0 0.0
    %1067 = vmatpush.msra.mxu0 0.0
    %1068 = vmatpush.msra.mxu0 0.0
    %1069 = vmatpush.msra.mxu0 0.0
    %1070 = vmatpush.msra.mxu0 0.0
    %1071 = vmatpush.msra.mxu0 0.0
    %1072 = vmatpush.msra.mxu0 0.0
    %1073 = vmatpush.msra.mxu0 0.0
    %1074 = vmatpush.msra.mxu0 0.0
    %1075 = vmatpush.msra.mxu0 0.0
    %1076 = vmatpush.msra.mxu0 0.0
    %1077 = vmatpush.msra.mxu0 0.0
    %1078 = vmatpush.msra.mxu0 0.0
    %1079 = vmatpush.msra.mxu0 0.0
    %1080 = vmatpush.msra.mxu0 0.0
    %v1081 = vand.u32 %v717, 4294901760
    %v1082 = vsub.f32 %v717, %v1081
    %1083 = vmatpush.msra.mxu0 %v1082
    %v1084 = vand.u32 %v708, 4294901760
    %v1085 = vsub.f32 %v708, %v1084
    %1086 = vmatmul.f32.gmra.mxu0 %v1085
    %v1087 = vpop.f32.mrf.mxu0
    %v1088 = vadd.f32 %v1064, %v1087
    %1089 = vdwg.mxu0
    %1090 = vmatpush.msra.mxu0 0.0
    %1091 = vmatpush.msra.mxu0 0.0
    %1092 = vmatpush.msra.mxu0 0.0
    %1093 = vmatpush.msra.mxu0 0.0
    %1094 = vmatpush.msra.mxu0 0.0
    %1095 = vmatpush.msra.mxu0 0.0
    %1096 = vmatpush.msra.mxu0 0.0
    %1097 = vmatpush.msra.mxu0 0.0
    %1098 = vmatpush.msra.mxu0 0.0
    %1099 = vmatpush.msra.mxu0 0.0
    %1100 = vmatpush.msra.mxu0 0.0
    %1101 = vmatpush.msra.mxu0 0.0
    %1102 = vmatpush.msra.mxu0 0.0
    %1103 = vmatpush.msra.mxu0 0.0
    %1104 = vmatpush.msra.mxu0 0.0
    %v1105 = vand.u32 %v717, 4294901760
    %1106 = vmatpush.msra.mxu0 %v1105
    %v1107 = vand.u32 %v708, 4294901760
    %v1108 = vsub.f32 %v708, %v1107
    %v1109 = vand.u32 %v1108, 4294901760
    %1110 = vmatmul.f32.gmra.mxu0 %v1109
    %v1111 = vpop.f32.mrf.mxu0
    %v1112 = vadd.f32 %v1088, %v1111
    %1113 = vdwg.mxu0
    %1114 = vmatpush.msra.mxu0 0.0
    %1115 = vmatpush.msra.mxu0 0.0
    %1116 = vmatpush.msra.mxu0 0.0
    %1117 = vmatpush.msra.mxu0 0.0
    %1118 = vmatpush.msra.mxu0 0.0
    %1119 = vmatpush.msra.mxu0 0.0
    %1120 = vmatpush.msra.mxu0 0.0
    %1121 = vmatpush.msra.mxu0 0.0
    %1122 = vmatpush.msra.mxu0 0.0
    %1123 = vmatpush.msra.mxu0 0.0
    %1124 = vmatpush.msra.mxu0 0.0
    %1125 = vmatpush.msra.mxu0 0.0
    %1126 = vmatpush.msra.mxu0 0.0
    %1127 = vmatpush.msra.mxu0 0.0
    %1128 = vmatpush.msra.mxu0 0.0
    %v1129 = vand.u32 %v717, 4294901760
    %v1130 = vsub.f32 %v717, %v1129
    %v1131 = vand.u32 %v1130, 4294901760
    %1132 = vmatpush.msra.mxu0 %v1131
    %v1133 = vand.u32 %v708, 4294901760
    %1134 = vmatmul.f32.gmra.mxu0 %v1133
    %v1135 = vpop.f32.mrf.mxu0
    %v1136 = vadd.f32 %v1112, %v1135
    %1137 = vdwg.mxu0
    %1138 = vmatpush.msra.mxu0 0.0
    %1139 = vmatpush.msra.mxu0 0.0
    %1140 = vmatpush.msra.mxu0 0.0
    %1141 = vmatpush.msra.mxu0 0.0
    %1142 = vmatpush.msra.mxu0 0.0
    %1143 = vmatpush.msra.mxu0 0.0
    %1144 = vmatpush.msra.mxu0 0.0
    %1145 = vmatpush.msra.mxu0 0.0
    %1146 = vmatpush.msra.mxu0 0.0
    %1147 = vmatpush.msra.mxu0 0.0
    %1148 = vmatpush.msra.mxu0 0.0
    %1149 = vmatpush.msra.mxu0 0.0
    %1150 = vmatpush.msra.mxu0 0.0
    %1151 = vmatpush.msra.mxu0 0.0
    %1152 = vmatpush.msra.mxu0 0.0
    %v1153 = vand.u32 %v717, 4294901760
    %1154 = vmatpush.msra.mxu0 %v1153
    %v1155 = vand.u32 %v708, 4294901760
    %1156 = vmatmul.f32.gmra.mxu0 %v1155
    %v1157 = vpop.f32.mrf.mxu0
    %v1158 = vadd.f32 %v1136, %v1157
    %1159 = vdwg.mxu0
    %1160 = vmatpush.msra.mxu0 0.0
    %1161 = vmatpush.msra.mxu0 0.0
    %1162 = vmatpush.msra.mxu0 0.0
    %1163 = vmatpush.msra.mxu0 0.0
    %1164 = vmatpush.msra.mxu0 0.0
    %1165 = vmatpush.msra.mxu0 0.0
    %1166 = vmatpush.msra.mxu0 0.0
    %1167 = vmatpush.msra.mxu0 0.0
    %1168 = vmatpush.msra.mxu0 0.0
    %1169 = vmatpush.msra.mxu0 0.0
    %1170 = vmatpush.msra.mxu0 0.0
    %1171 = vmatpush.msra.mxu0 0.0
    %1172 = vmatpush.msra.mxu0 0.0
    %1173 = vmatpush.msra.mxu0 0.0
    %1174 = vmatpush.msra.mxu0 0.0
    %v1175 = vand.u32 %v720, 4294901760
    %1176 = vmatpush.msra.mxu0 %v1175
    %v1177 = vand.u32 %v708, 4294901760
    %v1178 = vsub.f32 %v708, %v1177
    %v1179 = vand.u32 %v1178, 4294901760
    %v1180 = vsub.f32 %v1178, %v1179
    %v1181 = vand.u32 %v1180, 4294901760
    %1182 = vmatmul.f32.gmra.mxu0 %v1181
    %v1183 = vpop.f32.mrf.mxu0
    %v1184 = vadd.f32 0.0, %v1183
    %1185 = vdwg.mxu0
    %1186 = vmatpush.msra.mxu0 0.0
    %1187 = vmatpush.msra.mxu0 0.0
    %1188 = vmatpush.msra.mxu0 0.0
    %1189 = vmatpush.msra.mxu0 0.0
    %1190 = vmatpush.msra.mxu0 0.0
    %1191 = vmatpush.msra.mxu0 0.0
    %1192 = vmatpush.msra.mxu0 0.0
    %1193 = vmatpush.msra.mxu0 0.0
    %1194 = vmatpush.msra.mxu0 0.0
    %1195 = vmatpush.msra.mxu0 0.0
    %1196 = vmatpush.msra.mxu0 0.0
    %1197 = vmatpush.msra.mxu0 0.0
    %1198 = vmatpush.msra.mxu0 0.0
    %1199 = vmatpush.msra.mxu0 0.0
    %1200 = vmatpush.msra.mxu0 0.0
    %v1201 = vand.u32 %v720, 4294901760
    %v1202 = vsub.f32 %v720, %v1201
    %v1203 = vand.u32 %v1202, 4294901760
    %v1204 = vsub.f32 %v1202, %v1203
    %v1205 = vand.u32 %v1204, 4294901760
    %1206 = vmatpush.msra.mxu0 %v1205
    %v1207 = vand.u32 %v708, 4294901760
    %1208 = vmatmul.f32.gmra.mxu0 %v1207
    %v1209 = vpop.f32.mrf.mxu0
    %v1210 = vadd.f32 %v1184, %v1209
    %1211 = vdwg.mxu0
    %1212 = vmatpush.msra.mxu0 0.0
    %1213 = vmatpush.msra.mxu0 0.0
    %1214 = vmatpush.msra.mxu0 0.0
    %1215 = vmatpush.msra.mxu0 0.0
    %1216 = vmatpush.msra.mxu0 0.0
    %1217 = vmatpush.msra.mxu0 0.0
    %1218 = vmatpush.msra.mxu0 0.0
    %1219 = vmatpush.msra.mxu0 0.0
    %1220 = vmatpush.msra.mxu0 0.0
    %1221 = vmatpush.msra.mxu0 0.0
    %1222 = vmatpush.msra.mxu0 0.0
    %1223 = vmatpush.msra.mxu0 0.0
    %1224 = vmatpush.msra.mxu0 0.0
    %1225 = vmatpush.msra.mxu0 0.0
    %1226 = vmatpush.msra.mxu0 0.0
    %v1227 = vand.u32 %v720, 4294901760
    %v1228 = vsub.f32 %v720, %v1227
    %1229 = vmatpush.msra.mxu0 %v1228
    %v1230 = vand.u32 %v708, 4294901760
    %v1231 = vsub.f32 %v708, %v1230
    %1232 = vmatmul.f32.gmra.mxu0 %v1231
    %v1233 = vpop.f32.mrf.mxu0
    %v1234 = vadd.f32 %v1210, %v1233
    %1235 = vdwg.mxu0
    %1236 = vmatpush.msra.mxu0 0.0
    %1237 = vmatpush.msra.mxu0 0.0
    %1238 = vmatpush.msra.mxu0 0.0
    %1239 = vmatpush.msra.mxu0 0.0
    %1240 = vmatpush.msra.mxu0 0.0
    %1241 = vmatpush.msra.mxu0 0.0
    %1242 = vmatpush.msra.mxu0 0.0
    %1243 = vmatpush.msra.mxu0 0.0
    %1244 = vmatpush.msra.mxu0 0.0
    %1245 = vmatpush.msra.mxu0 0.0
    %1246 = vmatpush.msra.mxu0 0.0
    %1247 = vmatpush.msra.mxu0 0.0
    %1248 = vmatpush.msra.mxu0 0.0
    %1249 = vmatpush.msra.mxu0 0.0
    %1250 = vmatpush.msra.mxu0 0.0
    %v1251 = vand.u32 %v720, 4294901760
    %1252 = vmatpush.msra.mxu0 %v1251
    %v1253 = vand.u32 %v708, 4294901760
    %v1254 = vsub.f32 %v708, %v1253
    %v1255 = vand.u32 %v1254, 4294901760
    %1256 = vmatmul.f32.gmra.mxu0 %v1255
    %v1257 = vpop.f32.mrf.mxu0
    %v1258 = vadd.f32 %v1234, %v1257
    %1259 = vdwg.mxu0
    %1260 = vmatpush.msra.mxu0 0.0
    %1261 = vmatpush.msra.mxu0 0.0
    %1262 = vmatpush.msra.mxu0 0.0
    %1263 = vmatpush.msra.mxu0 0.0
    %1264 = vmatpush.msra.mxu0 0.0
    %1265 = vmatpush.msra.mxu0 0.0
    %1266 = vmatpush.msra.mxu0 0.0
    %1267 = vmatpush.msra.mxu0 0.0
    %1268 = vmatpush.msra.mxu0 0.0
    %1269 = vmatpush.msra.mxu0 0.0
    %1270 = vmatpush.msra.mxu0 0.0
    %1271 = vmatpush.msra.mxu0 0.0
    %1272 = vmatpush.msra.mxu0 0.0
    %1273 = vmatpush.msra.mxu0 0.0
    %1274 = vmatpush.msra.mxu0 0.0
    %v1275 = vand.u32 %v720, 4294901760
    %v1276 = vsub.f32 %v720, %v1275
    %v1277 = vand.u32 %v1276, 4294901760
    %1278 = vmatpush.msra.mxu0 %v1277
    %v1279 = vand.u32 %v708, 4294901760
    %1280 = vmatmul.f32.gmra.mxu0 %v1279
    %v1281 = vpop.f32.mrf.mxu0
    %v1282 = vadd.f32 %v1258, %v1281
    %1283 = vdwg.mxu0
    %1284 = vmatpush.msra.mxu0 0.0
    %1285 = vmatpush.msra.mxu0 0.0
    %1286 = vmatpush.msra.mxu0 0.0
    %1287 = vmatpush.msra.mxu0 0.0
    %1288 = vmatpush.msra.mxu0 0.0
    %1289 = vmatpush.msra.mxu0 0.0
    %1290 = vmatpush.msra.mxu0 0.0
    %1291 = vmatpush.msra.mxu0 0.0
    %1292 = vmatpush.msra.mxu0 0.0
    %1293 = vmatpush.msra.mxu0 0.0
    %1294 = vmatpush.msra.mxu0 0.0
    %1295 = vmatpush.msra.mxu0 0.0
    %1296 = vmatpush.msra.mxu0 0.0
    %1297 = vmatpush.msra.mxu0 0.0
    %1298 = vmatpush.msra.mxu0 0.0
    %v1299 = vand.u32 %v720, 4294901760
    %1300 = vmatpush.msra.mxu0 %v1299
    %v1301 = vand.u32 %v708, 4294901760
    %1302 = vmatmul.f32.gmra.mxu0 %v1301
    %v1303 = vpop.f32.mrf.mxu0
    %v1304 = vadd.f32 %v1282, %v1303
    %1305 = vdwg.mxu0
    %s1306 = sld [smem:[#allocation2]]
    %vm1307 = vcmp.gt.f32.partialorder %v866, 0.0
    %vm1308 = vcmp.gt.f32.partialorder %v1012, 0.0
    %vm1309 = vcmp.gt.f32.partialorder %v1158, 0.0
    %vm1310 = vcmp.gt.f32.partialorder %v1304, 0.0
    %v1311 = vstv %s1306
    %v1312 = vmul.f32 %v1311, %v866
    %v1313 = vmul.f32 %v1311, %v1012
    %v1314 = vmul.f32 %v1311, %v1158
    %v1315 = vmul.f32 %v1311, %v1304
    %v1316 = vsel %vm1307, %v866, %v1312
    %v1317 = vsel %vm1308, %v1012, %v1313
    %v1318 = vsel %vm1309, %v1158, %v1314
    %v1319 = vsel %vm1310, %v1304, %v1315
    %1320 = vxpose.xlu0.b32.start [1/16] %v32, 128
    %1321 = vxpose.xlu0.b32.cont [2/16] 0.0, 128
    %1322 = vxpose.xlu0.b32.cont [3/16] 0.0, 128
    %1323 = vxpose.xlu0.b32.cont [4/16] 0.0, 128
    %1324 = vxpose.xlu0.b32.cont [5/16] 0.0, 128
    %1325 = vxpose.xlu0.b32.cont [6/16] 0.0, 128
    %1326 = vxpose.xlu0.b32.cont [7/16] 0.0, 128
    %1327 = vxpose.xlu0.b32.cont [8/16] 0.0, 128
    %1328 = vxpose.xlu0.b32.cont [9/16] 0.0, 128
    %1329 = vxpose.xlu0.b32.cont [10/16] 0.0, 128
    %1330 = vxpose.xlu0.b32.cont [11/16] 0.0, 128
    %1331 = vxpose.xlu0.b32.cont [12/16] 0.0, 128
    %1332 = vxpose.xlu0.b32.cont [13/16] 0.0, 128
    %1333 = vxpose.xlu0.b32.cont [14/16] 0.0, 128
    %1334 = vxpose.xlu0.b32.cont [15/16] 0.0, 128
    %1335 = vxpose.xlu0.b32.end [16/16] 0.0, 128
    %v1336 = vpop.trf.xlu0
    %v1337 = vpop.trf.xlu0
    %v1338 = vpop.trf.xlu0
    %v1339 = vpop.trf.xlu0
    %v1340 = vpop.trf.xlu0
    %v1341 = vpop.trf.xlu0
    %v1342 = vpop.trf.xlu0
    %v1343 = vpop.trf.xlu0
    %v1344 = vpop.trf.xlu0
    %v1345 = vpop.trf.xlu0
    %v1346 = vpop.trf.xlu0
    %v1347 = vpop.trf.xlu0
    %v1348 = vpop.trf.xlu0
    %v1349 = vpop.trf.xlu0
    %v1350 = vpop.trf.xlu0
    %v1351 = vpop.trf.xlu0
    %v1353 = vsel %vm78, %v1336, 0
    %v1356 = vsel %vm82, %v1316, 0
    %v1359 = vsel %vm82, %v1317, 0
    %v1362 = vsel %vm82, %v1318, 0
    %v1365 = vsel %vm82, %v1319, 0
    %1367 = vmatpush.msra.mxu0 0.0
    %1368 = vmatpush.msra.mxu0 0.0
    %1369 = vmatpush.msra.mxu0 0.0
    %1370 = vmatpush.msra.mxu0 0.0
    %1371 = vmatpush.msra.mxu0 0.0
    %1372 = vmatpush.msra.mxu0 0.0
    %1373 = vmatpush.msra.mxu0 0.0
    %1374 = vmatpush.msra.mxu0 0.0
    %1375 = vmatpush.msra.mxu0 0.0
    %1376 = vmatpush.msra.mxu0 0.0
    %1377 = vmatpush.msra.mxu0 0.0
    %1378 = vmatpush.msra.mxu0 0.0
    %1379 = vmatpush.msra.mxu0 0.0
    %1380 = vmatpush.msra.mxu0 0.0
    %1381 = vmatpush.msra.mxu0 0.0
    %v1382 = vand.u32 %v1356, 4294901760
    %1383 = vmatpush.msra.mxu0 %v1382
    %v1384 = vand.u32 %v1353, 4294901760
    %v1385 = vsub.f32 %v1353, %v1384
    %v1386 = vand.u32 %v1385, 4294901760
    %v1387 = vsub.f32 %v1385, %v1386
    %v1388 = vand.u32 %v1387, 4294901760
    %1389 = vmatmul.f32.gmra.mxu0 %v1388
    %v1390 = vpop.f32.mrf.mxu0
    %v1391 = vadd.f32 0.0, %v1390
    %1392 = vdwg.mxu0
    %1393 = vmatpush.msra.mxu0 0.0
    %1394 = vmatpush.msra.mxu0 0.0
    %1395 = vmatpush.msra.mxu0 0.0
    %1396 = vmatpush.msra.mxu0 0.0
    %1397 = vmatpush.msra.mxu0 0.0
    %1398 = vmatpush.msra.mxu0 0.0
    %1399 = vmatpush.msra.mxu0 0.0
    %1400 = vmatpush.msra.mxu0 0.0
    %1401 = vmatpush.msra.mxu0 0.0
    %1402 = vmatpush.msra.mxu0 0.0
    %1403 = vmatpush.msra.mxu0 0.0
    %1404 = vmatpush.msra.mxu0 0.0
    %1405 = vmatpush.msra.mxu0 0.0
    %1406 = vmatpush.msra.mxu0 0.0
    %1407 = vmatpush.msra.mxu0 0.0
    %v1408 = vand.u32 %v1356, 4294901760
    %v1409 = vsub.f32 %v1356, %v1408
    %v1410 = vand.u32 %v1409, 4294901760
    %v1411 = vsub.f32 %v1409, %v1410
    %v1412 = vand.u32 %v1411, 4294901760
    %1413 = vmatpush.msra.mxu0 %v1412
    %v1414 = vand.u32 %v1353, 4294901760
    %1415 = vmatmul.f32.gmra.mxu0 %v1414
    %v1416 = vpop.f32.mrf.mxu0
    %v1417 = vadd.f32 %v1391, %v1416
    %1418 = vdwg.mxu0
    %1419 = vmatpush.msra.mxu0 0.0
    %1420 = vmatpush.msra.mxu0 0.0
    %1421 = vmatpush.msra.mxu0 0.0
    %1422 = vmatpush.msra.mxu0 0.0
    %1423 = vmatpush.msra.mxu0 0.0
    %1424 = vmatpush.msra.mxu0 0.0
    %1425 = vmatpush.msra.mxu0 0.0
    %1426 = vmatpush.msra.mxu0 0.0
    %1427 = vmatpush.msra.mxu0 0.0
    %1428 = vmatpush.msra.mxu0 0.0
    %1429 = vmatpush.msra.mxu0 0.0
    %1430 = vmatpush.msra.mxu0 0.0
    %1431 = vmatpush.msra.mxu0 0.0
    %1432 = vmatpush.msra.mxu0 0.0
    %1433 = vmatpush.msra.mxu0 0.0
    %v1434 = vand.u32 %v1356, 4294901760
    %v1435 = vsub.f32 %v1356, %v1434
    %1436 = vmatpush.msra.mxu0 %v1435
    %v1437 = vand.u32 %v1353, 4294901760
    %v1438 = vsub.f32 %v1353, %v1437
    %1439 = vmatmul.f32.gmra.mxu0 %v1438
    %v1440 = vpop.f32.mrf.mxu0
    %v1441 = vadd.f32 %v1417, %v1440
    %1442 = vdwg.mxu0
    %1443 = vmatpush.msra.mxu0 0.0
    %1444 = vmatpush.msra.mxu0 0.0
    %1445 = vmatpush.msra.mxu0 0.0
    %1446 = vmatpush.msra.mxu0 0.0
    %1447 = vmatpush.msra.mxu0 0.0
    %1448 = vmatpush.msra.mxu0 0.0
    %1449 = vmatpush.msra.mxu0 0.0
    %1450 = vmatpush.msra.mxu0 0.0
    %1451 = vmatpush.msra.mxu0 0.0
    %1452 = vmatpush.msra.mxu0 0.0
    %1453 = vmatpush.msra.mxu0 0.0
    %1454 = vmatpush.msra.mxu0 0.0
    %1455 = vmatpush.msra.mxu0 0.0
    %1456 = vmatpush.msra.mxu0 0.0
    %1457 = vmatpush.msra.mxu0 0.0
    %v1458 = vand.u32 %v1356, 4294901760
    %1459 = vmatpush.msra.mxu0 %v1458
    %v1460 = vand.u32 %v1353, 4294901760
    %v1461 = vsub.f32 %v1353, %v1460
    %v1462 = vand.u32 %v1461, 4294901760
    %1463 = vmatmul.f32.gmra.mxu0 %v1462
    %v1464 = vpop.f32.mrf.mxu0
    %v1465 = vadd.f32 %v1441, %v1464
    %1466 = vdwg.mxu0
    %1467 = vmatpush.msra.mxu0 0.0
    %1468 = vmatpush.msra.mxu0 0.0
    %1469 = vmatpush.msra.mxu0 0.0
    %1470 = vmatpush.msra.mxu0 0.0
    %1471 = vmatpush.msra.mxu0 0.0
    %1472 = vmatpush.msra.mxu0 0.0
    %1473 = vmatpush.msra.mxu0 0.0
    %1474 = vmatpush.msra.mxu0 0.0
    %1475 = vmatpush.msra.mxu0 0.0
    %1476 = vmatpush.msra.mxu0 0.0
    %1477 = vmatpush.msra.mxu0 0.0
    %1478 = vmatpush.msra.mxu0 0.0
    %1479 = vmatpush.msra.mxu0 0.0
    %1480 = vmatpush.msra.mxu0 0.0
    %1481 = vmatpush.msra.mxu0 0.0
    %v1482 = vand.u32 %v1356, 4294901760
    %v1483 = vsub.f32 %v1356, %v1482
    %v1484 = vand.u32 %v1483, 4294901760
    %1485 = vmatpush.msra.mxu0 %v1484
    %v1486 = vand.u32 %v1353, 4294901760
    %1487 = vmatmul.f32.gmra.mxu0 %v1486
    %v1488 = vpop.f32.mrf.mxu0
    %v1489 = vadd.f32 %v1465, %v1488
    %1490 = vdwg.mxu0
    %1491 = vmatpush.msra.mxu0 0.0
    %1492 = vmatpush.msra.mxu0 0.0
    %1493 = vmatpush.msra.mxu0 0.0
    %1494 = vmatpush.msra.mxu0 0.0
    %1495 = vmatpush.msra.mxu0 0.0
    %1496 = vmatpush.msra.mxu0 0.0
    %1497 = vmatpush.msra.mxu0 0.0
    %1498 = vmatpush.msra.mxu0 0.0
    %1499 = vmatpush.msra.mxu0 0.0
    %1500 = vmatpush.msra.mxu0 0.0
    %1501 = vmatpush.msra.mxu0 0.0
    %1502 = vmatpush.msra.mxu0 0.0
    %1503 = vmatpush.msra.mxu0 0.0
    %1504 = vmatpush.msra.mxu0 0.0
    %1505 = vmatpush.msra.mxu0 0.0
    %v1506 = vand.u32 %v1356, 4294901760
    %1507 = vmatpush.msra.mxu0 %v1506
    %v1508 = vand.u32 %v1353, 4294901760
    %1509 = vmatmul.f32.gmra.mxu0 %v1508
    %v1510 = vpop.f32.mrf.mxu0
    %v1511 = vadd.f32 %v1489, %v1510
    %1512 = vdwg.mxu0
    %1513 = vmatpush.msra.mxu0 0.0
    %1514 = vmatpush.msra.mxu0 0.0
    %1515 = vmatpush.msra.mxu0 0.0
    %1516 = vmatpush.msra.mxu0 0.0
    %1517 = vmatpush.msra.mxu0 0.0
    %1518 = vmatpush.msra.mxu0 0.0
    %1519 = vmatpush.msra.mxu0 0.0
    %1520 = vmatpush.msra.mxu0 0.0
    %1521 = vmatpush.msra.mxu0 0.0
    %1522 = vmatpush.msra.mxu0 0.0
    %1523 = vmatpush.msra.mxu0 0.0
    %1524 = vmatpush.msra.mxu0 0.0
    %1525 = vmatpush.msra.mxu0 0.0
    %1526 = vmatpush.msra.mxu0 0.0
    %1527 = vmatpush.msra.mxu0 0.0
    %v1528 = vand.u32 %v1359, 4294901760
    %1529 = vmatpush.msra.mxu0 %v1528
    %v1530 = vand.u32 %v1353, 4294901760
    %v1531 = vsub.f32 %v1353, %v1530
    %v1532 = vand.u32 %v1531, 4294901760
    %v1533 = vsub.f32 %v1531, %v1532
    %v1534 = vand.u32 %v1533, 4294901760
    %1535 = vmatmul.f32.gmra.mxu0 %v1534
    %v1536 = vpop.f32.mrf.mxu0
    %v1537 = vadd.f32 0.0, %v1536
    %1538 = vdwg.mxu0
    %1539 = vmatpush.msra.mxu0 0.0
    %1540 = vmatpush.msra.mxu0 0.0
    %1541 = vmatpush.msra.mxu0 0.0
    %1542 = vmatpush.msra.mxu0 0.0
    %1543 = vmatpush.msra.mxu0 0.0
    %1544 = vmatpush.msra.mxu0 0.0
    %1545 = vmatpush.msra.mxu0 0.0
    %1546 = vmatpush.msra.mxu0 0.0
    %1547 = vmatpush.msra.mxu0 0.0
    %1548 = vmatpush.msra.mxu0 0.0
    %1549 = vmatpush.msra.mxu0 0.0
    %1550 = vmatpush.msra.mxu0 0.0
    %1551 = vmatpush.msra.mxu0 0.0
    %1552 = vmatpush.msra.mxu0 0.0
    %1553 = vmatpush.msra.mxu0 0.0
    %v1554 = vand.u32 %v1359, 4294901760
    %v1555 = vsub.f32 %v1359, %v1554
    %v1556 = vand.u32 %v1555, 4294901760
    %v1557 = vsub.f32 %v1555, %v1556
    %v1558 = vand.u32 %v1557, 4294901760
    %1559 = vmatpush.msra.mxu0 %v1558
    %v1560 = vand.u32 %v1353, 4294901760
    %1561 = vmatmul.f32.gmra.mxu0 %v1560
    %v1562 = vpop.f32.mrf.mxu0
    %v1563 = vadd.f32 %v1537, %v1562
    %1564 = vdwg.mxu0
    %1565 = vmatpush.msra.mxu0 0.0
    %1566 = vmatpush.msra.mxu0 0.0
    %1567 = vmatpush.msra.mxu0 0.0
    %1568 = vmatpush.msra.mxu0 0.0
    %1569 = vmatpush.msra.mxu0 0.0
    %1570 = vmatpush.msra.mxu0 0.0
    %1571 = vmatpush.msra.mxu0 0.0
    %1572 = vmatpush.msra.mxu0 0.0
    %1573 = vmatpush.msra.mxu0 0.0
    %1574 = vmatpush.msra.mxu0 0.0
    %1575 = vmatpush.msra.mxu0 0.0
    %1576 = vmatpush.msra.mxu0 0.0
    %1577 = vmatpush.msra.mxu0 0.0
    %1578 = vmatpush.msra.mxu0 0.0
    %1579 = vmatpush.msra.mxu0 0.0
    %v1580 = vand.u32 %v1359, 4294901760
    %v1581 = vsub.f32 %v1359, %v1580
    %1582 = vmatpush.msra.mxu0 %v1581
    %v1583 = vand.u32 %v1353, 4294901760
    %v1584 = vsub.f32 %v1353, %v1583
    %1585 = vmatmul.f32.gmra.mxu0 %v1584
    %v1586 = vpop.f32.mrf.mxu0
    %v1587 = vadd.f32 %v1563, %v1586
    %1588 = vdwg.mxu0
    %1589 = vmatpush.msra.mxu0 0.0
    %1590 = vmatpush.msra.mxu0 0.0
    %1591 = vmatpush.msra.mxu0 0.0
    %1592 = vmatpush.msra.mxu0 0.0
    %1593 = vmatpush.msra.mxu0 0.0
    %1594 = vmatpush.msra.mxu0 0.0
    %1595 = vmatpush.msra.mxu0 0.0
    %1596 = vmatpush.msra.mxu0 0.0
    %1597 = vmatpush.msra.mxu0 0.0
    %1598 = vmatpush.msra.mxu0 0.0
    %1599 = vmatpush.msra.mxu0 0.0
    %1600 = vmatpush.msra.mxu0 0.0
    %1601 = vmatpush.msra.mxu0 0.0
    %1602 = vmatpush.msra.mxu0 0.0
    %1603 = vmatpush.msra.mxu0 0.0
    %v1604 = vand.u32 %v1359, 4294901760
    %1605 = vmatpush.msra.mxu0 %v1604
    %v1606 = vand.u32 %v1353, 4294901760
    %v1607 = vsub.f32 %v1353, %v1606
    %v1608 = vand.u32 %v1607, 4294901760
    %1609 = vmatmul.f32.gmra.mxu0 %v1608
    %v1610 = vpop.f32.mrf.mxu0
    %v1611 = vadd.f32 %v1587, %v1610
    %1612 = vdwg.mxu0
    %1613 = vmatpush.msra.mxu0 0.0
    %1614 = vmatpush.msra.mxu0 0.0
    %1615 = vmatpush.msra.mxu0 0.0
    %1616 = vmatpush.msra.mxu0 0.0
    %1617 = vmatpush.msra.mxu0 0.0
    %1618 = vmatpush.msra.mxu0 0.0
    %1619 = vmatpush.msra.mxu0 0.0
    %1620 = vmatpush.msra.mxu0 0.0
    %1621 = vmatpush.msra.mxu0 0.0
    %1622 = vmatpush.msra.mxu0 0.0
    %1623 = vmatpush.msra.mxu0 0.0
    %1624 = vmatpush.msra.mxu0 0.0
    %1625 = vmatpush.msra.mxu0 0.0
    %1626 = vmatpush.msra.mxu0 0.0
    %1627 = vmatpush.msra.mxu0 0.0
    %v1628 = vand.u32 %v1359, 4294901760
    %v1629 = vsub.f32 %v1359, %v1628
    %v1630 = vand.u32 %v1629, 4294901760
    %1631 = vmatpush.msra.mxu0 %v1630
    %v1632 = vand.u32 %v1353, 4294901760
    %1633 = vmatmul.f32.gmra.mxu0 %v1632
    %v1634 = vpop.f32.mrf.mxu0
    %v1635 = vadd.f32 %v1611, %v1634
    %1636 = vdwg.mxu0
    %1637 = vmatpush.msra.mxu0 0.0
    %1638 = vmatpush.msra.mxu0 0.0
    %1639 = vmatpush.msra.mxu0 0.0
    %1640 = vmatpush.msra.mxu0 0.0
    %1641 = vmatpush.msra.mxu0 0.0
    %1642 = vmatpush.msra.mxu0 0.0
    %1643 = vmatpush.msra.mxu0 0.0
    %1644 = vmatpush.msra.mxu0 0.0
    %1645 = vmatpush.msra.mxu0 0.0
    %1646 = vmatpush.msra.mxu0 0.0
    %1647 = vmatpush.msra.mxu0 0.0
    %1648 = vmatpush.msra.mxu0 0.0
    %1649 = vmatpush.msra.mxu0 0.0
    %1650 = vmatpush.msra.mxu0 0.0
    %1651 = vmatpush.msra.mxu0 0.0
    %v1652 = vand.u32 %v1359, 4294901760
    %1653 = vmatpush.msra.mxu0 %v1652
    %v1654 = vand.u32 %v1353, 4294901760
    %1655 = vmatmul.f32.gmra.mxu0 %v1654
    %v1656 = vpop.f32.mrf.mxu0
    %v1657 = vadd.f32 %v1635, %v1656
    %1658 = vdwg.mxu0
    %1659 = vmatpush.msra.mxu0 0.0
    %1660 = vmatpush.msra.mxu0 0.0
    %1661 = vmatpush.msra.mxu0 0.0
    %1662 = vmatpush.msra.mxu0 0.0
    %1663 = vmatpush.msra.mxu0 0.0
    %1664 = vmatpush.msra.mxu0 0.0
    %1665 = vmatpush.msra.mxu0 0.0
    %1666 = vmatpush.msra.mxu0 0.0
    %1667 = vmatpush.msra.mxu0 0.0
    %1668 = vmatpush.msra.mxu0 0.0
    %1669 = vmatpush.msra.mxu0 0.0
    %1670 = vmatpush.msra.mxu0 0.0
    %1671 = vmatpush.msra.mxu0 0.0
    %1672 = vmatpush.msra.mxu0 0.0
    %1673 = vmatpush.msra.mxu0 0.0
    %v1674 = vand.u32 %v1362, 4294901760
    %1675 = vmatpush.msra.mxu0 %v1674
    %v1676 = vand.u32 %v1353, 4294901760
    %v1677 = vsub.f32 %v1353, %v1676
    %v1678 = vand.u32 %v1677, 4294901760
    %v1679 = vsub.f32 %v1677, %v1678
    %v1680 = vand.u32 %v1679, 4294901760
    %1681 = vmatmul.f32.gmra.mxu0 %v1680
    %v1682 = vpop.f32.mrf.mxu0
    %v1683 = vadd.f32 0.0, %v1682
    %1684 = vdwg.mxu0
    %1685 = vmatpush.msra.mxu0 0.0
    %1686 = vmatpush.msra.mxu0 0.0
    %1687 = vmatpush.msra.mxu0 0.0
    %1688 = vmatpush.msra.mxu0 0.0
    %1689 = vmatpush.msra.mxu0 0.0
    %1690 = vmatpush.msra.mxu0 0.0
    %1691 = vmatpush.msra.mxu0 0.0
    %1692 = vmatpush.msra.mxu0 0.0
    %1693 = vmatpush.msra.mxu0 0.0
    %1694 = vmatpush.msra.mxu0 0.0
    %1695 = vmatpush.msra.mxu0 0.0
    %1696 = vmatpush.msra.mxu0 0.0
    %1697 = vmatpush.msra.mxu0 0.0
    %1698 = vmatpush.msra.mxu0 0.0
    %1699 = vmatpush.msra.mxu0 0.0
    %v1700 = vand.u32 %v1362, 4294901760
    %v1701 = vsub.f32 %v1362, %v1700
    %v1702 = vand.u32 %v1701, 4294901760
    %v1703 = vsub.f32 %v1701, %v1702
    %v1704 = vand.u32 %v1703, 4294901760
    %1705 = vmatpush.msra.mxu0 %v1704
    %v1706 = vand.u32 %v1353, 4294901760
    %1707 = vmatmul.f32.gmra.mxu0 %v1706
    %v1708 = vpop.f32.mrf.mxu0
    %v1709 = vadd.f32 %v1683, %v1708
    %1710 = vdwg.mxu0
    %1711 = vmatpush.msra.mxu0 0.0
    %1712 = vmatpush.msra.mxu0 0.0
    %1713 = vmatpush.msra.mxu0 0.0
    %1714 = vmatpush.msra.mxu0 0.0
    %1715 = vmatpush.msra.mxu0 0.0
    %1716 = vmatpush.msra.mxu0 0.0
    %1717 = vmatpush.msra.mxu0 0.0
    %1718 = vmatpush.msra.mxu0 0.0
    %1719 = vmatpush.msra.mxu0 0.0
    %1720 = vmatpush.msra.mxu0 0.0
    %1721 = vmatpush.msra.mxu0 0.0
    %1722 = vmatpush.msra.mxu0 0.0
    %1723 = vmatpush.msra.mxu0 0.0
    %1724 = vmatpush.msra.mxu0 0.0
    %1725 = vmatpush.msra.mxu0 0.0
    %v1726 = vand.u32 %v1362, 4294901760
    %v1727 = vsub.f32 %v1362, %v1726
    %1728 = vmatpush.msra.mxu0 %v1727
    %v1729 = vand.u32 %v1353, 4294901760
    %v1730 = vsub.f32 %v1353, %v1729
    %1731 = vmatmul.f32.gmra.mxu0 %v1730
    %v1732 = vpop.f32.mrf.mxu0
    %v1733 = vadd.f32 %v1709, %v1732
    %1734 = vdwg.mxu0
    %1735 = vmatpush.msra.mxu0 0.0
    %1736 = vmatpush.msra.mxu0 0.0
    %1737 = vmatpush.msra.mxu0 0.0
    %1738 = vmatpush.msra.mxu0 0.0
    %1739 = vmatpush.msra.mxu0 0.0
    %1740 = vmatpush.msra.mxu0 0.0
    %1741 = vmatpush.msra.mxu0 0.0
    %1742 = vmatpush.msra.mxu0 0.0
    %1743 = vmatpush.msra.mxu0 0.0
    %1744 = vmatpush.msra.mxu0 0.0
    %1745 = vmatpush.msra.mxu0 0.0
    %1746 = vmatpush.msra.mxu0 0.0
    %1747 = vmatpush.msra.mxu0 0.0
    %1748 = vmatpush.msra.mxu0 0.0
    %1749 = vmatpush.msra.mxu0 0.0
    %v1750 = vand.u32 %v1362, 4294901760
    %1751 = vmatpush.msra.mxu0 %v1750
    %v1752 = vand.u32 %v1353, 4294901760
    %v1753 = vsub.f32 %v1353, %v1752
    %v1754 = vand.u32 %v1753, 4294901760
    %1755 = vmatmul.f32.gmra.mxu0 %v1754
    %v1756 = vpop.f32.mrf.mxu0
    %v1757 = vadd.f32 %v1733, %v1756
    %1758 = vdwg.mxu0
    %1759 = vmatpush.msra.mxu0 0.0
    %1760 = vmatpush.msra.mxu0 0.0
    %1761 = vmatpush.msra.mxu0 0.0
    %1762 = vmatpush.msra.mxu0 0.0
    %1763 = vmatpush.msra.mxu0 0.0
    %1764 = vmatpush.msra.mxu0 0.0
    %1765 = vmatpush.msra.mxu0 0.0
    %1766 = vmatpush.msra.mxu0 0.0
    %1767 = vmatpush.msra.mxu0 0.0
    %1768 = vmatpush.msra.mxu0 0.0
    %1769 = vmatpush.msra.mxu0 0.0
    %1770 = vmatpush.msra.mxu0 0.0
    %1771 = vmatpush.msra.mxu0 0.0
    %1772 = vmatpush.msra.mxu0 0.0
    %1773 = vmatpush.msra.mxu0 0.0
    %v1774 = vand.u32 %v1362, 4294901760
    %v1775 = vsub.f32 %v1362, %v1774
    %v1776 = vand.u32 %v1775, 4294901760
    %1777 = vmatpush.msra.mxu0 %v1776
    %v1778 = vand.u32 %v1353, 4294901760
    %1779 = vmatmul.f32.gmra.mxu0 %v1778
    %v1780 = vpop.f32.mrf.mxu0
    %v1781 = vadd.f32 %v1757, %v1780
    %1782 = vdwg.mxu0
    %1783 = vmatpush.msra.mxu0 0.0
    %1784 = vmatpush.msra.mxu0 0.0
    %1785 = vmatpush.msra.mxu0 0.0
    %1786 = vmatpush.msra.mxu0 0.0
    %1787 = vmatpush.msra.mxu0 0.0
    %1788 = vmatpush.msra.mxu0 0.0
    %1789 = vmatpush.msra.mxu0 0.0
    %1790 = vmatpush.msra.mxu0 0.0
    %1791 = vmatpush.msra.mxu0 0.0
    %1792 = vmatpush.msra.mxu0 0.0
    %1793 = vmatpush.msra.mxu0 0.0
    %1794 = vmatpush.msra.mxu0 0.0
    %1795 = vmatpush.msra.mxu0 0.0
    %1796 = vmatpush.msra.mxu0 0.0
    %1797 = vmatpush.msra.mxu0 0.0
    %v1798 = vand.u32 %v1362, 4294901760
    %1799 = vmatpush.msra.mxu0 %v1798
    %v1800 = vand.u32 %v1353, 4294901760
    %1801 = vmatmul.f32.gmra.mxu0 %v1800
    %v1802 = vpop.f32.mrf.mxu0
    %v1803 = vadd.f32 %v1781, %v1802
    %1804 = vdwg.mxu0
    %1805 = vmatpush.msra.mxu0 0.0
    %1806 = vmatpush.msra.mxu0 0.0
    %1807 = vmatpush.msra.mxu0 0.0
    %1808 = vmatpush.msra.mxu0 0.0
    %1809 = vmatpush.msra.mxu0 0.0
    %1810 = vmatpush.msra.mxu0 0.0
    %1811 = vmatpush.msra.mxu0 0.0
    %1812 = vmatpush.msra.mxu0 0.0
    %1813 = vmatpush.msra.mxu0 0.0
    %1814 = vmatpush.msra.mxu0 0.0
    %1815 = vmatpush.msra.mxu0 0.0
    %1816 = vmatpush.msra.mxu0 0.0
    %1817 = vmatpush.msra.mxu0 0.0
    %1818 = vmatpush.msra.mxu0 0.0
    %1819 = vmatpush.msra.mxu0 0.0
    %v1820 = vand.u32 %v1365, 4294901760
    %1821 = vmatpush.msra.mxu0 %v1820
    %v1822 = vand.u32 %v1353, 4294901760
    %v1823 = vsub.f32 %v1353, %v1822
    %v1824 = vand.u32 %v1823, 4294901760
    %v1825 = vsub.f32 %v1823, %v1824
    %v1826 = vand.u32 %v1825, 4294901760
    %1827 = vmatmul.f32.gmra.mxu0 %v1826
    %v1828 = vpop.f32.mrf.mxu0
    %v1829 = vadd.f32 0.0, %v1828
    %1830 = vdwg.mxu0
    %1831 = vmatpush.msra.mxu0 0.0
    %1832 = vmatpush.msra.mxu0 0.0
    %1833 = vmatpush.msra.mxu0 0.0
    %1834 = vmatpush.msra.mxu0 0.0
    %1835 = vmatpush.msra.mxu0 0.0
    %1836 = vmatpush.msra.mxu0 0.0
    %1837 = vmatpush.msra.mxu0 0.0
    %1838 = vmatpush.msra.mxu0 0.0
    %1839 = vmatpush.msra.mxu0 0.0
    %1840 = vmatpush.msra.mxu0 0.0
    %1841 = vmatpush.msra.mxu0 0.0
    %1842 = vmatpush.msra.mxu0 0.0
    %1843 = vmatpush.msra.mxu0 0.0
    %1844 = vmatpush.msra.mxu0 0.0
    %1845 = vmatpush.msra.mxu0 0.0
    %v1846 = vand.u32 %v1365, 4294901760
    %v1847 = vsub.f32 %v1365, %v1846
    %v1848 = vand.u32 %v1847, 4294901760
    %v1849 = vsub.f32 %v1847, %v1848
    %v1850 = vand.u32 %v1849, 4294901760
    %1851 = vmatpush.msra.mxu0 %v1850
    %v1852 = vand.u32 %v1353, 4294901760
    %1853 = vmatmul.f32.gmra.mxu0 %v1852
    %v1854 = vpop.f32.mrf.mxu0
    %v1855 = vadd.f32 %v1829, %v1854
    %1856 = vdwg.mxu0
    %1857 = vmatpush.msra.mxu0 0.0
    %1858 = vmatpush.msra.mxu0 0.0
    %1859 = vmatpush.msra.mxu0 0.0
    %1860 = vmatpush.msra.mxu0 0.0
    %1861 = vmatpush.msra.mxu0 0.0
    %1862 = vmatpush.msra.mxu0 0.0
    %1863 = vmatpush.msra.mxu0 0.0
    %1864 = vmatpush.msra.mxu0 0.0
    %1865 = vmatpush.msra.mxu0 0.0
    %1866 = vmatpush.msra.mxu0 0.0
    %1867 = vmatpush.msra.mxu0 0.0
    %1868 = vmatpush.msra.mxu0 0.0
    %1869 = vmatpush.msra.mxu0 0.0
    %1870 = vmatpush.msra.mxu0 0.0
    %1871 = vmatpush.msra.mxu0 0.0
    %v1872 = vand.u32 %v1365, 4294901760
    %v1873 = vsub.f32 %v1365, %v1872
    %1874 = vmatpush.msra.mxu0 %v1873
    %v1875 = vand.u32 %v1353, 4294901760
    %v1876 = vsub.f32 %v1353, %v1875
    %1877 = vmatmul.f32.gmra.mxu0 %v1876
    %v1878 = vpop.f32.mrf.mxu0
    %v1879 = vadd.f32 %v1855, %v1878
    %1880 = vdwg.mxu0
    %1881 = vmatpush.msra.mxu0 0.0
    %1882 = vmatpush.msra.mxu0 0.0
    %1883 = vmatpush.msra.mxu0 0.0
    %1884 = vmatpush.msra.mxu0 0.0
    %1885 = vmatpush.msra.mxu0 0.0
    %1886 = vmatpush.msra.mxu0 0.0
    %1887 = vmatpush.msra.mxu0 0.0
    %1888 = vmatpush.msra.mxu0 0.0
    %1889 = vmatpush.msra.mxu0 0.0
    %1890 = vmatpush.msra.mxu0 0.0
    %1891 = vmatpush.msra.mxu0 0.0
    %1892 = vmatpush.msra.mxu0 0.0
    %1893 = vmatpush.msra.mxu0 0.0
    %1894 = vmatpush.msra.mxu0 0.0
    %1895 = vmatpush.msra.mxu0 0.0
    %v1896 = vand.u32 %v1365, 4294901760
    %1897 = vmatpush.msra.mxu0 %v1896
    %v1898 = vand.u32 %v1353, 4294901760
    %v1899 = vsub.f32 %v1353, %v1898
    %v1900 = vand.u32 %v1899, 4294901760
    %1901 = vmatmul.f32.gmra.mxu0 %v1900
    %v1902 = vpop.f32.mrf.mxu0
    %v1903 = vadd.f32 %v1879, %v1902
    %1904 = vdwg.mxu0
    %1905 = vmatpush.msra.mxu0 0.0
    %1906 = vmatpush.msra.mxu0 0.0
    %1907 = vmatpush.msra.mxu0 0.0
    %1908 = vmatpush.msra.mxu0 0.0
    %1909 = vmatpush.msra.mxu0 0.0
    %1910 = vmatpush.msra.mxu0 0.0
    %1911 = vmatpush.msra.mxu0 0.0
    %1912 = vmatpush.msra.mxu0 0.0
    %1913 = vmatpush.msra.mxu0 0.0
    %1914 = vmatpush.msra.mxu0 0.0
    %1915 = vmatpush.msra.mxu0 0.0
    %1916 = vmatpush.msra.mxu0 0.0
    %1917 = vmatpush.msra.mxu0 0.0
    %1918 = vmatpush.msra.mxu0 0.0
    %1919 = vmatpush.msra.mxu0 0.0
    %v1920 = vand.u32 %v1365, 4294901760
    %v1921 = vsub.f32 %v1365, %v1920
    %v1922 = vand.u32 %v1921, 4294901760
    %1923 = vmatpush.msra.mxu0 %v1922
    %v1924 = vand.u32 %v1353, 4294901760
    %1925 = vmatmul.f32.gmra.mxu0 %v1924
    %v1926 = vpop.f32.mrf.mxu0
    %v1927 = vadd.f32 %v1903, %v1926
    %1928 = vdwg.mxu0
    %1929 = vmatpush.msra.mxu0 0.0
    %1930 = vmatpush.msra.mxu0 0.0
    %1931 = vmatpush.msra.mxu0 0.0
    %1932 = vmatpush.msra.mxu0 0.0
    %1933 = vmatpush.msra.mxu0 0.0
    %1934 = vmatpush.msra.mxu0 0.0
    %1935 = vmatpush.msra.mxu0 0.0
    %1936 = vmatpush.msra.mxu0 0.0
    %1937 = vmatpush.msra.mxu0 0.0
    %1938 = vmatpush.msra.mxu0 0.0
    %1939 = vmatpush.msra.mxu0 0.0
    %1940 = vmatpush.msra.mxu0 0.0
    %1941 = vmatpush.msra.mxu0 0.0
    %1942 = vmatpush.msra.mxu0 0.0
    %1943 = vmatpush.msra.mxu0 0.0
    %v1944 = vand.u32 %v1365, 4294901760
    %1945 = vmatpush.msra.mxu0 %v1944
    %v1946 = vand.u32 %v1353, 4294901760
    %1947 = vmatmul.f32.gmra.mxu0 %v1946
    %v1948 = vpop.f32.mrf.mxu0
    %v1949 = vadd.f32 %v1927, %v1948
    %1950 = vdwg.mxu0
    %s1951 = sld [smem:[#allocation2 + $0x1]]
    %vm1952 = vcmp.gt.f32.partialorder %v1511, 0.0
    %vm1953 = vcmp.gt.f32.partialorder %v1657, 0.0
    %vm1954 = vcmp.gt.f32.partialorder %v1803, 0.0
    %vm1955 = vcmp.gt.f32.partialorder %v1949, 0.0
    %v1956 = vstv %s1951
    %v1957 = vmul.f32 %v1956, %v1511
    %v1958 = vmul.f32 %v1956, %v1657
    %v1959 = vmul.f32 %v1956, %v1803
    %v1960 = vmul.f32 %v1956, %v1949
    %v1961 = vsel %vm1952, %v1511, %v1957
    %v1962 = vsel %vm1953, %v1657, %v1958
    %v1963 = vsel %vm1954, %v1803, %v1959
    %v1964 = vsel %vm1955, %v1949, %v1960
    %v1965 = vadd.f32 %v1961, %v235
    %v1966 = vadd.f32 %v1962, %v381
    %v1967 = vadd.f32 %v1963, %v527
    %v1968 = vadd.f32 %v1964, %v673
    %1969 = vxpose.xlu0.b32.start [1/16] %v33, 128
    %1970 = vxpose.xlu0.b32.cont [2/16] 0.0, 128
    %1971 = vxpose.xlu0.b32.cont [3/16] 0.0, 128
    %1972 = vxpose.xlu0.b32.cont [4/16] 0.0, 128
    %1973 = vxpose.xlu0.b32.cont [5/16] 0.0, 128
    %1974 = vxpose.xlu0.b32.cont [6/16] 0.0, 128
    %1975 = vxpose.xlu0.b32.cont [7/16] 0.0, 128
    %1976 = vxpose.xlu0.b32.cont [8/16] 0.0, 128
    %1977 = vxpose.xlu0.b32.cont [9/16] 0.0, 128
    %1978 = vxpose.xlu0.b32.cont [10/16] 0.0, 128
    %1979 = vxpose.xlu0.b32.cont [11/16] 0.0, 128
    %1980 = vxpose.xlu0.b32.cont [12/16] 0.0, 128
    %1981 = vxpose.xlu0.b32.cont [13/16] 0.0, 128
    %1982 = vxpose.xlu0.b32.cont [14/16] 0.0, 128
    %1983 = vxpose.xlu0.b32.cont [15/16] 0.0, 128
    %1984 = vxpose.xlu0.b32.end [16/16] 0.0, 128
    %v1985 = vpop.trf.xlu0
    %v1986 = vpop.trf.xlu0
    %v1987 = vpop.trf.xlu0
    %v1988 = vpop.trf.xlu0
    %v1989 = vpop.trf.xlu0
    %v1990 = vpop.trf.xlu0
    %v1991 = vpop.trf.xlu0
    %v1992 = vpop.trf.xlu0
    %v1993 = vpop.trf.xlu0
    %v1994 = vpop.trf.xlu0
    %v1995 = vpop.trf.xlu0
    %v1996 = vpop.trf.xlu0
    %v1997 = vpop.trf.xlu0
    %v1998 = vpop.trf.xlu0
    %v1999 = vpop.trf.xlu0
    %v2000 = vpop.trf.xlu0
    %v2002 = vsel %vm78, %v1985, 0
    %v2005 = vsel %vm82, %v1965, 0
    %v2008 = vsel %vm82, %v1966, 0
    %v2011 = vsel %vm82, %v1967, 0
    %v2014 = vsel %vm82, %v1968, 0
    %2016 = vmatpush.msra.mxu0 0.0
    %2017 = vmatpush.msra.mxu0 0.0
    %2018 = vmatpush.msra.mxu0 0.0
    %2019 = vmatpush.msra.mxu0 0.0
    %2020 = vmatpush.msra.mxu0 0.0
    %2021 = vmatpush.msra.mxu0 0.0
    %2022 = vmatpush.msra.mxu0 0.0
    %2023 = vmatpush.msra.mxu0 0.0
    %2024 = vmatpush.msra.mxu0 0.0
    %2025 = vmatpush.msra.mxu0 0.0
    %2026 = vmatpush.msra.mxu0 0.0
    %2027 = vmatpush.msra.mxu0 0.0
    %2028 = vmatpush.msra.mxu0 0.0
    %2029 = vmatpush.msra.mxu0 0.0
    %2030 = vmatpush.msra.mxu0 0.0
    %v2031 = vand.u32 %v2005, 4294901760
    %2032 = vmatpush.msra.mxu0 %v2031
    %v2033 = vand.u32 %v2002, 4294901760
    %v2034 = vsub.f32 %v2002, %v2033
    %v2035 = vand.u32 %v2034, 4294901760
    %v2036 = vsub.f32 %v2034, %v2035
    %v2037 = vand.u32 %v2036, 4294901760
    %2038 = vmatmul.f32.gmra.mxu0 %v2037
    %v2039 = vpop.f32.mrf.mxu0
    %v2040 = vadd.f32 0.0, %v2039
    %2041 = vdwg.mxu0
    %2042 = vmatpush.msra.mxu0 0.0
    %2043 = vmatpush.msra.mxu0 0.0
    %2044 = vmatpush.msra.mxu0 0.0
    %2045 = vmatpush.msra.mxu0 0.0
    %2046 = vmatpush.msra.mxu0 0.0
    %2047 = vmatpush.msra.mxu0 0.0
    %2048 = vmatpush.msra.mxu0 0.0
    %2049 = vmatpush.msra.mxu0 0.0
    %2050 = vmatpush.msra.mxu0 0.0
    %2051 = vmatpush.msra.mxu0 0.0
    %2052 = vmatpush.msra.mxu0 0.0
    %2053 = vmatpush.msra.mxu0 0.0
    %2054 = vmatpush.msra.mxu0 0.0
    %2055 = vmatpush.msra.mxu0 0.0
    %2056 = vmatpush.msra.mxu0 0.0
    %v2057 = vand.u32 %v2005, 4294901760
    %v2058 = vsub.f32 %v2005, %v2057
    %v2059 = vand.u32 %v2058, 4294901760
    %v2060 = vsub.f32 %v2058, %v2059
    %v2061 = vand.u32 %v2060, 4294901760
    %2062 = vmatpush.msra.mxu0 %v2061
    %v2063 = vand.u32 %v2002, 4294901760
    %2064 = vmatmul.f32.gmra.mxu0 %v2063
    %v2065 = vpop.f32.mrf.mxu0
    %v2066 = vadd.f32 %v2040, %v2065
    %2067 = vdwg.mxu0
    %2068 = vmatpush.msra.mxu0 0.0
    %2069 = vmatpush.msra.mxu0 0.0
    %2070 = vmatpush.msra.mxu0 0.0
    %2071 = vmatpush.msra.mxu0 0.0
    %2072 = vmatpush.msra.mxu0 0.0
    %2073 = vmatpush.msra.mxu0 0.0
    %2074 = vmatpush.msra.mxu0 0.0
    %2075 = vmatpush.msra.mxu0 0.0
    %2076 = vmatpush.msra.mxu0 0.0
    %2077 = vmatpush.msra.mxu0 0.0
    %2078 = vmatpush.msra.mxu0 0.0
    %2079 = vmatpush.msra.mxu0 0.0
    %2080 = vmatpush.msra.mxu0 0.0
    %2081 = vmatpush.msra.mxu0 0.0
    %2082 = vmatpush.msra.mxu0 0.0
    %v2083 = vand.u32 %v2005, 4294901760
    %v2084 = vsub.f32 %v2005, %v2083
    %2085 = vmatpush.msra.mxu0 %v2084
    %v2086 = vand.u32 %v2002, 4294901760
    %v2087 = vsub.f32 %v2002, %v2086
    %2088 = vmatmul.f32.gmra.mxu0 %v2087
    %v2089 = vpop.f32.mrf.mxu0
    %v2090 = vadd.f32 %v2066, %v2089
    %2091 = vdwg.mxu0
    %2092 = vmatpush.msra.mxu0 0.0
    %2093 = vmatpush.msra.mxu0 0.0
    %2094 = vmatpush.msra.mxu0 0.0
    %2095 = vmatpush.msra.mxu0 0.0
    %2096 = vmatpush.msra.mxu0 0.0
    %2097 = vmatpush.msra.mxu0 0.0
    %2098 = vmatpush.msra.mxu0 0.0
    %2099 = vmatpush.msra.mxu0 0.0
    %2100 = vmatpush.msra.mxu0 0.0
    %2101 = vmatpush.msra.mxu0 0.0
    %2102 = vmatpush.msra.mxu0 0.0
    %2103 = vmatpush.msra.mxu0 0.0
    %2104 = vmatpush.msra.mxu0 0.0
    %2105 = vmatpush.msra.mxu0 0.0
    %2106 = vmatpush.msra.mxu0 0.0
    %v2107 = vand.u32 %v2005, 4294901760
    %2108 = vmatpush.msra.mxu0 %v2107
    %v2109 = vand.u32 %v2002, 4294901760
    %v2110 = vsub.f32 %v2002, %v2109
    %v2111 = vand.u32 %v2110, 4294901760
    %2112 = vmatmul.f32.gmra.mxu0 %v2111
    %v2113 = vpop.f32.mrf.mxu0
    %v2114 = vadd.f32 %v2090, %v2113
    %2115 = vdwg.mxu0
    %2116 = vmatpush.msra.mxu0 0.0
    %2117 = vmatpush.msra.mxu0 0.0
    %2118 = vmatpush.msra.mxu0 0.0
    %2119 = vmatpush.msra.mxu0 0.0
    %2120 = vmatpush.msra.mxu0 0.0
    %2121 = vmatpush.msra.mxu0 0.0
    %2122 = vmatpush.msra.mxu0 0.0
    %2123 = vmatpush.msra.mxu0 0.0
    %2124 = vmatpush.msra.mxu0 0.0
    %2125 = vmatpush.msra.mxu0 0.0
    %2126 = vmatpush.msra.mxu0 0.0
    %2127 = vmatpush.msra.mxu0 0.0
    %2128 = vmatpush.msra.mxu0 0.0
    %2129 = vmatpush.msra.mxu0 0.0
    %2130 = vmatpush.msra.mxu0 0.0
    %v2131 = vand.u32 %v2005, 4294901760
    %v2132 = vsub.f32 %v2005, %v2131
    %v2133 = vand.u32 %v2132, 4294901760
    %2134 = vmatpush.msra.mxu0 %v2133
    %v2135 = vand.u32 %v2002, 4294901760
    %2136 = vmatmul.f32.gmra.mxu0 %v2135
    %v2137 = vpop.f32.mrf.mxu0
    %v2138 = vadd.f32 %v2114, %v2137
    %2139 = vdwg.mxu0
    %2140 = vmatpush.msra.mxu0 0.0
    %2141 = vmatpush.msra.mxu0 0.0
    %2142 = vmatpush.msra.mxu0 0.0
    %2143 = vmatpush.msra.mxu0 0.0
    %2144 = vmatpush.msra.mxu0 0.0
    %2145 = vmatpush.msra.mxu0 0.0
    %2146 = vmatpush.msra.mxu0 0.0
    %2147 = vmatpush.msra.mxu0 0.0
    %2148 = vmatpush.msra.mxu0 0.0
    %2149 = vmatpush.msra.mxu0 0.0
    %2150 = vmatpush.msra.mxu0 0.0
    %2151 = vmatpush.msra.mxu0 0.0
    %2152 = vmatpush.msra.mxu0 0.0
    %2153 = vmatpush.msra.mxu0 0.0
    %2154 = vmatpush.msra.mxu0 0.0
    %v2155 = vand.u32 %v2005, 4294901760
    %2156 = vmatpush.msra.mxu0 %v2155
    %v2157 = vand.u32 %v2002, 4294901760
    %2158 = vmatmul.f32.gmra.mxu0 %v2157
    %v2159 = vpop.f32.mrf.mxu0
    %v2160 = vadd.f32 %v2138, %v2159
    %2161 = vdwg.mxu0
    %2162 = vmatpush.msra.mxu0 0.0
    %2163 = vmatpush.msra.mxu0 0.0
    %2164 = vmatpush.msra.mxu0 0.0
    %2165 = vmatpush.msra.mxu0 0.0
    %2166 = vmatpush.msra.mxu0 0.0
    %2167 = vmatpush.msra.mxu0 0.0
    %2168 = vmatpush.msra.mxu0 0.0
    %2169 = vmatpush.msra.mxu0 0.0
    %2170 = vmatpush.msra.mxu0 0.0
    %2171 = vmatpush.msra.mxu0 0.0
    %2172 = vmatpush.msra.mxu0 0.0
    %2173 = vmatpush.msra.mxu0 0.0
    %2174 = vmatpush.msra.mxu0 0.0
    %2175 = vmatpush.msra.mxu0 0.0
    %2176 = vmatpush.msra.mxu0 0.0
    %v2177 = vand.u32 %v2008, 4294901760
    %2178 = vmatpush.msra.mxu0 %v2177
    %v2179 = vand.u32 %v2002, 4294901760
    %v2180 = vsub.f32 %v2002, %v2179
    %v2181 = vand.u32 %v2180, 4294901760
    %v2182 = vsub.f32 %v2180, %v2181
    %v2183 = vand.u32 %v2182, 4294901760
    %2184 = vmatmul.f32.gmra.mxu0 %v2183
    %v2185 = vpop.f32.mrf.mxu0
    %v2186 = vadd.f32 0.0, %v2185
    %2187 = vdwg.mxu0
    %2188 = vmatpush.msra.mxu0 0.0
    %2189 = vmatpush.msra.mxu0 0.0
    %2190 = vmatpush.msra.mxu0 0.0
    %2191 = vmatpush.msra.mxu0 0.0
    %2192 = vmatpush.msra.mxu0 0.0
    %2193 = vmatpush.msra.mxu0 0.0
    %2194 = vmatpush.msra.mxu0 0.0
    %2195 = vmatpush.msra.mxu0 0.0
    %2196 = vmatpush.msra.mxu0 0.0
    %2197 = vmatpush.msra.mxu0 0.0
    %2198 = vmatpush.msra.mxu0 0.0
    %2199 = vmatpush.msra.mxu0 0.0
    %2200 = vmatpush.msra.mxu0 0.0
    %2201 = vmatpush.msra.mxu0 0.0
    %2202 = vmatpush.msra.mxu0 0.0
    %v2203 = vand.u32 %v2008, 4294901760
    %v2204 = vsub.f32 %v2008, %v2203
    %v2205 = vand.u32 %v2204, 4294901760
    %v2206 = vsub.f32 %v2204, %v2205
    %v2207 = vand.u32 %v2206, 4294901760
    %2208 = vmatpush.msra.mxu0 %v2207
    %v2209 = vand.u32 %v2002, 4294901760
    %2210 = vmatmul.f32.gmra.mxu0 %v2209
    %v2211 = vpop.f32.mrf.mxu0
    %v2212 = vadd.f32 %v2186, %v2211
    %2213 = vdwg.mxu0
    %2214 = vmatpush.msra.mxu0 0.0
    %2215 = vmatpush.msra.mxu0 0.0
    %2216 = vmatpush.msra.mxu0 0.0
    %2217 = vmatpush.msra.mxu0 0.0
    %2218 = vmatpush.msra.mxu0 0.0
    %2219 = vmatpush.msra.mxu0 0.0
    %2220 = vmatpush.msra.mxu0 0.0
    %2221 = vmatpush.msra.mxu0 0.0
    %2222 = vmatpush.msra.mxu0 0.0
    %2223 = vmatpush.msra.mxu0 0.0
    %2224 = vmatpush.msra.mxu0 0.0
    %2225 = vmatpush.msra.mxu0 0.0
    %2226 = vmatpush.msra.mxu0 0.0
    %2227 = vmatpush.msra.mxu0 0.0
    %2228 = vmatpush.msra.mxu0 0.0
    %v2229 = vand.u32 %v2008, 4294901760
    %v2230 = vsub.f32 %v2008, %v2229
    %2231 = vmatpush.msra.mxu0 %v2230
    %v2232 = vand.u32 %v2002, 4294901760
    %v2233 = vsub.f32 %v2002, %v2232
    %2234 = vmatmul.f32.gmra.mxu0 %v2233
    %v2235 = vpop.f32.mrf.mxu0
    %v2236 = vadd.f32 %v2212, %v2235
    %2237 = vdwg.mxu0
    %2238 = vmatpush.msra.mxu0 0.0
    %2239 = vmatpush.msra.mxu0 0.0
    %2240 = vmatpush.msra.mxu0 0.0
    %2241 = vmatpush.msra.mxu0 0.0
    %2242 = vmatpush.msra.mxu0 0.0
    %2243 = vmatpush.msra.mxu0 0.0
    %2244 = vmatpush.msra.mxu0 0.0
    %2245 = vmatpush.msra.mxu0 0.0
    %2246 = vmatpush.msra.mxu0 0.0
    %2247 = vmatpush.msra.mxu0 0.0
    %2248 = vmatpush.msra.mxu0 0.0
    %2249 = vmatpush.msra.mxu0 0.0
    %2250 = vmatpush.msra.mxu0 0.0
    %2251 = vmatpush.msra.mxu0 0.0
    %2252 = vmatpush.msra.mxu0 0.0
    %v2253 = vand.u32 %v2008, 4294901760
    %2254 = vmatpush.msra.mxu0 %v2253
    %v2255 = vand.u32 %v2002, 4294901760
    %v2256 = vsub.f32 %v2002, %v2255
    %v2257 = vand.u32 %v2256, 4294901760
    %2258 = vmatmul.f32.gmra.mxu0 %v2257
    %v2259 = vpop.f32.mrf.mxu0
    %v2260 = vadd.f32 %v2236, %v2259
    %2261 = vdwg.mxu0
    %2262 = vmatpush.msra.mxu0 0.0
    %2263 = vmatpush.msra.mxu0 0.0
    %2264 = vmatpush.msra.mxu0 0.0
    %2265 = vmatpush.msra.mxu0 0.0
    %2266 = vmatpush.msra.mxu0 0.0
    %2267 = vmatpush.msra.mxu0 0.0
    %2268 = vmatpush.msra.mxu0 0.0
    %2269 = vmatpush.msra.mxu0 0.0
    %2270 = vmatpush.msra.mxu0 0.0
    %2271 = vmatpush.msra.mxu0 0.0
    %2272 = vmatpush.msra.mxu0 0.0
    %2273 = vmatpush.msra.mxu0 0.0
    %2274 = vmatpush.msra.mxu0 0.0
    %2275 = vmatpush.msra.mxu0 0.0
    %2276 = vmatpush.msra.mxu0 0.0
    %v2277 = vand.u32 %v2008, 4294901760
    %v2278 = vsub.f32 %v2008, %v2277
    %v2279 = vand.u32 %v2278, 4294901760
    %2280 = vmatpush.msra.mxu0 %v2279
    %v2281 = vand.u32 %v2002, 4294901760
    %2282 = vmatmul.f32.gmra.mxu0 %v2281
    %v2283 = vpop.f32.mrf.mxu0
    %v2284 = vadd.f32 %v2260, %v2283
    %2285 = vdwg.mxu0
    %2286 = vmatpush.msra.mxu0 0.0
    %2287 = vmatpush.msra.mxu0 0.0
    %2288 = vmatpush.msra.mxu0 0.0
    %2289 = vmatpush.msra.mxu0 0.0
    %2290 = vmatpush.msra.mxu0 0.0
    %2291 = vmatpush.msra.mxu0 0.0
    %2292 = vmatpush.msra.mxu0 0.0
    %2293 = vmatpush.msra.mxu0 0.0
    %2294 = vmatpush.msra.mxu0 0.0
    %2295 = vmatpush.msra.mxu0 0.0
    %2296 = vmatpush.msra.mxu0 0.0
    %2297 = vmatpush.msra.mxu0 0.0
    %2298 = vmatpush.msra.mxu0 0.0
    %2299 = vmatpush.msra.mxu0 0.0
    %2300 = vmatpush.msra.mxu0 0.0
    %v2301 = vand.u32 %v2008, 4294901760
    %2302 = vmatpush.msra.mxu0 %v2301
    %v2303 = vand.u32 %v2002, 4294901760
    %2304 = vmatmul.f32.gmra.mxu0 %v2303
    %v2305 = vpop.f32.mrf.mxu0
    %v2306 = vadd.f32 %v2284, %v2305
    %2307 = vdwg.mxu0
    %2308 = vmatpush.msra.mxu0 0.0
    %2309 = vmatpush.msra.mxu0 0.0
    %2310 = vmatpush.msra.mxu0 0.0
    %2311 = vmatpush.msra.mxu0 0.0
    %2312 = vmatpush.msra.mxu0 0.0
    %2313 = vmatpush.msra.mxu0 0.0
    %2314 = vmatpush.msra.mxu0 0.0
    %2315 = vmatpush.msra.mxu0 0.0
    %2316 = vmatpush.msra.mxu0 0.0
    %2317 = vmatpush.msra.mxu0 0.0
    %2318 = vmatpush.msra.mxu0 0.0
    %2319 = vmatpush.msra.mxu0 0.0
    %2320 = vmatpush.msra.mxu0 0.0
    %2321 = vmatpush.msra.mxu0 0.0
    %2322 = vmatpush.msra.mxu0 0.0
    %v2323 = vand.u32 %v2011, 4294901760
    %2324 = vmatpush.msra.mxu0 %v2323
    %v2325 = vand.u32 %v2002, 4294901760
    %v2326 = vsub.f32 %v2002, %v2325
    %v2327 = vand.u32 %v2326, 4294901760
    %v2328 = vsub.f32 %v2326, %v2327
    %v2329 = vand.u32 %v2328, 4294901760
    %2330 = vmatmul.f32.gmra.mxu0 %v2329
    %v2331 = vpop.f32.mrf.mxu0
    %v2332 = vadd.f32 0.0, %v2331
    %2333 = vdwg.mxu0
    %2334 = vmatpush.msra.mxu0 0.0
    %2335 = vmatpush.msra.mxu0 0.0
    %2336 = vmatpush.msra.mxu0 0.0
    %2337 = vmatpush.msra.mxu0 0.0
    %2338 = vmatpush.msra.mxu0 0.0
    %2339 = vmatpush.msra.mxu0 0.0
    %2340 = vmatpush.msra.mxu0 0.0
    %2341 = vmatpush.msra.mxu0 0.0
    %2342 = vmatpush.msra.mxu0 0.0
    %2343 = vmatpush.msra.mxu0 0.0
    %2344 = vmatpush.msra.mxu0 0.0
    %2345 = vmatpush.msra.mxu0 0.0
    %2346 = vmatpush.msra.mxu0 0.0
    %2347 = vmatpush.msra.mxu0 0.0
    %2348 = vmatpush.msra.mxu0 0.0
    %v2349 = vand.u32 %v2011, 4294901760
    %v2350 = vsub.f32 %v2011, %v2349
    %v2351 = vand.u32 %v2350, 4294901760
    %v2352 = vsub.f32 %v2350, %v2351
    %v2353 = vand.u32 %v2352, 4294901760
    %2354 = vmatpush.msra.mxu0 %v2353
    %v2355 = vand.u32 %v2002, 4294901760
    %2356 = vmatmul.f32.gmra.mxu0 %v2355
    %v2357 = vpop.f32.mrf.mxu0
    %v2358 = vadd.f32 %v2332, %v2357
    %2359 = vdwg.mxu0
    %2360 = vmatpush.msra.mxu0 0.0
    %2361 = vmatpush.msra.mxu0 0.0
    %2362 = vmatpush.msra.mxu0 0.0
    %2363 = vmatpush.msra.mxu0 0.0
    %2364 = vmatpush.msra.mxu0 0.0
    %2365 = vmatpush.msra.mxu0 0.0
    %2366 = vmatpush.msra.mxu0 0.0
    %2367 = vmatpush.msra.mxu0 0.0
    %2368 = vmatpush.msra.mxu0 0.0
    %2369 = vmatpush.msra.mxu0 0.0
    %2370 = vmatpush.msra.mxu0 0.0
    %2371 = vmatpush.msra.mxu0 0.0
    %2372 = vmatpush.msra.mxu0 0.0
    %2373 = vmatpush.msra.mxu0 0.0
    %2374 = vmatpush.msra.mxu0 0.0
    %v2375 = vand.u32 %v2011, 4294901760
    %v2376 = vsub.f32 %v2011, %v2375
    %2377 = vmatpush.msra.mxu0 %v2376
    %v2378 = vand.u32 %v2002, 4294901760
    %v2379 = vsub.f32 %v2002, %v2378
    %2380 = vmatmul.f32.gmra.mxu0 %v2379
    %v2381 = vpop.f32.mrf.mxu0
    %v2382 = vadd.f32 %v2358, %v2381
    %2383 = vdwg.mxu0
    %2384 = vmatpush.msra.mxu0 0.0
    %2385 = vmatpush.msra.mxu0 0.0
    %2386 = vmatpush.msra.mxu0 0.0
    %2387 = vmatpush.msra.mxu0 0.0
    %2388 = vmatpush.msra.mxu0 0.0
    %2389 = vmatpush.msra.mxu0 0.0
    %2390 = vmatpush.msra.mxu0 0.0
    %2391 = vmatpush.msra.mxu0 0.0
    %2392 = vmatpush.msra.mxu0 0.0
    %2393 = vmatpush.msra.mxu0 0.0
    %2394 = vmatpush.msra.mxu0 0.0
    %2395 = vmatpush.msra.mxu0 0.0
    %2396 = vmatpush.msra.mxu0 0.0
    %2397 = vmatpush.msra.mxu0 0.0
    %2398 = vmatpush.msra.mxu0 0.0
    %v2399 = vand.u32 %v2011, 4294901760
    %2400 = vmatpush.msra.mxu0 %v2399
    %v2401 = vand.u32 %v2002, 4294901760
    %v2402 = vsub.f32 %v2002, %v2401
    %v2403 = vand.u32 %v2402, 4294901760
    %2404 = vmatmul.f32.gmra.mxu0 %v2403
    %v2405 = vpop.f32.mrf.mxu0
    %v2406 = vadd.f32 %v2382, %v2405
    %2407 = vdwg.mxu0
    %2408 = vmatpush.msra.mxu0 0.0
    %2409 = vmatpush.msra.mxu0 0.0
    %2410 = vmatpush.msra.mxu0 0.0
    %2411 = vmatpush.msra.mxu0 0.0
    %2412 = vmatpush.msra.mxu0 0.0
    %2413 = vmatpush.msra.mxu0 0.0
    %2414 = vmatpush.msra.mxu0 0.0
    %2415 = vmatpush.msra.mxu0 0.0
    %2416 = vmatpush.msra.mxu0 0.0
    %2417 = vmatpush.msra.mxu0 0.0
    %2418 = vmatpush.msra.mxu0 0.0
    %2419 = vmatpush.msra.mxu0 0.0
    %2420 = vmatpush.msra.mxu0 0.0
    %2421 = vmatpush.msra.mxu0 0.0
    %2422 = vmatpush.msra.mxu0 0.0
    %v2423 = vand.u32 %v2011, 4294901760
    %v2424 = vsub.f32 %v2011, %v2423
    %v2425 = vand.u32 %v2424, 4294901760
    %2426 = vmatpush.msra.mxu0 %v2425
    %v2427 = vand.u32 %v2002, 4294901760
    %2428 = vmatmul.f32.gmra.mxu0 %v2427
    %v2429 = vpop.f32.mrf.mxu0
    %v2430 = vadd.f32 %v2406, %v2429
    %2431 = vdwg.mxu0
    %2432 = vmatpush.msra.mxu0 0.0
    %2433 = vmatpush.msra.mxu0 0.0
    %2434 = vmatpush.msra.mxu0 0.0
    %2435 = vmatpush.msra.mxu0 0.0
    %2436 = vmatpush.msra.mxu0 0.0
    %2437 = vmatpush.msra.mxu0 0.0
    %2438 = vmatpush.msra.mxu0 0.0
    %2439 = vmatpush.msra.mxu0 0.0
    %2440 = vmatpush.msra.mxu0 0.0
    %2441 = vmatpush.msra.mxu0 0.0
    %2442 = vmatpush.msra.mxu0 0.0
    %2443 = vmatpush.msra.mxu0 0.0
    %2444 = vmatpush.msra.mxu0 0.0
    %2445 = vmatpush.msra.mxu0 0.0
    %2446 = vmatpush.msra.mxu0 0.0
    %v2447 = vand.u32 %v2011, 4294901760
    %2448 = vmatpush.msra.mxu0 %v2447
    %v2449 = vand.u32 %v2002, 4294901760
    %2450 = vmatmul.f32.gmra.mxu0 %v2449
    %v2451 = vpop.f32.mrf.mxu0
    %v2452 = vadd.f32 %v2430, %v2451
    %2453 = vdwg.mxu0
    %2454 = vmatpush.msra.mxu0 0.0
    %2455 = vmatpush.msra.mxu0 0.0
    %2456 = vmatpush.msra.mxu0 0.0
    %2457 = vmatpush.msra.mxu0 0.0
    %2458 = vmatpush.msra.mxu0 0.0
    %2459 = vmatpush.msra.mxu0 0.0
    %2460 = vmatpush.msra.mxu0 0.0
    %2461 = vmatpush.msra.mxu0 0.0
    %2462 = vmatpush.msra.mxu0 0.0
    %2463 = vmatpush.msra.mxu0 0.0
    %2464 = vmatpush.msra.mxu0 0.0
    %2465 = vmatpush.msra.mxu0 0.0
    %2466 = vmatpush.msra.mxu0 0.0
    %2467 = vmatpush.msra.mxu0 0.0
    %2468 = vmatpush.msra.mxu0 0.0
    %v2469 = vand.u32 %v2014, 4294901760
    %2470 = vmatpush.msra.mxu0 %v2469
    %v2471 = vand.u32 %v2002, 4294901760
    %v2472 = vsub.f32 %v2002, %v2471
    %v2473 = vand.u32 %v2472, 4294901760
    %v2474 = vsub.f32 %v2472, %v2473
    %v2475 = vand.u32 %v2474, 4294901760
    %2476 = vmatmul.f32.gmra.mxu0 %v2475
    %v2477 = vpop.f32.mrf.mxu0
    %v2478 = vadd.f32 0.0, %v2477
    %2479 = vdwg.mxu0
    %2480 = vmatpush.msra.mxu0 0.0
    %2481 = vmatpush.msra.mxu0 0.0
    %2482 = vmatpush.msra.mxu0 0.0
    %2483 = vmatpush.msra.mxu0 0.0
    %2484 = vmatpush.msra.mxu0 0.0
    %2485 = vmatpush.msra.mxu0 0.0
    %2486 = vmatpush.msra.mxu0 0.0
    %2487 = vmatpush.msra.mxu0 0.0
    %2488 = vmatpush.msra.mxu0 0.0
    %2489 = vmatpush.msra.mxu0 0.0
    %2490 = vmatpush.msra.mxu0 0.0
    %2491 = vmatpush.msra.mxu0 0.0
    %2492 = vmatpush.msra.mxu0 0.0
    %2493 = vmatpush.msra.mxu0 0.0
    %2494 = vmatpush.msra.mxu0 0.0
    %v2495 = vand.u32 %v2014, 4294901760
    %v2496 = vsub.f32 %v2014, %v2495
    %v2497 = vand.u32 %v2496, 4294901760
    %v2498 = vsub.f32 %v2496, %v2497
    %v2499 = vand.u32 %v2498, 4294901760
    %2500 = vmatpush.msra.mxu0 %v2499
    %v2501 = vand.u32 %v2002, 4294901760
    %2502 = vmatmul.f32.gmra.mxu0 %v2501
    %v2503 = vpop.f32.mrf.mxu0
    %v2504 = vadd.f32 %v2478, %v2503
    %2505 = vdwg.mxu0
    %2506 = vmatpush.msra.mxu0 0.0
    %2507 = vmatpush.msra.mxu0 0.0
    %2508 = vmatpush.msra.mxu0 0.0
    %2509 = vmatpush.msra.mxu0 0.0
    %2510 = vmatpush.msra.mxu0 0.0
    %2511 = vmatpush.msra.mxu0 0.0
    %2512 = vmatpush.msra.mxu0 0.0
    %2513 = vmatpush.msra.mxu0 0.0
    %2514 = vmatpush.msra.mxu0 0.0
    %2515 = vmatpush.msra.mxu0 0.0
    %2516 = vmatpush.msra.mxu0 0.0
    %2517 = vmatpush.msra.mxu0 0.0
    %2518 = vmatpush.msra.mxu0 0.0
    %2519 = vmatpush.msra.mxu0 0.0
    %2520 = vmatpush.msra.mxu0 0.0
    %v2521 = vand.u32 %v2014, 4294901760
    %v2522 = vsub.f32 %v2014, %v2521
    %2523 = vmatpush.msra.mxu0 %v2522
    %v2524 = vand.u32 %v2002, 4294901760
    %v2525 = vsub.f32 %v2002, %v2524
    %2526 = vmatmul.f32.gmra.mxu0 %v2525
    %v2527 = vpop.f32.mrf.mxu0
    %v2528 = vadd.f32 %v2504, %v2527
    %2529 = vdwg.mxu0
    %2530 = vmatpush.msra.mxu0 0.0
    %2531 = vmatpush.msra.mxu0 0.0
    %2532 = vmatpush.msra.mxu0 0.0
    %2533 = vmatpush.msra.mxu0 0.0
    %2534 = vmatpush.msra.mxu0 0.0
    %2535 = vmatpush.msra.mxu0 0.0
    %2536 = vmatpush.msra.mxu0 0.0
    %2537 = vmatpush.msra.mxu0 0.0
    %2538 = vmatpush.msra.mxu0 0.0
    %2539 = vmatpush.msra.mxu0 0.0
    %2540 = vmatpush.msra.mxu0 0.0
    %2541 = vmatpush.msra.mxu0 0.0
    %2542 = vmatpush.msra.mxu0 0.0
    %2543 = vmatpush.msra.mxu0 0.0
    %2544 = vmatpush.msra.mxu0 0.0
    %v2545 = vand.u32 %v2014, 4294901760
    %2546 = vmatpush.msra.mxu0 %v2545
    %v2547 = vand.u32 %v2002, 4294901760
    %v2548 = vsub.f32 %v2002, %v2547
    %v2549 = vand.u32 %v2548, 4294901760
    %2550 = vmatmul.f32.gmra.mxu0 %v2549
    %v2551 = vpop.f32.mrf.mxu0
    %v2552 = vadd.f32 %v2528, %v2551
    %2553 = vdwg.mxu0
    %2554 = vmatpush.msra.mxu0 0.0
    %2555 = vmatpush.msra.mxu0 0.0
    %2556 = vmatpush.msra.mxu0 0.0
    %2557 = vmatpush.msra.mxu0 0.0
    %2558 = vmatpush.msra.mxu0 0.0
    %2559 = vmatpush.msra.mxu0 0.0
    %2560 = vmatpush.msra.mxu0 0.0
    %2561 = vmatpush.msra.mxu0 0.0
    %2562 = vmatpush.msra.mxu0 0.0
    %2563 = vmatpush.msra.mxu0 0.0
    %2564 = vmatpush.msra.mxu0 0.0
    %2565 = vmatpush.msra.mxu0 0.0
    %2566 = vmatpush.msra.mxu0 0.0
    %2567 = vmatpush.msra.mxu0 0.0
    %2568 = vmatpush.msra.mxu0 0.0
    %v2569 = vand.u32 %v2014, 4294901760
    %v2570 = vsub.f32 %v2014, %v2569
    %v2571 = vand.u32 %v2570, 4294901760
    %2572 = vmatpush.msra.mxu0 %v2571
    %v2573 = vand.u32 %v2002, 4294901760
    %2574 = vmatmul.f32.gmra.mxu0 %v2573
    %v2575 = vpop.f32.mrf.mxu0
    %v2576 = vadd.f32 %v2552, %v2575
    %2577 = vdwg.mxu0
    %2578 = vmatpush.msra.mxu0 0.0
    %2579 = vmatpush.msra.mxu0 0.0
    %2580 = vmatpush.msra.mxu0 0.0
    %2581 = vmatpush.msra.mxu0 0.0
    %2582 = vmatpush.msra.mxu0 0.0
    %2583 = vmatpush.msra.mxu0 0.0
    %2584 = vmatpush.msra.mxu0 0.0
    %2585 = vmatpush.msra.mxu0 0.0
    %2586 = vmatpush.msra.mxu0 0.0
    %2587 = vmatpush.msra.mxu0 0.0
    %2588 = vmatpush.msra.mxu0 0.0
    %2589 = vmatpush.msra.mxu0 0.0
    %2590 = vmatpush.msra.mxu0 0.0
    %2591 = vmatpush.msra.mxu0 0.0
    %2592 = vmatpush.msra.mxu0 0.0
    %v2593 = vand.u32 %v2014, 4294901760
    %2594 = vmatpush.msra.mxu0 %v2593
    %v2595 = vand.u32 %v2002, 4294901760
    %2596 = vmatmul.f32.gmra.mxu0 %v2595
    %v2597 = vpop.f32.mrf.mxu0
    %v2598 = vadd.f32 %v2576, %v2597
    %2599 = vdwg.mxu0
    %2600 = vxpose.xlu0.b32.start [1/16] %v34, 128
    %2601 = vxpose.xlu0.b32.cont [2/16] 0.0, 128
    %2602 = vxpose.xlu0.b32.cont [3/16] 0.0, 128
    %2603 = vxpose.xlu0.b32.cont [4/16] 0.0, 128
    %2604 = vxpose.xlu0.b32.cont [5/16] 0.0, 128
    %2605 = vxpose.xlu0.b32.cont [6/16] 0.0, 128
    %2606 = vxpose.xlu0.b32.cont [7/16] 0.0, 128
    %2607 = vxpose.xlu0.b32.cont [8/16] 0.0, 128
    %2608 = vxpose.xlu0.b32.cont [9/16] 0.0, 128
    %2609 = vxpose.xlu0.b32.cont [10/16] 0.0, 128
    %2610 = vxpose.xlu0.b32.cont [11/16] 0.0, 128
    %2611 = vxpose.xlu0.b32.cont [12/16] 0.0, 128
    %2612 = vxpose.xlu0.b32.cont [13/16] 0.0, 128
    %2613 = vxpose.xlu0.b32.cont [14/16] 0.0, 128
    %2614 = vxpose.xlu0.b32.cont [15/16] 0.0, 128
    %2615 = vxpose.xlu0.b32.end [16/16] 0.0, 128
    %v2616 = vpop.trf.xlu0
    %v2617 = vpop.trf.xlu0
    %v2618 = vpop.trf.xlu0
    %v2619 = vpop.trf.xlu0
    %v2620 = vpop.trf.xlu0
    %v2621 = vpop.trf.xlu0
    %v2622 = vpop.trf.xlu0
    %v2623 = vpop.trf.xlu0
    %v2624 = vpop.trf.xlu0
    %v2625 = vpop.trf.xlu0
    %v2626 = vpop.trf.xlu0
    %v2627 = vpop.trf.xlu0
    %v2628 = vpop.trf.xlu0
    %v2629 = vpop.trf.xlu0
    %v2630 = vpop.trf.xlu0
    %v2631 = vpop.trf.xlu0
    %v2633 = vsel %vm78, %v2616, 0
    %v2636 = vsel %vm82, %v2160, 0
    %v2639 = vsel %vm82, %v2306, 0
    %v2642 = vsel %vm82, %v2452, 0
    %v2645 = vsel %vm82, %v2598, 0
    %2647 = vmatpush.msra.mxu0 0.0
    %2648 = vmatpush.msra.mxu0 0.0
    %2649 = vmatpush.msra.mxu0 0.0
    %2650 = vmatpush.msra.mxu0 0.0
    %2651 = vmatpush.msra.mxu0 0.0
    %2652 = vmatpush.msra.mxu0 0.0
    %2653 = vmatpush.msra.mxu0 0.0
    %2654 = vmatpush.msra.mxu0 0.0
    %2655 = vmatpush.msra.mxu0 0.0
    %2656 = vmatpush.msra.mxu0 0.0
    %2657 = vmatpush.msra.mxu0 0.0
    %2658 = vmatpush.msra.mxu0 0.0
    %2659 = vmatpush.msra.mxu0 0.0
    %2660 = vmatpush.msra.mxu0 0.0
    %2661 = vmatpush.msra.mxu0 0.0
    %v2662 = vand.u32 %v2636, 4294901760
    %2663 = vmatpush.msra.mxu0 %v2662
    %v2664 = vand.u32 %v2633, 4294901760
    %v2665 = vsub.f32 %v2633, %v2664
    %v2666 = vand.u32 %v2665, 4294901760
    %v2667 = vsub.f32 %v2665, %v2666
    %v2668 = vand.u32 %v2667, 4294901760
    %2669 = vmatmul.f32.gmra.mxu0 %v2668
    %v2670 = vpop.f32.mrf.mxu0
    %v2671 = vadd.f32 0.0, %v2670
    %2672 = vdwg.mxu0
    %2673 = vmatpush.msra.mxu0 0.0
    %2674 = vmatpush.msra.mxu0 0.0
    %2675 = vmatpush.msra.mxu0 0.0
    %2676 = vmatpush.msra.mxu0 0.0
    %2677 = vmatpush.msra.mxu0 0.0
    %2678 = vmatpush.msra.mxu0 0.0
    %2679 = vmatpush.msra.mxu0 0.0
    %2680 = vmatpush.msra.mxu0 0.0
    %2681 = vmatpush.msra.mxu0 0.0
    %2682 = vmatpush.msra.mxu0 0.0
    %2683 = vmatpush.msra.mxu0 0.0
    %2684 = vmatpush.msra.mxu0 0.0
    %2685 = vmatpush.msra.mxu0 0.0
    %2686 = vmatpush.msra.mxu0 0.0
    %2687 = vmatpush.msra.mxu0 0.0
    %v2688 = vand.u32 %v2636, 4294901760
    %v2689 = vsub.f32 %v2636, %v2688
    %v2690 = vand.u32 %v2689, 4294901760
    %v2691 = vsub.f32 %v2689, %v2690
    %v2692 = vand.u32 %v2691, 4294901760
    %2693 = vmatpush.msra.mxu0 %v2692
    %v2694 = vand.u32 %v2633, 4294901760
    %2695 = vmatmul.f32.gmra.mxu0 %v2694
    %v2696 = vpop.f32.mrf.mxu0
    %v2697 = vadd.f32 %v2671, %v2696
    %2698 = vdwg.mxu0
    %2699 = vmatpush.msra.mxu0 0.0
    %2700 = vmatpush.msra.mxu0 0.0
    %2701 = vmatpush.msra.mxu0 0.0
    %2702 = vmatpush.msra.mxu0 0.0
    %2703 = vmatpush.msra.mxu0 0.0
    %2704 = vmatpush.msra.mxu0 0.0
    %2705 = vmatpush.msra.mxu0 0.0
    %2706 = vmatpush.msra.mxu0 0.0
    %2707 = vmatpush.msra.mxu0 0.0
    %2708 = vmatpush.msra.mxu0 0.0
    %2709 = vmatpush.msra.mxu0 0.0
    %2710 = vmatpush.msra.mxu0 0.0
    %2711 = vmatpush.msra.mxu0 0.0
    %2712 = vmatpush.msra.mxu0 0.0
    %2713 = vmatpush.msra.mxu0 0.0
    %v2714 = vand.u32 %v2636, 4294901760
    %v2715 = vsub.f32 %v2636, %v2714
    %2716 = vmatpush.msra.mxu0 %v2715
    %v2717 = vand.u32 %v2633, 4294901760
    %v2718 = vsub.f32 %v2633, %v2717
    %2719 = vmatmul.f32.gmra.mxu0 %v2718
    %v2720 = vpop.f32.mrf.mxu0
    %v2721 = vadd.f32 %v2697, %v2720
    %2722 = vdwg.mxu0
    %2723 = vmatpush.msra.mxu0 0.0
    %2724 = vmatpush.msra.mxu0 0.0
    %2725 = vmatpush.msra.mxu0 0.0
    %2726 = vmatpush.msra.mxu0 0.0
    %2727 = vmatpush.msra.mxu0 0.0
    %2728 = vmatpush.msra.mxu0 0.0
    %2729 = vmatpush.msra.mxu0 0.0
    %2730 = vmatpush.msra.mxu0 0.0
    %2731 = vmatpush.msra.mxu0 0.0
    %2732 = vmatpush.msra.mxu0 0.0
    %2733 = vmatpush.msra.mxu0 0.0
    %2734 = vmatpush.msra.mxu0 0.0
    %2735 = vmatpush.msra.mxu0 0.0
    %2736 = vmatpush.msra.mxu0 0.0
    %2737 = vmatpush.msra.mxu0 0.0
    %v2738 = vand.u32 %v2636, 4294901760
    %2739 = vmatpush.msra.mxu0 %v2738
    %v2740 = vand.u32 %v2633, 4294901760
    %v2741 = vsub.f32 %v2633, %v2740
    %v2742 = vand.u32 %v2741, 4294901760
    %2743 = vmatmul.f32.gmra.mxu0 %v2742
    %v2744 = vpop.f32.mrf.mxu0
    %v2745 = vadd.f32 %v2721, %v2744
    %2746 = vdwg.mxu0
    %2747 = vmatpush.msra.mxu0 0.0
    %2748 = vmatpush.msra.mxu0 0.0
    %2749 = vmatpush.msra.mxu0 0.0
    %2750 = vmatpush.msra.mxu0 0.0
    %2751 = vmatpush.msra.mxu0 0.0
    %2752 = vmatpush.msra.mxu0 0.0
    %2753 = vmatpush.msra.mxu0 0.0
    %2754 = vmatpush.msra.mxu0 0.0
    %2755 = vmatpush.msra.mxu0 0.0
    %2756 = vmatpush.msra.mxu0 0.0
    %2757 = vmatpush.msra.mxu0 0.0
    %2758 = vmatpush.msra.mxu0 0.0
    %2759 = vmatpush.msra.mxu0 0.0
    %2760 = vmatpush.msra.mxu0 0.0
    %2761 = vmatpush.msra.mxu0 0.0
    %v2762 = vand.u32 %v2636, 4294901760
    %v2763 = vsub.f32 %v2636, %v2762
    %v2764 = vand.u32 %v2763, 4294901760
    %2765 = vmatpush.msra.mxu0 %v2764
    %v2766 = vand.u32 %v2633, 4294901760
    %2767 = vmatmul.f32.gmra.mxu0 %v2766
    %v2768 = vpop.f32.mrf.mxu0
    %v2769 = vadd.f32 %v2745, %v2768
    %2770 = vdwg.mxu0
    %2771 = vmatpush.msra.mxu0 0.0
    %2772 = vmatpush.msra.mxu0 0.0
    %2773 = vmatpush.msra.mxu0 0.0
    %2774 = vmatpush.msra.mxu0 0.0
    %2775 = vmatpush.msra.mxu0 0.0
    %2776 = vmatpush.msra.mxu0 0.0
    %2777 = vmatpush.msra.mxu0 0.0
    %2778 = vmatpush.msra.mxu0 0.0
    %2779 = vmatpush.msra.mxu0 0.0
    %2780 = vmatpush.msra.mxu0 0.0
    %2781 = vmatpush.msra.mxu0 0.0
    %2782 = vmatpush.msra.mxu0 0.0
    %2783 = vmatpush.msra.mxu0 0.0
    %2784 = vmatpush.msra.mxu0 0.0
    %2785 = vmatpush.msra.mxu0 0.0
    %v2786 = vand.u32 %v2636, 4294901760
    %2787 = vmatpush.msra.mxu0 %v2786
    %v2788 = vand.u32 %v2633, 4294901760
    %2789 = vmatmul.f32.gmra.mxu0 %v2788
    %v2790 = vpop.f32.mrf.mxu0
    %v2791 = vadd.f32 %v2769, %v2790
    %2792 = vdwg.mxu0
    %2793 = vmatpush.msra.mxu0 0.0
    %2794 = vmatpush.msra.mxu0 0.0
    %2795 = vmatpush.msra.mxu0 0.0
    %2796 = vmatpush.msra.mxu0 0.0
    %2797 = vmatpush.msra.mxu0 0.0
    %2798 = vmatpush.msra.mxu0 0.0
    %2799 = vmatpush.msra.mxu0 0.0
    %2800 = vmatpush.msra.mxu0 0.0
    %2801 = vmatpush.msra.mxu0 0.0
    %2802 = vmatpush.msra.mxu0 0.0
    %2803 = vmatpush.msra.mxu0 0.0
    %2804 = vmatpush.msra.mxu0 0.0
    %2805 = vmatpush.msra.mxu0 0.0
    %2806 = vmatpush.msra.mxu0 0.0
    %2807 = vmatpush.msra.mxu0 0.0
    %v2808 = vand.u32 %v2639, 4294901760
    %2809 = vmatpush.msra.mxu0 %v2808
    %v2810 = vand.u32 %v2633, 4294901760
    %v2811 = vsub.f32 %v2633, %v2810
    %v2812 = vand.u32 %v2811, 4294901760
    %v2813 = vsub.f32 %v2811, %v2812
    %v2814 = vand.u32 %v2813, 4294901760
    %2815 = vmatmul.f32.gmra.mxu0 %v2814
    %v2816 = vpop.f32.mrf.mxu0
    %v2817 = vadd.f32 0.0, %v2816
    %2818 = vdwg.mxu0
    %2819 = vmatpush.msra.mxu0 0.0
    %2820 = vmatpush.msra.mxu0 0.0
    %2821 = vmatpush.msra.mxu0 0.0
    %2822 = vmatpush.msra.mxu0 0.0
    %2823 = vmatpush.msra.mxu0 0.0
    %2824 = vmatpush.msra.mxu0 0.0
    %2825 = vmatpush.msra.mxu0 0.0
    %2826 = vmatpush.msra.mxu0 0.0
    %2827 = vmatpush.msra.mxu0 0.0
    %2828 = vmatpush.msra.mxu0 0.0
    %2829 = vmatpush.msra.mxu0 0.0
    %2830 = vmatpush.msra.mxu0 0.0
    %2831 = vmatpush.msra.mxu0 0.0
    %2832 = vmatpush.msra.mxu0 0.0
    %2833 = vmatpush.msra.mxu0 0.0
    %v2834 = vand.u32 %v2639, 4294901760
    %v2835 = vsub.f32 %v2639, %v2834
    %v2836 = vand.u32 %v2835, 4294901760
    %v2837 = vsub.f32 %v2835, %v2836
    %v2838 = vand.u32 %v2837, 4294901760
    %2839 = vmatpush.msra.mxu0 %v2838
    %v2840 = vand.u32 %v2633, 4294901760
    %2841 = vmatmul.f32.gmra.mxu0 %v2840
    %v2842 = vpop.f32.mrf.mxu0
    %v2843 = vadd.f32 %v2817, %v2842
    %2844 = vdwg.mxu0
    %2845 = vmatpush.msra.mxu0 0.0
    %2846 = vmatpush.msra.mxu0 0.0
    %2847 = vmatpush.msra.mxu0 0.0
    %2848 = vmatpush.msra.mxu0 0.0
    %2849 = vmatpush.msra.mxu0 0.0
    %2850 = vmatpush.msra.mxu0 0.0
    %2851 = vmatpush.msra.mxu0 0.0
    %2852 = vmatpush.msra.mxu0 0.0
    %2853 = vmatpush.msra.mxu0 0.0
    %2854 = vmatpush.msra.mxu0 0.0
    %2855 = vmatpush.msra.mxu0 0.0
    %2856 = vmatpush.msra.mxu0 0.0
    %2857 = vmatpush.msra.mxu0 0.0
    %2858 = vmatpush.msra.mxu0 0.0
    %2859 = vmatpush.msra.mxu0 0.0
    %v2860 = vand.u32 %v2639, 4294901760
    %v2861 = vsub.f32 %v2639, %v2860
    %2862 = vmatpush.msra.mxu0 %v2861
    %v2863 = vand.u32 %v2633, 4294901760
    %v2864 = vsub.f32 %v2633, %v2863
    %2865 = vmatmul.f32.gmra.mxu0 %v2864
    %v2866 = vpop.f32.mrf.mxu0
    %v2867 = vadd.f32 %v2843, %v2866
    %2868 = vdwg.mxu0
    %2869 = vmatpush.msra.mxu0 0.0
    %2870 = vmatpush.msra.mxu0 0.0
    %2871 = vmatpush.msra.mxu0 0.0
    %2872 = vmatpush.msra.mxu0 0.0
    %2873 = vmatpush.msra.mxu0 0.0
    %2874 = vmatpush.msra.mxu0 0.0
    %2875 = vmatpush.msra.mxu0 0.0
    %2876 = vmatpush.msra.mxu0 0.0
    %2877 = vmatpush.msra.mxu0 0.0
    %2878 = vmatpush.msra.mxu0 0.0
    %2879 = vmatpush.msra.mxu0 0.0
    %2880 = vmatpush.msra.mxu0 0.0
    %2881 = vmatpush.msra.mxu0 0.0
    %2882 = vmatpush.msra.mxu0 0.0
    %2883 = vmatpush.msra.mxu0 0.0
    %v2884 = vand.u32 %v2639, 4294901760
    %2885 = vmatpush.msra.mxu0 %v2884
    %v2886 = vand.u32 %v2633, 4294901760
    %v2887 = vsub.f32 %v2633, %v2886
    %v2888 = vand.u32 %v2887, 4294901760
    %2889 = vmatmul.f32.gmra.mxu0 %v2888
    %v2890 = vpop.f32.mrf.mxu0
    %v2891 = vadd.f32 %v2867, %v2890
    %2892 = vdwg.mxu0
    %2893 = vmatpush.msra.mxu0 0.0
    %2894 = vmatpush.msra.mxu0 0.0
    %2895 = vmatpush.msra.mxu0 0.0
    %2896 = vmatpush.msra.mxu0 0.0
    %2897 = vmatpush.msra.mxu0 0.0
    %2898 = vmatpush.msra.mxu0 0.0
    %2899 = vmatpush.msra.mxu0 0.0
    %2900 = vmatpush.msra.mxu0 0.0
    %2901 = vmatpush.msra.mxu0 0.0
    %2902 = vmatpush.msra.mxu0 0.0
    %2903 = vmatpush.msra.mxu0 0.0
    %2904 = vmatpush.msra.mxu0 0.0
    %2905 = vmatpush.msra.mxu0 0.0
    %2906 = vmatpush.msra.mxu0 0.0
    %2907 = vmatpush.msra.mxu0 0.0
    %v2908 = vand.u32 %v2639, 4294901760
    %v2909 = vsub.f32 %v2639, %v2908
    %v2910 = vand.u32 %v2909, 4294901760
    %2911 = vmatpush.msra.mxu0 %v2910
    %v2912 = vand.u32 %v2633, 4294901760
    %2913 = vmatmul.f32.gmra.mxu0 %v2912
    %v2914 = vpop.f32.mrf.mxu0
    %v2915 = vadd.f32 %v2891, %v2914
    %2916 = vdwg.mxu0
    %2917 = vmatpush.msra.mxu0 0.0
    %2918 = vmatpush.msra.mxu0 0.0
    %2919 = vmatpush.msra.mxu0 0.0
    %2920 = vmatpush.msra.mxu0 0.0
    %2921 = vmatpush.msra.mxu0 0.0
    %2922 = vmatpush.msra.mxu0 0.0
    %2923 = vmatpush.msra.mxu0 0.0
    %2924 = vmatpush.msra.mxu0 0.0
    %2925 = vmatpush.msra.mxu0 0.0
    %2926 = vmatpush.msra.mxu0 0.0
    %2927 = vmatpush.msra.mxu0 0.0
    %2928 = vmatpush.msra.mxu0 0.0
    %2929 = vmatpush.msra.mxu0 0.0
    %2930 = vmatpush.msra.mxu0 0.0
    %2931 = vmatpush.msra.mxu0 0.0
    %v2932 = vand.u32 %v2639, 4294901760
    %2933 = vmatpush.msra.mxu0 %v2932
    %v2934 = vand.u32 %v2633, 4294901760
    %2935 = vmatmul.f32.gmra.mxu0 %v2934
    %v2936 = vpop.f32.mrf.mxu0
    %v2937 = vadd.f32 %v2915, %v2936
    %2938 = vdwg.mxu0
    %2939 = vmatpush.msra.mxu0 0.0
    %2940 = vmatpush.msra.mxu0 0.0
    %2941 = vmatpush.msra.mxu0 0.0
    %2942 = vmatpush.msra.mxu0 0.0
    %2943 = vmatpush.msra.mxu0 0.0
    %2944 = vmatpush.msra.mxu0 0.0
    %2945 = vmatpush.msra.mxu0 0.0
    %2946 = vmatpush.msra.mxu0 0.0
    %2947 = vmatpush.msra.mxu0 0.0
    %2948 = vmatpush.msra.mxu0 0.0
    %2949 = vmatpush.msra.mxu0 0.0
    %2950 = vmatpush.msra.mxu0 0.0
    %2951 = vmatpush.msra.mxu0 0.0
    %2952 = vmatpush.msra.mxu0 0.0
    %2953 = vmatpush.msra.mxu0 0.0
    %v2954 = vand.u32 %v2642, 4294901760
    %2955 = vmatpush.msra.mxu0 %v2954
    %v2956 = vand.u32 %v2633, 4294901760
    %v2957 = vsub.f32 %v2633, %v2956
    %v2958 = vand.u32 %v2957, 4294901760
    %v2959 = vsub.f32 %v2957, %v2958
    %v2960 = vand.u32 %v2959, 4294901760
    %2961 = vmatmul.f32.gmra.mxu0 %v2960
    %v2962 = vpop.f32.mrf.mxu0
    %v2963 = vadd.f32 0.0, %v2962
    %2964 = vdwg.mxu0
    %2965 = vmatpush.msra.mxu0 0.0
    %2966 = vmatpush.msra.mxu0 0.0
    %2967 = vmatpush.msra.mxu0 0.0
    %2968 = vmatpush.msra.mxu0 0.0
    %2969 = vmatpush.msra.mxu0 0.0
    %2970 = vmatpush.msra.mxu0 0.0
    %2971 = vmatpush.msra.mxu0 0.0
    %2972 = vmatpush.msra.mxu0 0.0
    %2973 = vmatpush.msra.mxu0 0.0
    %2974 = vmatpush.msra.mxu0 0.0
    %2975 = vmatpush.msra.mxu0 0.0
    %2976 = vmatpush.msra.mxu0 0.0
    %2977 = vmatpush.msra.mxu0 0.0
    %2978 = vmatpush.msra.mxu0 0.0
    %2979 = vmatpush.msra.mxu0 0.0
    %v2980 = vand.u32 %v2642, 4294901760
    %v2981 = vsub.f32 %v2642, %v2980
    %v2982 = vand.u32 %v2981, 4294901760
    %v2983 = vsub.f32 %v2981, %v2982
    %v2984 = vand.u32 %v2983, 4294901760
    %2985 = vmatpush.msra.mxu0 %v2984
    %v2986 = vand.u32 %v2633, 4294901760
    %2987 = vmatmul.f32.gmra.mxu0 %v2986
    %v2988 = vpop.f32.mrf.mxu0
    %v2989 = vadd.f32 %v2963, %v2988
    %2990 = vdwg.mxu0
    %2991 = vmatpush.msra.mxu0 0.0
    %2992 = vmatpush.msra.mxu0 0.0
    %2993 = vmatpush.msra.mxu0 0.0
    %2994 = vmatpush.msra.mxu0 0.0
    %2995 = vmatpush.msra.mxu0 0.0
    %2996 = vmatpush.msra.mxu0 0.0
    %2997 = vmatpush.msra.mxu0 0.0
    %2998 = vmatpush.msra.mxu0 0.0
    %2999 = vmatpush.msra.mxu0 0.0
    %3000 = vmatpush.msra.mxu0 0.0
    %3001 = vmatpush.msra.mxu0 0.0
    %3002 = vmatpush.msra.mxu0 0.0
    %3003 = vmatpush.msra.mxu0 0.0
    %3004 = vmatpush.msra.mxu0 0.0
    %3005 = vmatpush.msra.mxu0 0.0
    %v3006 = vand.u32 %v2642, 4294901760
    %v3007 = vsub.f32 %v2642, %v3006
    %3008 = vmatpush.msra.mxu0 %v3007
    %v3009 = vand.u32 %v2633, 4294901760
    %v3010 = vsub.f32 %v2633, %v3009
    %3011 = vmatmul.f32.gmra.mxu0 %v3010
    %v3012 = vpop.f32.mrf.mxu0
    %v3013 = vadd.f32 %v2989, %v3012
    %3014 = vdwg.mxu0
    %3015 = vmatpush.msra.mxu0 0.0
    %3016 = vmatpush.msra.mxu0 0.0
    %3017 = vmatpush.msra.mxu0 0.0
    %3018 = vmatpush.msra.mxu0 0.0
    %3019 = vmatpush.msra.mxu0 0.0
    %3020 = vmatpush.msra.mxu0 0.0
    %3021 = vmatpush.msra.mxu0 0.0
    %3022 = vmatpush.msra.mxu0 0.0
    %3023 = vmatpush.msra.mxu0 0.0
    %3024 = vmatpush.msra.mxu0 0.0
    %3025 = vmatpush.msra.mxu0 0.0
    %3026 = vmatpush.msra.mxu0 0.0
    %3027 = vmatpush.msra.mxu0 0.0
    %3028 = vmatpush.msra.mxu0 0.0
    %3029 = vmatpush.msra.mxu0 0.0
    %v3030 = vand.u32 %v2642, 4294901760
    %3031 = vmatpush.msra.mxu0 %v3030
    %v3032 = vand.u32 %v2633, 4294901760
    %v3033 = vsub.f32 %v2633, %v3032
    %v3034 = vand.u32 %v3033, 4294901760
    %3035 = vmatmul.f32.gmra.mxu0 %v3034
    %v3036 = vpop.f32.mrf.mxu0
    %v3037 = vadd.f32 %v3013, %v3036
    %3038 = vdwg.mxu0
    %3039 = vmatpush.msra.mxu0 0.0
    %3040 = vmatpush.msra.mxu0 0.0
    %3041 = vmatpush.msra.mxu0 0.0
    %3042 = vmatpush.msra.mxu0 0.0
    %3043 = vmatpush.msra.mxu0 0.0
    %3044 = vmatpush.msra.mxu0 0.0
    %3045 = vmatpush.msra.mxu0 0.0
    %3046 = vmatpush.msra.mxu0 0.0
    %3047 = vmatpush.msra.mxu0 0.0
    %3048 = vmatpush.msra.mxu0 0.0
    %3049 = vmatpush.msra.mxu0 0.0
    %3050 = vmatpush.msra.mxu0 0.0
    %3051 = vmatpush.msra.mxu0 0.0
    %3052 = vmatpush.msra.mxu0 0.0
    %3053 = vmatpush.msra.mxu0 0.0
    %v3054 = vand.u32 %v2642, 4294901760
    %v3055 = vsub.f32 %v2642, %v3054
    %v3056 = vand.u32 %v3055, 4294901760
    %3057 = vmatpush.msra.mxu0 %v3056
    %v3058 = vand.u32 %v2633, 4294901760
    %3059 = vmatmul.f32.gmra.mxu0 %v3058
    %v3060 = vpop.f32.mrf.mxu0
    %v3061 = vadd.f32 %v3037, %v3060
    %3062 = vdwg.mxu0
    %3063 = vmatpush.msra.mxu0 0.0
    %3064 = vmatpush.msra.mxu0 0.0
    %3065 = vmatpush.msra.mxu0 0.0
    %3066 = vmatpush.msra.mxu0 0.0
    %3067 = vmatpush.msra.mxu0 0.0
    %3068 = vmatpush.msra.mxu0 0.0
    %3069 = vmatpush.msra.mxu0 0.0
    %3070 = vmatpush.msra.mxu0 0.0
    %3071 = vmatpush.msra.mxu0 0.0
    %3072 = vmatpush.msra.mxu0 0.0
    %3073 = vmatpush.msra.mxu0 0.0
    %3074 = vmatpush.msra.mxu0 0.0
    %3075 = vmatpush.msra.mxu0 0.0
    %3076 = vmatpush.msra.mxu0 0.0
    %3077 = vmatpush.msra.mxu0 0.0
    %v3078 = vand.u32 %v2642, 4294901760
    %3079 = vmatpush.msra.mxu0 %v3078
    %v3080 = vand.u32 %v2633, 4294901760
    %3081 = vmatmul.f32.gmra.mxu0 %v3080
    %v3082 = vpop.f32.mrf.mxu0
    %v3083 = vadd.f32 %v3061, %v3082
    %3084 = vdwg.mxu0
    %3085 = vmatpush.msra.mxu0 0.0
    %3086 = vmatpush.msra.mxu0 0.0
    %3087 = vmatpush.msra.mxu0 0.0
    %3088 = vmatpush.msra.mxu0 0.0
    %3089 = vmatpush.msra.mxu0 0.0
    %3090 = vmatpush.msra.mxu0 0.0
    %3091 = vmatpush.msra.mxu0 0.0
    %3092 = vmatpush.msra.mxu0 0.0
    %3093 = vmatpush.msra.mxu0 0.0
    %3094 = vmatpush.msra.mxu0 0.0
    %3095 = vmatpush.msra.mxu0 0.0
    %3096 = vmatpush.msra.mxu0 0.0
    %3097 = vmatpush.msra.mxu0 0.0
    %3098 = vmatpush.msra.mxu0 0.0
    %3099 = vmatpush.msra.mxu0 0.0
    %v3100 = vand.u32 %v2645, 4294901760
    %3101 = vmatpush.msra.mxu0 %v3100
    %v3102 = vand.u32 %v2633, 4294901760
    %v3103 = vsub.f32 %v2633, %v3102
    %v3104 = vand.u32 %v3103, 4294901760
    %v3105 = vsub.f32 %v3103, %v3104
    %v3106 = vand.u32 %v3105, 4294901760
    %3107 = vmatmul.f32.gmra.mxu0 %v3106
    %v3108 = vpop.f32.mrf.mxu0
    %v3109 = vadd.f32 0.0, %v3108
    %3110 = vdwg.mxu0
    %3111 = vmatpush.msra.mxu0 0.0
    %3112 = vmatpush.msra.mxu0 0.0
    %3113 = vmatpush.msra.mxu0 0.0
    %3114 = vmatpush.msra.mxu0 0.0
    %3115 = vmatpush.msra.mxu0 0.0
    %3116 = vmatpush.msra.mxu0 0.0
    %3117 = vmatpush.msra.mxu0 0.0
    %3118 = vmatpush.msra.mxu0 0.0
    %3119 = vmatpush.msra.mxu0 0.0
    %3120 = vmatpush.msra.mxu0 0.0
    %3121 = vmatpush.msra.mxu0 0.0
    %3122 = vmatpush.msra.mxu0 0.0
    %3123 = vmatpush.msra.mxu0 0.0
    %3124 = vmatpush.msra.mxu0 0.0
    %3125 = vmatpush.msra.mxu0 0.0
    %v3126 = vand.u32 %v2645, 4294901760
    %v3127 = vsub.f32 %v2645, %v3126
    %v3128 = vand.u32 %v3127, 4294901760
    %v3129 = vsub.f32 %v3127, %v3128
    %v3130 = vand.u32 %v3129, 4294901760
    %3131 = vmatpush.msra.mxu0 %v3130
    %v3132 = vand.u32 %v2633, 4294901760
    %3133 = vmatmul.f32.gmra.mxu0 %v3132
    %v3134 = vpop.f32.mrf.mxu0
    %v3135 = vadd.f32 %v3109, %v3134
    %3136 = vdwg.mxu0
    %3137 = vmatpush.msra.mxu0 0.0
    %3138 = vmatpush.msra.mxu0 0.0
    %3139 = vmatpush.msra.mxu0 0.0
    %3140 = vmatpush.msra.mxu0 0.0
    %3141 = vmatpush.msra.mxu0 0.0
    %3142 = vmatpush.msra.mxu0 0.0
    %3143 = vmatpush.msra.mxu0 0.0
    %3144 = vmatpush.msra.mxu0 0.0
    %3145 = vmatpush.msra.mxu0 0.0
    %3146 = vmatpush.msra.mxu0 0.0
    %3147 = vmatpush.msra.mxu0 0.0
    %3148 = vmatpush.msra.mxu0 0.0
    %3149 = vmatpush.msra.mxu0 0.0
    %3150 = vmatpush.msra.mxu0 0.0
    %3151 = vmatpush.msra.mxu0 0.0
    %v3152 = vand.u32 %v2645, 4294901760
    %v3153 = vsub.f32 %v2645, %v3152
    %3154 = vmatpush.msra.mxu0 %v3153
    %v3155 = vand.u32 %v2633, 4294901760
    %v3156 = vsub.f32 %v2633, %v3155
    %3157 = vmatmul.f32.gmra.mxu0 %v3156
    %v3158 = vpop.f32.mrf.mxu0
    %v3159 = vadd.f32 %v3135, %v3158
    %3160 = vdwg.mxu0
    %3161 = vmatpush.msra.mxu0 0.0
    %3162 = vmatpush.msra.mxu0 0.0
    %3163 = vmatpush.msra.mxu0 0.0
    %3164 = vmatpush.msra.mxu0 0.0
    %3165 = vmatpush.msra.mxu0 0.0
    %3166 = vmatpush.msra.mxu0 0.0
    %3167 = vmatpush.msra.mxu0 0.0
    %3168 = vmatpush.msra.mxu0 0.0
    %3169 = vmatpush.msra.mxu0 0.0
    %3170 = vmatpush.msra.mxu0 0.0
    %3171 = vmatpush.msra.mxu0 0.0
    %3172 = vmatpush.msra.mxu0 0.0
    %3173 = vmatpush.msra.mxu0 0.0
    %3174 = vmatpush.msra.mxu0 0.0
    %3175 = vmatpush.msra.mxu0 0.0
    %v3176 = vand.u32 %v2645, 4294901760
    %3177 = vmatpush.msra.mxu0 %v3176
    %v3178 = vand.u32 %v2633, 4294901760
    %v3179 = vsub.f32 %v2633, %v3178
    %v3180 = vand.u32 %v3179, 4294901760
    %3181 = vmatmul.f32.gmra.mxu0 %v3180
    %v3182 = vpop.f32.mrf.mxu0
    %v3183 = vadd.f32 %v3159, %v3182
    %3184 = vdwg.mxu0
    %3185 = vmatpush.msra.mxu0 0.0
    %3186 = vmatpush.msra.mxu0 0.0
    %3187 = vmatpush.msra.mxu0 0.0
    %3188 = vmatpush.msra.mxu0 0.0
    %3189 = vmatpush.msra.mxu0 0.0
    %3190 = vmatpush.msra.mxu0 0.0
    %3191 = vmatpush.msra.mxu0 0.0
    %3192 = vmatpush.msra.mxu0 0.0
    %3193 = vmatpush.msra.mxu0 0.0
    %3194 = vmatpush.msra.mxu0 0.0
    %3195 = vmatpush.msra.mxu0 0.0
    %3196 = vmatpush.msra.mxu0 0.0
    %3197 = vmatpush.msra.mxu0 0.0
    %3198 = vmatpush.msra.mxu0 0.0
    %3199 = vmatpush.msra.mxu0 0.0
    %v3200 = vand.u32 %v2645, 4294901760
    %v3201 = vsub.f32 %v2645, %v3200
    %v3202 = vand.u32 %v3201, 4294901760
    %3203 = vmatpush.msra.mxu0 %v3202
    %v3204 = vand.u32 %v2633, 4294901760
    %3205 = vmatmul.f32.gmra.mxu0 %v3204
    %v3206 = vpop.f32.mrf.mxu0
    %v3207 = vadd.f32 %v3183, %v3206
    %3208 = vdwg.mxu0
    %3209 = vmatpush.msra.mxu0 0.0
    %3210 = vmatpush.msra.mxu0 0.0
    %3211 = vmatpush.msra.mxu0 0.0
    %3212 = vmatpush.msra.mxu0 0.0
    %3213 = vmatpush.msra.mxu0 0.0
    %3214 = vmatpush.msra.mxu0 0.0
    %3215 = vmatpush.msra.mxu0 0.0
    %3216 = vmatpush.msra.mxu0 0.0
    %3217 = vmatpush.msra.mxu0 0.0
    %3218 = vmatpush.msra.mxu0 0.0
    %3219 = vmatpush.msra.mxu0 0.0
    %3220 = vmatpush.msra.mxu0 0.0
    %3221 = vmatpush.msra.mxu0 0.0
    %3222 = vmatpush.msra.mxu0 0.0
    %3223 = vmatpush.msra.mxu0 0.0
    %v3224 = vand.u32 %v2645, 4294901760
    %3225 = vmatpush.msra.mxu0 %v3224
    %v3226 = vand.u32 %v2633, 4294901760
    %3227 = vmatmul.f32.gmra.mxu0 %v3226
    %v3228 = vpop.f32.mrf.mxu0
    %v3229 = vadd.f32 %v3207, %v3228
    %3230 = vdwg.mxu0
    %s3231 = sld [smem:[#allocation2 + $0x2]]
    %vm3232 = vcmp.gt.f32.partialorder %v2791, 0.0
    %vm3233 = vcmp.gt.f32.partialorder %v2937, 0.0
    %vm3234 = vcmp.gt.f32.partialorder %v3083, 0.0
    %vm3235 = vcmp.gt.f32.partialorder %v3229, 0.0
    %v3236 = vstv %s3231
    %v3237 = vmul.f32 %v3236, %v2791
    %v3238 = vmul.f32 %v3236, %v2937
    %v3239 = vmul.f32 %v3236, %v3083
    %v3240 = vmul.f32 %v3236, %v3229
    %v3241 = vsel %vm3232, %v2791, %v3237
    %v3242 = vsel %vm3233, %v2937, %v3238
    %v3243 = vsel %vm3234, %v3083, %v3239
    %v3244 = vsel %vm3235, %v3229, %v3240
    %3245 = vxpose.xlu0.b32.start [1/16] %v35, 128
    %3246 = vxpose.xlu0.b32.cont [2/16] 0.0, 128
    %3247 = vxpose.xlu0.b32.cont [3/16] 0.0, 128
    %3248 = vxpose.xlu0.b32.cont [4/16] 0.0, 128
    %3249 = vxpose.xlu0.b32.cont [5/16] 0.0, 128
    %3250 = vxpose.xlu0.b32.cont [6/16] 0.0, 128
    %3251 = vxpose.xlu0.b32.cont [7/16] 0.0, 128
    %3252 = vxpose.xlu0.b32.cont [8/16] 0.0, 128
    %3253 = vxpose.xlu0.b32.cont [9/16] 0.0, 128
    %3254 = vxpose.xlu0.b32.cont [10/16] 0.0, 128
    %3255 = vxpose.xlu0.b32.cont [11/16] 0.0, 128
    %3256 = vxpose.xlu0.b32.cont [12/16] 0.0, 128
    %3257 = vxpose.xlu0.b32.cont [13/16] 0.0, 128
    %3258 = vxpose.xlu0.b32.cont [14/16] 0.0, 128
    %3259 = vxpose.xlu0.b32.cont [15/16] 0.0, 128
    %3260 = vxpose.xlu0.b32.end [16/16] 0.0, 128
    %v3261 = vpop.trf.xlu0
    %v3262 = vpop.trf.xlu0
    %v3263 = vpop.trf.xlu0
    %v3264 = vpop.trf.xlu0
    %v3265 = vpop.trf.xlu0
    %v3266 = vpop.trf.xlu0
    %v3267 = vpop.trf.xlu0
    %v3268 = vpop.trf.xlu0
    %v3269 = vpop.trf.xlu0
    %v3270 = vpop.trf.xlu0
    %v3271 = vpop.trf.xlu0
    %v3272 = vpop.trf.xlu0
    %v3273 = vpop.trf.xlu0
    %v3274 = vpop.trf.xlu0
    %v3275 = vpop.trf.xlu0
    %v3276 = vpop.trf.xlu0
    %v3278 = vsel %vm78, %v3261, 0
    %v3281 = vsel %vm82, %v3241, 0
    %v3284 = vsel %vm82, %v3242, 0
    %v3287 = vsel %vm82, %v3243, 0
    %v3290 = vsel %vm82, %v3244, 0
    %3292 = vmatpush.msra.mxu0 0.0
    %3293 = vmatpush.msra.mxu0 0.0
    %3294 = vmatpush.msra.mxu0 0.0
    %3295 = vmatpush.msra.mxu0 0.0
    %3296 = vmatpush.msra.mxu0 0.0
    %3297 = vmatpush.msra.mxu0 0.0
    %3298 = vmatpush.msra.mxu0 0.0
    %3299 = vmatpush.msra.mxu0 0.0
    %3300 = vmatpush.msra.mxu0 0.0
    %3301 = vmatpush.msra.mxu0 0.0
    %3302 = vmatpush.msra.mxu0 0.0
    %3303 = vmatpush.msra.mxu0 0.0
    %3304 = vmatpush.msra.mxu0 0.0
    %3305 = vmatpush.msra.mxu0 0.0
    %3306 = vmatpush.msra.mxu0 0.0
    %v3307 = vand.u32 %v3281, 4294901760
    %3308 = vmatpush.msra.mxu0 %v3307
    %v3309 = vand.u32 %v3278, 4294901760
    %v3310 = vsub.f32 %v3278, %v3309
    %v3311 = vand.u32 %v3310, 4294901760
    %v3312 = vsub.f32 %v3310, %v3311
    %v3313 = vand.u32 %v3312, 4294901760
    %3314 = vmatmul.f32.gmra.mxu0 %v3313
    %v3315 = vpop.f32.mrf.mxu0
    %v3316 = vadd.f32 0.0, %v3315
    %3317 = vdwg.mxu0
    %3318 = vmatpush.msra.mxu0 0.0
    %3319 = vmatpush.msra.mxu0 0.0
    %3320 = vmatpush.msra.mxu0 0.0
    %3321 = vmatpush.msra.mxu0 0.0
    %3322 = vmatpush.msra.mxu0 0.0
    %3323 = vmatpush.msra.mxu0 0.0
    %3324 = vmatpush.msra.mxu0 0.0
    %3325 = vmatpush.msra.mxu0 0.0
    %3326 = vmatpush.msra.mxu0 0.0
    %3327 = vmatpush.msra.mxu0 0.0
    %3328 = vmatpush.msra.mxu0 0.0
    %3329 = vmatpush.msra.mxu0 0.0
    %3330 = vmatpush.msra.mxu0 0.0
    %3331 = vmatpush.msra.mxu0 0.0
    %3332 = vmatpush.msra.mxu0 0.0
    %v3333 = vand.u32 %v3281, 4294901760
    %v3334 = vsub.f32 %v3281, %v3333
    %v3335 = vand.u32 %v3334, 4294901760
    %v3336 = vsub.f32 %v3334, %v3335
    %v3337 = vand.u32 %v3336, 4294901760
    %3338 = vmatpush.msra.mxu0 %v3337
    %v3339 = vand.u32 %v3278, 4294901760
    %3340 = vmatmul.f32.gmra.mxu0 %v3339
    %v3341 = vpop.f32.mrf.mxu0
    %v3342 = vadd.f32 %v3316, %v3341
    %3343 = vdwg.mxu0
    %3344 = vmatpush.msra.mxu0 0.0
    %3345 = vmatpush.msra.mxu0 0.0
    %3346 = vmatpush.msra.mxu0 0.0
    %3347 = vmatpush.msra.mxu0 0.0
    %3348 = vmatpush.msra.mxu0 0.0
    %3349 = vmatpush.msra.mxu0 0.0
    %3350 = vmatpush.msra.mxu0 0.0
    %3351 = vmatpush.msra.mxu0 0.0
    %3352 = vmatpush.msra.mxu0 0.0
    %3353 = vmatpush.msra.mxu0 0.0
    %3354 = vmatpush.msra.mxu0 0.0
    %3355 = vmatpush.msra.mxu0 0.0
    %3356 = vmatpush.msra.mxu0 0.0
    %3357 = vmatpush.msra.mxu0 0.0
    %3358 = vmatpush.msra.mxu0 0.0
    %v3359 = vand.u32 %v3281, 4294901760
    %v3360 = vsub.f32 %v3281, %v3359
    %3361 = vmatpush.msra.mxu0 %v3360
    %v3362 = vand.u32 %v3278, 4294901760
    %v3363 = vsub.f32 %v3278, %v3362
    %3364 = vmatmul.f32.gmra.mxu0 %v3363
    %v3365 = vpop.f32.mrf.mxu0
    %v3366 = vadd.f32 %v3342, %v3365
    %3367 = vdwg.mxu0
    %3368 = vmatpush.msra.mxu0 0.0
    %3369 = vmatpush.msra.mxu0 0.0
    %3370 = vmatpush.msra.mxu0 0.0
    %3371 = vmatpush.msra.mxu0 0.0
    %3372 = vmatpush.msra.mxu0 0.0
    %3373 = vmatpush.msra.mxu0 0.0
    %3374 = vmatpush.msra.mxu0 0.0
    %3375 = vmatpush.msra.mxu0 0.0
    %3376 = vmatpush.msra.mxu0 0.0
    %3377 = vmatpush.msra.mxu0 0.0
    %3378 = vmatpush.msra.mxu0 0.0
    %3379 = vmatpush.msra.mxu0 0.0
    %3380 = vmatpush.msra.mxu0 0.0
    %3381 = vmatpush.msra.mxu0 0.0
    %3382 = vmatpush.msra.mxu0 0.0
    %v3383 = vand.u32 %v3281, 4294901760
    %3384 = vmatpush.msra.mxu0 %v3383
    %v3385 = vand.u32 %v3278, 4294901760
    %v3386 = vsub.f32 %v3278, %v3385
    %v3387 = vand.u32 %v3386, 4294901760
    %3388 = vmatmul.f32.gmra.mxu0 %v3387
    %v3389 = vpop.f32.mrf.mxu0
    %v3390 = vadd.f32 %v3366, %v3389
    %3391 = vdwg.mxu0
    %3392 = vmatpush.msra.mxu0 0.0
    %3393 = vmatpush.msra.mxu0 0.0
    %3394 = vmatpush.msra.mxu0 0.0
    %3395 = vmatpush.msra.mxu0 0.0
    %3396 = vmatpush.msra.mxu0 0.0
    %3397 = vmatpush.msra.mxu0 0.0
    %3398 = vmatpush.msra.mxu0 0.0
    %3399 = vmatpush.msra.mxu0 0.0
    %3400 = vmatpush.msra.mxu0 0.0
    %3401 = vmatpush.msra.mxu0 0.0
    %3402 = vmatpush.msra.mxu0 0.0
    %3403 = vmatpush.msra.mxu0 0.0
    %3404 = vmatpush.msra.mxu0 0.0
    %3405 = vmatpush.msra.mxu0 0.0
    %3406 = vmatpush.msra.mxu0 0.0
    %v3407 = vand.u32 %v3281, 4294901760
    %v3408 = vsub.f32 %v3281, %v3407
    %v3409 = vand.u32 %v3408, 4294901760
    %3410 = vmatpush.msra.mxu0 %v3409
    %v3411 = vand.u32 %v3278, 4294901760
    %3412 = vmatmul.f32.gmra.mxu0 %v3411
    %v3413 = vpop.f32.mrf.mxu0
    %v3414 = vadd.f32 %v3390, %v3413
    %3415 = vdwg.mxu0
    %3416 = vmatpush.msra.mxu0 0.0
    %3417 = vmatpush.msra.mxu0 0.0
    %3418 = vmatpush.msra.mxu0 0.0
    %3419 = vmatpush.msra.mxu0 0.0
    %3420 = vmatpush.msra.mxu0 0.0
    %3421 = vmatpush.msra.mxu0 0.0
    %3422 = vmatpush.msra.mxu0 0.0
    %3423 = vmatpush.msra.mxu0 0.0
    %3424 = vmatpush.msra.mxu0 0.0
    %3425 = vmatpush.msra.mxu0 0.0
    %3426 = vmatpush.msra.mxu0 0.0
    %3427 = vmatpush.msra.mxu0 0.0
    %3428 = vmatpush.msra.mxu0 0.0
    %3429 = vmatpush.msra.mxu0 0.0
    %3430 = vmatpush.msra.mxu0 0.0
    %v3431 = vand.u32 %v3281, 4294901760
    %3432 = vmatpush.msra.mxu0 %v3431
    %v3433 = vand.u32 %v3278, 4294901760
    %3434 = vmatmul.f32.gmra.mxu0 %v3433
    %v3435 = vpop.f32.mrf.mxu0
    %v3436 = vadd.f32 %v3414, %v3435
    %3437 = vdwg.mxu0
    %3438 = vmatpush.msra.mxu0 0.0
    %3439 = vmatpush.msra.mxu0 0.0
    %3440 = vmatpush.msra.mxu0 0.0
    %3441 = vmatpush.msra.mxu0 0.0
    %3442 = vmatpush.msra.mxu0 0.0
    %3443 = vmatpush.msra.mxu0 0.0
    %3444 = vmatpush.msra.mxu0 0.0
    %3445 = vmatpush.msra.mxu0 0.0
    %3446 = vmatpush.msra.mxu0 0.0
    %3447 = vmatpush.msra.mxu0 0.0
    %3448 = vmatpush.msra.mxu0 0.0
    %3449 = vmatpush.msra.mxu0 0.0
    %3450 = vmatpush.msra.mxu0 0.0
    %3451 = vmatpush.msra.mxu0 0.0
    %3452 = vmatpush.msra.mxu0 0.0
    %v3453 = vand.u32 %v3284, 4294901760
    %3454 = vmatpush.msra.mxu0 %v3453
    %v3455 = vand.u32 %v3278, 4294901760
    %v3456 = vsub.f32 %v3278, %v3455
    %v3457 = vand.u32 %v3456, 4294901760
    %v3458 = vsub.f32 %v3456, %v3457
    %v3459 = vand.u32 %v3458, 4294901760
    %3460 = vmatmul.f32.gmra.mxu0 %v3459
    %v3461 = vpop.f32.mrf.mxu0
    %v3462 = vadd.f32 0.0, %v3461
    %3463 = vdwg.mxu0
    %3464 = vmatpush.msra.mxu0 0.0
    %3465 = vmatpush.msra.mxu0 0.0
    %3466 = vmatpush.msra.mxu0 0.0
    %3467 = vmatpush.msra.mxu0 0.0
    %3468 = vmatpush.msra.mxu0 0.0
    %3469 = vmatpush.msra.mxu0 0.0
    %3470 = vmatpush.msra.mxu0 0.0
    %3471 = vmatpush.msra.mxu0 0.0
    %3472 = vmatpush.msra.mxu0 0.0
    %3473 = vmatpush.msra.mxu0 0.0
    %3474 = vmatpush.msra.mxu0 0.0
    %3475 = vmatpush.msra.mxu0 0.0
    %3476 = vmatpush.msra.mxu0 0.0
    %3477 = vmatpush.msra.mxu0 0.0
    %3478 = vmatpush.msra.mxu0 0.0
    %v3479 = vand.u32 %v3284, 4294901760
    %v3480 = vsub.f32 %v3284, %v3479
    %v3481 = vand.u32 %v3480, 4294901760
    %v3482 = vsub.f32 %v3480, %v3481
    %v3483 = vand.u32 %v3482, 4294901760
    %3484 = vmatpush.msra.mxu0 %v3483
    %v3485 = vand.u32 %v3278, 4294901760
    %3486 = vmatmul.f32.gmra.mxu0 %v3485
    %v3487 = vpop.f32.mrf.mxu0
    %v3488 = vadd.f32 %v3462, %v3487
    %3489 = vdwg.mxu0
    %3490 = vmatpush.msra.mxu0 0.0
    %3491 = vmatpush.msra.mxu0 0.0
    %3492 = vmatpush.msra.mxu0 0.0
    %3493 = vmatpush.msra.mxu0 0.0
    %3494 = vmatpush.msra.mxu0 0.0
    %3495 = vmatpush.msra.mxu0 0.0
    %3496 = vmatpush.msra.mxu0 0.0
    %3497 = vmatpush.msra.mxu0 0.0
    %3498 = vmatpush.msra.mxu0 0.0
    %3499 = vmatpush.msra.mxu0 0.0
    %3500 = vmatpush.msra.mxu0 0.0
    %3501 = vmatpush.msra.mxu0 0.0
    %3502 = vmatpush.msra.mxu0 0.0
    %3503 = vmatpush.msra.mxu0 0.0
    %3504 = vmatpush.msra.mxu0 0.0
    %v3505 = vand.u32 %v3284, 4294901760
    %v3506 = vsub.f32 %v3284, %v3505
    %3507 = vmatpush.msra.mxu0 %v3506
    %v3508 = vand.u32 %v3278, 4294901760
    %v3509 = vsub.f32 %v3278, %v3508
    %3510 = vmatmul.f32.gmra.mxu0 %v3509
    %v3511 = vpop.f32.mrf.mxu0
    %v3512 = vadd.f32 %v3488, %v3511
    %3513 = vdwg.mxu0
    %3514 = vmatpush.msra.mxu0 0.0
    %3515 = vmatpush.msra.mxu0 0.0
    %3516 = vmatpush.msra.mxu0 0.0
    %3517 = vmatpush.msra.mxu0 0.0
    %3518 = vmatpush.msra.mxu0 0.0
    %3519 = vmatpush.msra.mxu0 0.0
    %3520 = vmatpush.msra.mxu0 0.0
    %3521 = vmatpush.msra.mxu0 0.0
    %3522 = vmatpush.msra.mxu0 0.0
    %3523 = vmatpush.msra.mxu0 0.0
    %3524 = vmatpush.msra.mxu0 0.0
    %3525 = vmatpush.msra.mxu0 0.0
    %3526 = vmatpush.msra.mxu0 0.0
    %3527 = vmatpush.msra.mxu0 0.0
    %3528 = vmatpush.msra.mxu0 0.0
    %v3529 = vand.u32 %v3284, 4294901760
    %3530 = vmatpush.msra.mxu0 %v3529
    %v3531 = vand.u32 %v3278, 4294901760
    %v3532 = vsub.f32 %v3278, %v3531
    %v3533 = vand.u32 %v3532, 4294901760
    %3534 = vmatmul.f32.gmra.mxu0 %v3533
    %v3535 = vpop.f32.mrf.mxu0
    %v3536 = vadd.f32 %v3512, %v3535
    %3537 = vdwg.mxu0
    %3538 = vmatpush.msra.mxu0 0.0
    %3539 = vmatpush.msra.mxu0 0.0
    %3540 = vmatpush.msra.mxu0 0.0
    %3541 = vmatpush.msra.mxu0 0.0
    %3542 = vmatpush.msra.mxu0 0.0
    %3543 = vmatpush.msra.mxu0 0.0
    %3544 = vmatpush.msra.mxu0 0.0
    %3545 = vmatpush.msra.mxu0 0.0
    %3546 = vmatpush.msra.mxu0 0.0
    %3547 = vmatpush.msra.mxu0 0.0
    %3548 = vmatpush.msra.mxu0 0.0
    %3549 = vmatpush.msra.mxu0 0.0
    %3550 = vmatpush.msra.mxu0 0.0
    %3551 = vmatpush.msra.mxu0 0.0
    %3552 = vmatpush.msra.mxu0 0.0
    %v3553 = vand.u32 %v3284, 4294901760
    %v3554 = vsub.f32 %v3284, %v3553
    %v3555 = vand.u32 %v3554, 4294901760
    %3556 = vmatpush.msra.mxu0 %v3555
    %v3557 = vand.u32 %v3278, 4294901760
    %3558 = vmatmul.f32.gmra.mxu0 %v3557
    %v3559 = vpop.f32.mrf.mxu0
    %v3560 = vadd.f32 %v3536, %v3559
    %3561 = vdwg.mxu0
    %3562 = vmatpush.msra.mxu0 0.0
    %3563 = vmatpush.msra.mxu0 0.0
    %3564 = vmatpush.msra.mxu0 0.0
    %3565 = vmatpush.msra.mxu0 0.0
    %3566 = vmatpush.msra.mxu0 0.0
    %3567 = vmatpush.msra.mxu0 0.0
    %3568 = vmatpush.msra.mxu0 0.0
    %3569 = vmatpush.msra.mxu0 0.0
    %3570 = vmatpush.msra.mxu0 0.0
    %3571 = vmatpush.msra.mxu0 0.0
    %3572 = vmatpush.msra.mxu0 0.0
    %3573 = vmatpush.msra.mxu0 0.0
    %3574 = vmatpush.msra.mxu0 0.0
    %3575 = vmatpush.msra.mxu0 0.0
    %3576 = vmatpush.msra.mxu0 0.0
    %v3577 = vand.u32 %v3284, 4294901760
    %3578 = vmatpush.msra.mxu0 %v3577
    %v3579 = vand.u32 %v3278, 4294901760
    %3580 = vmatmul.f32.gmra.mxu0 %v3579
    %v3581 = vpop.f32.mrf.mxu0
    %v3582 = vadd.f32 %v3560, %v3581
    %3583 = vdwg.mxu0
    %3584 = vmatpush.msra.mxu0 0.0
    %3585 = vmatpush.msra.mxu0 0.0
    %3586 = vmatpush.msra.mxu0 0.0
    %3587 = vmatpush.msra.mxu0 0.0
    %3588 = vmatpush.msra.mxu0 0.0
    %3589 = vmatpush.msra.mxu0 0.0
    %3590 = vmatpush.msra.mxu0 0.0
    %3591 = vmatpush.msra.mxu0 0.0
    %3592 = vmatpush.msra.mxu0 0.0
    %3593 = vmatpush.msra.mxu0 0.0
    %3594 = vmatpush.msra.mxu0 0.0
    %3595 = vmatpush.msra.mxu0 0.0
    %3596 = vmatpush.msra.mxu0 0.0
    %3597 = vmatpush.msra.mxu0 0.0
    %3598 = vmatpush.msra.mxu0 0.0
    %v3599 = vand.u32 %v3287, 4294901760
    %3600 = vmatpush.msra.mxu0 %v3599
    %v3601 = vand.u32 %v3278, 4294901760
    %v3602 = vsub.f32 %v3278, %v3601
    %v3603 = vand.u32 %v3602, 4294901760
    %v3604 = vsub.f32 %v3602, %v3603
    %v3605 = vand.u32 %v3604, 4294901760
    %3606 = vmatmul.f32.gmra.mxu0 %v3605
    %v3607 = vpop.f32.mrf.mxu0
    %v3608 = vadd.f32 0.0, %v3607
    %3609 = vdwg.mxu0
    %3610 = vmatpush.msra.mxu0 0.0
    %3611 = vmatpush.msra.mxu0 0.0
    %3612 = vmatpush.msra.mxu0 0.0
    %3613 = vmatpush.msra.mxu0 0.0
    %3614 = vmatpush.msra.mxu0 0.0
    %3615 = vmatpush.msra.mxu0 0.0
    %3616 = vmatpush.msra.mxu0 0.0
    %3617 = vmatpush.msra.mxu0 0.0
    %3618 = vmatpush.msra.mxu0 0.0
    %3619 = vmatpush.msra.mxu0 0.0
    %3620 = vmatpush.msra.mxu0 0.0
    %3621 = vmatpush.msra.mxu0 0.0
    %3622 = vmatpush.msra.mxu0 0.0
    %3623 = vmatpush.msra.mxu0 0.0
    %3624 = vmatpush.msra.mxu0 0.0
    %v3625 = vand.u32 %v3287, 4294901760
    %v3626 = vsub.f32 %v3287, %v3625
    %v3627 = vand.u32 %v3626, 4294901760
    %v3628 = vsub.f32 %v3626, %v3627
    %v3629 = vand.u32 %v3628, 4294901760
    %3630 = vmatpush.msra.mxu0 %v3629
    %v3631 = vand.u32 %v3278, 4294901760
    %3632 = vmatmul.f32.gmra.mxu0 %v3631
    %v3633 = vpop.f32.mrf.mxu0
    %v3634 = vadd.f32 %v3608, %v3633
    %3635 = vdwg.mxu0
    %3636 = vmatpush.msra.mxu0 0.0
    %3637 = vmatpush.msra.mxu0 0.0
    %3638 = vmatpush.msra.mxu0 0.0
    %3639 = vmatpush.msra.mxu0 0.0
    %3640 = vmatpush.msra.mxu0 0.0
    %3641 = vmatpush.msra.mxu0 0.0
    %3642 = vmatpush.msra.mxu0 0.0
    %3643 = vmatpush.msra.mxu0 0.0
    %3644 = vmatpush.msra.mxu0 0.0
    %3645 = vmatpush.msra.mxu0 0.0
    %3646 = vmatpush.msra.mxu0 0.0
    %3647 = vmatpush.msra.mxu0 0.0
    %3648 = vmatpush.msra.mxu0 0.0
    %3649 = vmatpush.msra.mxu0 0.0
    %3650 = vmatpush.msra.mxu0 0.0
    %v3651 = vand.u32 %v3287, 4294901760
    %v3652 = vsub.f32 %v3287, %v3651
    %3653 = vmatpush.msra.mxu0 %v3652
    %v3654 = vand.u32 %v3278, 4294901760
    %v3655 = vsub.f32 %v3278, %v3654
    %3656 = vmatmul.f32.gmra.mxu0 %v3655
    %v3657 = vpop.f32.mrf.mxu0
    %v3658 = vadd.f32 %v3634, %v3657
    %3659 = vdwg.mxu0
    %3660 = vmatpush.msra.mxu0 0.0
    %3661 = vmatpush.msra.mxu0 0.0
    %3662 = vmatpush.msra.mxu0 0.0
    %3663 = vmatpush.msra.mxu0 0.0
    %3664 = vmatpush.msra.mxu0 0.0
    %3665 = vmatpush.msra.mxu0 0.0
    %3666 = vmatpush.msra.mxu0 0.0
    %3667 = vmatpush.msra.mxu0 0.0
    %3668 = vmatpush.msra.mxu0 0.0
    %3669 = vmatpush.msra.mxu0 0.0
    %3670 = vmatpush.msra.mxu0 0.0
    %3671 = vmatpush.msra.mxu0 0.0
    %3672 = vmatpush.msra.mxu0 0.0
    %3673 = vmatpush.msra.mxu0 0.0
    %3674 = vmatpush.msra.mxu0 0.0
    %v3675 = vand.u32 %v3287, 4294901760
    %3676 = vmatpush.msra.mxu0 %v3675
    %v3677 = vand.u32 %v3278, 4294901760
    %v3678 = vsub.f32 %v3278, %v3677
    %v3679 = vand.u32 %v3678, 4294901760
    %3680 = vmatmul.f32.gmra.mxu0 %v3679
    %v3681 = vpop.f32.mrf.mxu0
    %v3682 = vadd.f32 %v3658, %v3681
    %3683 = vdwg.mxu0
    %3684 = vmatpush.msra.mxu0 0.0
    %3685 = vmatpush.msra.mxu0 0.0
    %3686 = vmatpush.msra.mxu0 0.0
    %3687 = vmatpush.msra.mxu0 0.0
    %3688 = vmatpush.msra.mxu0 0.0
    %3689 = vmatpush.msra.mxu0 0.0
    %3690 = vmatpush.msra.mxu0 0.0
    %3691 = vmatpush.msra.mxu0 0.0
    %3692 = vmatpush.msra.mxu0 0.0
    %3693 = vmatpush.msra.mxu0 0.0
    %3694 = vmatpush.msra.mxu0 0.0
    %3695 = vmatpush.msra.mxu0 0.0
    %3696 = vmatpush.msra.mxu0 0.0
    %3697 = vmatpush.msra.mxu0 0.0
    %3698 = vmatpush.msra.mxu0 0.0
    %v3699 = vand.u32 %v3287, 4294901760
    %v3700 = vsub.f32 %v3287, %v3699
    %v3701 = vand.u32 %v3700, 4294901760
    %3702 = vmatpush.msra.mxu0 %v3701
    %v3703 = vand.u32 %v3278, 4294901760
    %3704 = vmatmul.f32.gmra.mxu0 %v3703
    %v3705 = vpop.f32.mrf.mxu0
    %v3706 = vadd.f32 %v3682, %v3705
    %3707 = vdwg.mxu0
    %3708 = vmatpush.msra.mxu0 0.0
    %3709 = vmatpush.msra.mxu0 0.0
    %3710 = vmatpush.msra.mxu0 0.0
    %3711 = vmatpush.msra.mxu0 0.0
    %3712 = vmatpush.msra.mxu0 0.0
    %3713 = vmatpush.msra.mxu0 0.0
    %3714 = vmatpush.msra.mxu0 0.0
    %3715 = vmatpush.msra.mxu0 0.0
    %3716 = vmatpush.msra.mxu0 0.0
    %3717 = vmatpush.msra.mxu0 0.0
    %3718 = vmatpush.msra.mxu0 0.0
    %3719 = vmatpush.msra.mxu0 0.0
    %3720 = vmatpush.msra.mxu0 0.0
    %3721 = vmatpush.msra.mxu0 0.0
    %3722 = vmatpush.msra.mxu0 0.0
    %v3723 = vand.u32 %v3287, 4294901760
    %3724 = vmatpush.msra.mxu0 %v3723
    %v3725 = vand.u32 %v3278, 4294901760
    %3726 = vmatmul.f32.gmra.mxu0 %v3725
    %v3727 = vpop.f32.mrf.mxu0
    %v3728 = vadd.f32 %v3706, %v3727
    %3729 = vdwg.mxu0
    %3730 = vmatpush.msra.mxu0 0.0
    %3731 = vmatpush.msra.mxu0 0.0
    %3732 = vmatpush.msra.mxu0 0.0
    %3733 = vmatpush.msra.mxu0 0.0
    %3734 = vmatpush.msra.mxu0 0.0
    %3735 = vmatpush.msra.mxu0 0.0
    %3736 = vmatpush.msra.mxu0 0.0
    %3737 = vmatpush.msra.mxu0 0.0
    %3738 = vmatpush.msra.mxu0 0.0
    %3739 = vmatpush.msra.mxu0 0.0
    %3740 = vmatpush.msra.mxu0 0.0
    %3741 = vmatpush.msra.mxu0 0.0
    %3742 = vmatpush.msra.mxu0 0.0
    %3743 = vmatpush.msra.mxu0 0.0
    %3744 = vmatpush.msra.mxu0 0.0
    %v3745 = vand.u32 %v3290, 4294901760
    %3746 = vmatpush.msra.mxu0 %v3745
    %v3747 = vand.u32 %v3278, 4294901760
    %v3748 = vsub.f32 %v3278, %v3747
    %v3749 = vand.u32 %v3748, 4294901760
    %v3750 = vsub.f32 %v3748, %v3749
    %v3751 = vand.u32 %v3750, 4294901760
    %3752 = vmatmul.f32.gmra.mxu0 %v3751
    %v3753 = vpop.f32.mrf.mxu0
    %v3754 = vadd.f32 0.0, %v3753
    %3755 = vdwg.mxu0
    %3756 = vmatpush.msra.mxu0 0.0
    %3757 = vmatpush.msra.mxu0 0.0
    %3758 = vmatpush.msra.mxu0 0.0
    %3759 = vmatpush.msra.mxu0 0.0
    %3760 = vmatpush.msra.mxu0 0.0
    %3761 = vmatpush.msra.mxu0 0.0
    %3762 = vmatpush.msra.mxu0 0.0
    %3763 = vmatpush.msra.mxu0 0.0
    %3764 = vmatpush.msra.mxu0 0.0
    %3765 = vmatpush.msra.mxu0 0.0
    %3766 = vmatpush.msra.mxu0 0.0
    %3767 = vmatpush.msra.mxu0 0.0
    %3768 = vmatpush.msra.mxu0 0.0
    %3769 = vmatpush.msra.mxu0 0.0
    %3770 = vmatpush.msra.mxu0 0.0
    %v3771 = vand.u32 %v3290, 4294901760
    %v3772 = vsub.f32 %v3290, %v3771
    %v3773 = vand.u32 %v3772, 4294901760
    %v3774 = vsub.f32 %v3772, %v3773
    %v3775 = vand.u32 %v3774, 4294901760
    %3776 = vmatpush.msra.mxu0 %v3775
    %v3777 = vand.u32 %v3278, 4294901760
    %3778 = vmatmul.f32.gmra.mxu0 %v3777
    %v3779 = vpop.f32.mrf.mxu0
    %v3780 = vadd.f32 %v3754, %v3779
    %3781 = vdwg.mxu0
    %3782 = vmatpush.msra.mxu0 0.0
    %3783 = vmatpush.msra.mxu0 0.0
    %3784 = vmatpush.msra.mxu0 0.0
    %3785 = vmatpush.msra.mxu0 0.0
    %3786 = vmatpush.msra.mxu0 0.0
    %3787 = vmatpush.msra.mxu0 0.0
    %3788 = vmatpush.msra.mxu0 0.0
    %3789 = vmatpush.msra.mxu0 0.0
    %3790 = vmatpush.msra.mxu0 0.0
    %3791 = vmatpush.msra.mxu0 0.0
    %3792 = vmatpush.msra.mxu0 0.0
    %3793 = vmatpush.msra.mxu0 0.0
    %3794 = vmatpush.msra.mxu0 0.0
    %3795 = vmatpush.msra.mxu0 0.0
    %3796 = vmatpush.msra.mxu0 0.0
    %v3797 = vand.u32 %v3290, 4294901760
    %v3798 = vsub.f32 %v3290, %v3797
    %3799 = vmatpush.msra.mxu0 %v3798
    %v3800 = vand.u32 %v3278, 4294901760
    %v3801 = vsub.f32 %v3278, %v3800
    %3802 = vmatmul.f32.gmra.mxu0 %v3801
    %v3803 = vpop.f32.mrf.mxu0
    %v3804 = vadd.f32 %v3780, %v3803
    %3805 = vdwg.mxu0
    %3806 = vmatpush.msra.mxu0 0.0
    %3807 = vmatpush.msra.mxu0 0.0
    %3808 = vmatpush.msra.mxu0 0.0
    %3809 = vmatpush.msra.mxu0 0.0
    %3810 = vmatpush.msra.mxu0 0.0
    %3811 = vmatpush.msra.mxu0 0.0
    %3812 = vmatpush.msra.mxu0 0.0
    %3813 = vmatpush.msra.mxu0 0.0
    %3814 = vmatpush.msra.mxu0 0.0
    %3815 = vmatpush.msra.mxu0 0.0
    %3816 = vmatpush.msra.mxu0 0.0
    %3817 = vmatpush.msra.mxu0 0.0
    %3818 = vmatpush.msra.mxu0 0.0
    %3819 = vmatpush.msra.mxu0 0.0
    %3820 = vmatpush.msra.mxu0 0.0
    %v3821 = vand.u32 %v3290, 4294901760
    %3822 = vmatpush.msra.mxu0 %v3821
    %v3823 = vand.u32 %v3278, 4294901760
    %v3824 = vsub.f32 %v3278, %v3823
    %v3825 = vand.u32 %v3824, 4294901760
    %3826 = vmatmul.f32.gmra.mxu0 %v3825
    %v3827 = vpop.f32.mrf.mxu0
    %v3828 = vadd.f32 %v3804, %v3827
    %3829 = vdwg.mxu0
    %3830 = vmatpush.msra.mxu0 0.0
    %3831 = vmatpush.msra.mxu0 0.0
    %3832 = vmatpush.msra.mxu0 0.0
    %3833 = vmatpush.msra.mxu0 0.0
    %3834 = vmatpush.msra.mxu0 0.0
    %3835 = vmatpush.msra.mxu0 0.0
    %3836 = vmatpush.msra.mxu0 0.0
    %3837 = vmatpush.msra.mxu0 0.0
    %3838 = vmatpush.msra.mxu0 0.0
    %3839 = vmatpush.msra.mxu0 0.0
    %3840 = vmatpush.msra.mxu0 0.0
    %3841 = vmatpush.msra.mxu0 0.0
    %3842 = vmatpush.msra.mxu0 0.0
    %3843 = vmatpush.msra.mxu0 0.0
    %3844 = vmatpush.msra.mxu0 0.0
    %v3845 = vand.u32 %v3290, 4294901760
    %v3846 = vsub.f32 %v3290, %v3845
    %v3847 = vand.u32 %v3846, 4294901760
    %3848 = vmatpush.msra.mxu0 %v3847
    %v3849 = vand.u32 %v3278, 4294901760
    %3850 = vmatmul.f32.gmra.mxu0 %v3849
    %v3851 = vpop.f32.mrf.mxu0
    %v3852 = vadd.f32 %v3828, %v3851
    %3853 = vdwg.mxu0
    %3854 = vmatpush.msra.mxu0 0.0
    %3855 = vmatpush.msra.mxu0 0.0
    %3856 = vmatpush.msra.mxu0 0.0
    %3857 = vmatpush.msra.mxu0 0.0
    %3858 = vmatpush.msra.mxu0 0.0
    %3859 = vmatpush.msra.mxu0 0.0
    %3860 = vmatpush.msra.mxu0 0.0
    %3861 = vmatpush.msra.mxu0 0.0
    %3862 = vmatpush.msra.mxu0 0.0
    %3863 = vmatpush.msra.mxu0 0.0
    %3864 = vmatpush.msra.mxu0 0.0
    %3865 = vmatpush.msra.mxu0 0.0
    %3866 = vmatpush.msra.mxu0 0.0
    %3867 = vmatpush.msra.mxu0 0.0
    %3868 = vmatpush.msra.mxu0 0.0
    %v3869 = vand.u32 %v3290, 4294901760
    %3870 = vmatpush.msra.mxu0 %v3869
    %v3871 = vand.u32 %v3278, 4294901760
    %3872 = vmatmul.f32.gmra.mxu0 %v3871
    %v3873 = vpop.f32.mrf.mxu0
    %v3874 = vadd.f32 %v3852, %v3873
    %3875 = vdwg.mxu0
    %s3876 = sld [smem:[#allocation2 + $0x3]]
    %vm3877 = vcmp.gt.f32.partialorder %v3436, 0.0
    %vm3878 = vcmp.gt.f32.partialorder %v3582, 0.0
    %vm3879 = vcmp.gt.f32.partialorder %v3728, 0.0
    %vm3880 = vcmp.gt.f32.partialorder %v3874, 0.0
    %v3881 = vstv %s3876
    %v3882 = vmul.f32 %v3881, %v3436
    %v3883 = vmul.f32 %v3881, %v3582
    %v3884 = vmul.f32 %v3881, %v3728
    %v3885 = vmul.f32 %v3881, %v3874
    %v3886 = vsel %vm3877, %v3436, %v3882
    %v3887 = vsel %vm3878, %v3582, %v3883
    %v3888 = vsel %vm3879, %v3728, %v3884
    %v3889 = vsel %vm3880, %v3874, %v3885
    %v3890 = vadd.f32 %v3886, %v2160
    %v3891 = vadd.f32 %v3887, %v2306
    %v3892 = vadd.f32 %v3888, %v2452
    %v3893 = vadd.f32 %v3889, %v2598
    %3894 = vxpose.xlu0.b32.start [1/16] %v36, 128
    %3895 = vxpose.xlu0.b32.cont [2/16] 0.0, 128
    %3896 = vxpose.xlu0.b32.cont [3/16] 0.0, 128
    %3897 = vxpose.xlu0.b32.cont [4/16] 0.0, 128
    %3898 = vxpose.xlu0.b32.cont [5/16] 0.0, 128
    %3899 = vxpose.xlu0.b32.cont [6/16] 0.0, 128
    %3900 = vxpose.xlu0.b32.cont [7/16] 0.0, 128
    %3901 = vxpose.xlu0.b32.cont [8/16] 0.0, 128
    %3902 = vxpose.xlu0.b32.cont [9/16] 0.0, 128
    %3903 = vxpose.xlu0.b32.cont [10/16] 0.0, 128
    %3904 = vxpose.xlu0.b32.cont [11/16] 0.0, 128
    %3905 = vxpose.xlu0.b32.cont [12/16] 0.0, 128
    %3906 = vxpose.xlu0.b32.cont [13/16] 0.0, 128
    %3907 = vxpose.xlu0.b32.cont [14/16] 0.0, 128
    %3908 = vxpose.xlu0.b32.cont [15/16] 0.0, 128
    %3909 = vxpose.xlu0.b32.end [16/16] 0.0, 128
    %v3910 = vpop.trf.xlu0
    %v3911 = vpop.trf.xlu0
    %v3912 = vpop.trf.xlu0
    %v3913 = vpop.trf.xlu0
    %v3914 = vpop.trf.xlu0
    %v3915 = vpop.trf.xlu0
    %v3916 = vpop.trf.xlu0
    %v3917 = vpop.trf.xlu0
    %v3918 = vpop.trf.xlu0
    %v3919 = vpop.trf.xlu0
    %v3920 = vpop.trf.xlu0
    %v3921 = vpop.trf.xlu0
    %v3922 = vpop.trf.xlu0
    %v3923 = vpop.trf.xlu0
    %v3924 = vpop.trf.xlu0
    %v3925 = vpop.trf.xlu0
    %v3927 = vsel %vm78, %v3910, 0
    %v3930 = vsel %vm82, %v3890, 0
    %v3933 = vsel %vm82, %v3891, 0
    %v3936 = vsel %vm82, %v3892, 0
    %v3939 = vsel %vm82, %v3893, 0
    %3941 = vmatpush.msra.mxu0 0.0
    %3942 = vmatpush.msra.mxu0 0.0
    %3943 = vmatpush.msra.mxu0 0.0
    %3944 = vmatpush.msra.mxu0 0.0
    %3945 = vmatpush.msra.mxu0 0.0
    %3946 = vmatpush.msra.mxu0 0.0
    %3947 = vmatpush.msra.mxu0 0.0
    %3948 = vmatpush.msra.mxu0 0.0
    %3949 = vmatpush.msra.mxu0 0.0
    %3950 = vmatpush.msra.mxu0 0.0
    %3951 = vmatpush.msra.mxu0 0.0
    %3952 = vmatpush.msra.mxu0 0.0
    %3953 = vmatpush.msra.mxu0 0.0
    %3954 = vmatpush.msra.mxu0 0.0
    %3955 = vmatpush.msra.mxu0 0.0
    %v3956 = vand.u32 %v3930, 4294901760
    %3957 = vmatpush.msra.mxu0 %v3956
    %v3958 = vand.u32 %v3927, 4294901760
    %v3959 = vsub.f32 %v3927, %v3958
    %v3960 = vand.u32 %v3959, 4294901760
    %v3961 = vsub.f32 %v3959, %v3960
    %v3962 = vand.u32 %v3961, 4294901760
    %3963 = vmatmul.f32.gmra.mxu0 %v3962
    %v3964 = vpop.f32.mrf.mxu0
    %v3965 = vadd.f32 0.0, %v3964
    %3966 = vdwg.mxu0
    %3967 = vmatpush.msra.mxu0 0.0
    %3968 = vmatpush.msra.mxu0 0.0
    %3969 = vmatpush.msra.mxu0 0.0
    %3970 = vmatpush.msra.mxu0 0.0
    %3971 = vmatpush.msra.mxu0 0.0
    %3972 = vmatpush.msra.mxu0 0.0
    %3973 = vmatpush.msra.mxu0 0.0
    %3974 = vmatpush.msra.mxu0 0.0
    %3975 = vmatpush.msra.mxu0 0.0
    %3976 = vmatpush.msra.mxu0 0.0
    %3977 = vmatpush.msra.mxu0 0.0
    %3978 = vmatpush.msra.mxu0 0.0
    %3979 = vmatpush.msra.mxu0 0.0
    %3980 = vmatpush.msra.mxu0 0.0
    %3981 = vmatpush.msra.mxu0 0.0
    %v3982 = vand.u32 %v3930, 4294901760
    %v3983 = vsub.f32 %v3930, %v3982
    %v3984 = vand.u32 %v3983, 4294901760
    %v3985 = vsub.f32 %v3983, %v3984
    %v3986 = vand.u32 %v3985, 4294901760
    %3987 = vmatpush.msra.mxu0 %v3986
    %v3988 = vand.u32 %v3927, 4294901760
    %3989 = vmatmul.f32.gmra.mxu0 %v3988
    %v3990 = vpop.f32.mrf.mxu0
    %v3991 = vadd.f32 %v3965, %v3990
    %3992 = vdwg.mxu0
    %3993 = vmatpush.msra.mxu0 0.0
    %3994 = vmatpush.msra.mxu0 0.0
    %3995 = vmatpush.msra.mxu0 0.0
    %3996 = vmatpush.msra.mxu0 0.0
    %3997 = vmatpush.msra.mxu0 0.0
    %3998 = vmatpush.msra.mxu0 0.0
    %3999 = vmatpush.msra.mxu0 0.0
    %4000 = vmatpush.msra.mxu0 0.0
    %4001 = vmatpush.msra.mxu0 0.0
    %4002 = vmatpush.msra.mxu0 0.0
    %4003 = vmatpush.msra.mxu0 0.0
    %4004 = vmatpush.msra.mxu0 0.0
    %4005 = vmatpush.msra.mxu0 0.0
    %4006 = vmatpush.msra.mxu0 0.0
    %4007 = vmatpush.msra.mxu0 0.0
    %v4008 = vand.u32 %v3930, 4294901760
    %v4009 = vsub.f32 %v3930, %v4008
    %4010 = vmatpush.msra.mxu0 %v4009
    %v4011 = vand.u32 %v3927, 4294901760
    %v4012 = vsub.f32 %v3927, %v4011
    %4013 = vmatmul.f32.gmra.mxu0 %v4012
    %v4014 = vpop.f32.mrf.mxu0
    %v4015 = vadd.f32 %v3991, %v4014
    %4016 = vdwg.mxu0
    %4017 = vmatpush.msra.mxu0 0.0
    %4018 = vmatpush.msra.mxu0 0.0
    %4019 = vmatpush.msra.mxu0 0.0
    %4020 = vmatpush.msra.mxu0 0.0
    %4021 = vmatpush.msra.mxu0 0.0
    %4022 = vmatpush.msra.mxu0 0.0
    %4023 = vmatpush.msra.mxu0 0.0
    %4024 = vmatpush.msra.mxu0 0.0
    %4025 = vmatpush.msra.mxu0 0.0
    %4026 = vmatpush.msra.mxu0 0.0
    %4027 = vmatpush.msra.mxu0 0.0
    %4028 = vmatpush.msra.mxu0 0.0
    %4029 = vmatpush.msra.mxu0 0.0
    %4030 = vmatpush.msra.mxu0 0.0
    %4031 = vmatpush.msra.mxu0 0.0
    %v4032 = vand.u32 %v3930, 4294901760
    %4033 = vmatpush.msra.mxu0 %v4032
    %v4034 = vand.u32 %v3927, 4294901760
    %v4035 = vsub.f32 %v3927, %v4034
    %v4036 = vand.u32 %v4035, 4294901760
    %4037 = vmatmul.f32.gmra.mxu0 %v4036
    %v4038 = vpop.f32.mrf.mxu0
    %v4039 = vadd.f32 %v4015, %v4038
    %4040 = vdwg.mxu0
    %4041 = vmatpush.msra.mxu0 0.0
    %4042 = vmatpush.msra.mxu0 0.0
    %4043 = vmatpush.msra.mxu0 0.0
    %4044 = vmatpush.msra.mxu0 0.0
    %4045 = vmatpush.msra.mxu0 0.0
    %4046 = vmatpush.msra.mxu0 0.0
    %4047 = vmatpush.msra.mxu0 0.0
    %4048 = vmatpush.msra.mxu0 0.0
    %4049 = vmatpush.msra.mxu0 0.0
    %4050 = vmatpush.msra.mxu0 0.0
    %4051 = vmatpush.msra.mxu0 0.0
    %4052 = vmatpush.msra.mxu0 0.0
    %4053 = vmatpush.msra.mxu0 0.0
    %4054 = vmatpush.msra.mxu0 0.0
    %4055 = vmatpush.msra.mxu0 0.0
    %v4056 = vand.u32 %v3930, 4294901760
    %v4057 = vsub.f32 %v3930, %v4056
    %v4058 = vand.u32 %v4057, 4294901760
    %4059 = vmatpush.msra.mxu0 %v4058
    %v4060 = vand.u32 %v3927, 4294901760
    %4061 = vmatmul.f32.gmra.mxu0 %v4060
    %v4062 = vpop.f32.mrf.mxu0
    %v4063 = vadd.f32 %v4039, %v4062
    %4064 = vdwg.mxu0
    %4065 = vmatpush.msra.mxu0 0.0
    %4066 = vmatpush.msra.mxu0 0.0
    %4067 = vmatpush.msra.mxu0 0.0
    %4068 = vmatpush.msra.mxu0 0.0
    %4069 = vmatpush.msra.mxu0 0.0
    %4070 = vmatpush.msra.mxu0 0.0
    %4071 = vmatpush.msra.mxu0 0.0
    %4072 = vmatpush.msra.mxu0 0.0
    %4073 = vmatpush.msra.mxu0 0.0
    %4074 = vmatpush.msra.mxu0 0.0
    %4075 = vmatpush.msra.mxu0 0.0
    %4076 = vmatpush.msra.mxu0 0.0
    %4077 = vmatpush.msra.mxu0 0.0
    %4078 = vmatpush.msra.mxu0 0.0
    %4079 = vmatpush.msra.mxu0 0.0
    %v4080 = vand.u32 %v3930, 4294901760
    %4081 = vmatpush.msra.mxu0 %v4080
    %v4082 = vand.u32 %v3927, 4294901760
    %4083 = vmatmul.f32.gmra.mxu0 %v4082
    %v4084 = vpop.f32.mrf.mxu0
    %v4085 = vadd.f32 %v4063, %v4084
    %4086 = vdwg.mxu0
    %4087 = vmatpush.msra.mxu0 0.0
    %4088 = vmatpush.msra.mxu0 0.0
    %4089 = vmatpush.msra.mxu0 0.0
    %4090 = vmatpush.msra.mxu0 0.0
    %4091 = vmatpush.msra.mxu0 0.0
    %4092 = vmatpush.msra.mxu0 0.0
    %4093 = vmatpush.msra.mxu0 0.0
    %4094 = vmatpush.msra.mxu0 0.0
    %4095 = vmatpush.msra.mxu0 0.0
    %4096 = vmatpush.msra.mxu0 0.0
    %4097 = vmatpush.msra.mxu0 0.0
    %4098 = vmatpush.msra.mxu0 0.0
    %4099 = vmatpush.msra.mxu0 0.0
    %4100 = vmatpush.msra.mxu0 0.0
    %4101 = vmatpush.msra.mxu0 0.0
    %v4102 = vand.u32 %v3933, 4294901760
    %4103 = vmatpush.msra.mxu0 %v4102
    %v4104 = vand.u32 %v3927, 4294901760
    %v4105 = vsub.f32 %v3927, %v4104
    %v4106 = vand.u32 %v4105, 4294901760
    %v4107 = vsub.f32 %v4105, %v4106
    %v4108 = vand.u32 %v4107, 4294901760
    %4109 = vmatmul.f32.gmra.mxu0 %v4108
    %v4110 = vpop.f32.mrf.mxu0
    %v4111 = vadd.f32 0.0, %v4110
    %4112 = vdwg.mxu0
    %4113 = vmatpush.msra.mxu0 0.0
    %4114 = vmatpush.msra.mxu0 0.0
    %4115 = vmatpush.msra.mxu0 0.0
    %4116 = vmatpush.msra.mxu0 0.0
    %4117 = vmatpush.msra.mxu0 0.0
    %4118 = vmatpush.msra.mxu0 0.0
    %4119 = vmatpush.msra.mxu0 0.0
    %4120 = vmatpush.msra.mxu0 0.0
    %4121 = vmatpush.msra.mxu0 0.0
    %4122 = vmatpush.msra.mxu0 0.0
    %4123 = vmatpush.msra.mxu0 0.0
    %4124 = vmatpush.msra.mxu0 0.0
    %4125 = vmatpush.msra.mxu0 0.0
    %4126 = vmatpush.msra.mxu0 0.0
    %4127 = vmatpush.msra.mxu0 0.0
    %v4128 = vand.u32 %v3933, 4294901760
    %v4129 = vsub.f32 %v3933, %v4128
    %v4130 = vand.u32 %v4129, 4294901760
    %v4131 = vsub.f32 %v4129, %v4130
    %v4132 = vand.u32 %v4131, 4294901760
    %4133 = vmatpush.msra.mxu0 %v4132
    %v4134 = vand.u32 %v3927, 4294901760
    %4135 = vmatmul.f32.gmra.mxu0 %v4134
    %v4136 = vpop.f32.mrf.mxu0
    %v4137 = vadd.f32 %v4111, %v4136
    %4138 = vdwg.mxu0
    %4139 = vmatpush.msra.mxu0 0.0
    %4140 = vmatpush.msra.mxu0 0.0
    %4141 = vmatpush.msra.mxu0 0.0
    %4142 = vmatpush.msra.mxu0 0.0
    %4143 = vmatpush.msra.mxu0 0.0
    %4144 = vmatpush.msra.mxu0 0.0
    %4145 = vmatpush.msra.mxu0 0.0
    %4146 = vmatpush.msra.mxu0 0.0
    %4147 = vmatpush.msra.mxu0 0.0
    %4148 = vmatpush.msra.mxu0 0.0
    %4149 = vmatpush.msra.mxu0 0.0
    %4150 = vmatpush.msra.mxu0 0.0
    %4151 = vmatpush.msra.mxu0 0.0
    %4152 = vmatpush.msra.mxu0 0.0
    %4153 = vmatpush.msra.mxu0 0.0
    %v4154 = vand.u32 %v3933, 4294901760
    %v4155 = vsub.f32 %v3933, %v4154
    %4156 = vmatpush.msra.mxu0 %v4155
    %v4157 = vand.u32 %v3927, 4294901760
    %v4158 = vsub.f32 %v3927, %v4157
    %4159 = vmatmul.f32.gmra.mxu0 %v4158
    %v4160 = vpop.f32.mrf.mxu0
    %v4161 = vadd.f32 %v4137, %v4160
    %4162 = vdwg.mxu0
    %4163 = vmatpush.msra.mxu0 0.0
    %4164 = vmatpush.msra.mxu0 0.0
    %4165 = vmatpush.msra.mxu0 0.0
    %4166 = vmatpush.msra.mxu0 0.0
    %4167 = vmatpush.msra.mxu0 0.0
    %4168 = vmatpush.msra.mxu0 0.0
    %4169 = vmatpush.msra.mxu0 0.0
    %4170 = vmatpush.msra.mxu0 0.0
    %4171 = vmatpush.msra.mxu0 0.0
    %4172 = vmatpush.msra.mxu0 0.0
    %4173 = vmatpush.msra.mxu0 0.0
    %4174 = vmatpush.msra.mxu0 0.0
    %4175 = vmatpush.msra.mxu0 0.0
    %4176 = vmatpush.msra.mxu0 0.0
    %4177 = vmatpush.msra.mxu0 0.0
    %v4178 = vand.u32 %v3933, 4294901760
    %4179 = vmatpush.msra.mxu0 %v4178
    %v4180 = vand.u32 %v3927, 4294901760
    %v4181 = vsub.f32 %v3927, %v4180
    %v4182 = vand.u32 %v4181, 4294901760
    %4183 = vmatmul.f32.gmra.mxu0 %v4182
    %v4184 = vpop.f32.mrf.mxu0
    %v4185 = vadd.f32 %v4161, %v4184
    %4186 = vdwg.mxu0
    %4187 = vmatpush.msra.mxu0 0.0
    %4188 = vmatpush.msra.mxu0 0.0
    %4189 = vmatpush.msra.mxu0 0.0
    %4190 = vmatpush.msra.mxu0 0.0
    %4191 = vmatpush.msra.mxu0 0.0
    %4192 = vmatpush.msra.mxu0 0.0
    %4193 = vmatpush.msra.mxu0 0.0
    %4194 = vmatpush.msra.mxu0 0.0
    %4195 = vmatpush.msra.mxu0 0.0
    %4196 = vmatpush.msra.mxu0 0.0
    %4197 = vmatpush.msra.mxu0 0.0
    %4198 = vmatpush.msra.mxu0 0.0
    %4199 = vmatpush.msra.mxu0 0.0
    %4200 = vmatpush.msra.mxu0 0.0
    %4201 = vmatpush.msra.mxu0 0.0
    %v4202 = vand.u32 %v3933, 4294901760
    %v4203 = vsub.f32 %v3933, %v4202
    %v4204 = vand.u32 %v4203, 4294901760
    %4205 = vmatpush.msra.mxu0 %v4204
    %v4206 = vand.u32 %v3927, 4294901760
    %4207 = vmatmul.f32.gmra.mxu0 %v4206
    %v4208 = vpop.f32.mrf.mxu0
    %v4209 = vadd.f32 %v4185, %v4208
    %4210 = vdwg.mxu0
    %4211 = vmatpush.msra.mxu0 0.0
    %4212 = vmatpush.msra.mxu0 0.0
    %4213 = vmatpush.msra.mxu0 0.0
    %4214 = vmatpush.msra.mxu0 0.0
    %4215 = vmatpush.msra.mxu0 0.0
    %4216 = vmatpush.msra.mxu0 0.0
    %4217 = vmatpush.msra.mxu0 0.0
    %4218 = vmatpush.msra.mxu0 0.0
    %4219 = vmatpush.msra.mxu0 0.0
    %4220 = vmatpush.msra.mxu0 0.0
    %4221 = vmatpush.msra.mxu0 0.0
    %4222 = vmatpush.msra.mxu0 0.0
    %4223 = vmatpush.msra.mxu0 0.0
    %4224 = vmatpush.msra.mxu0 0.0
    %4225 = vmatpush.msra.mxu0 0.0
    %v4226 = vand.u32 %v3933, 4294901760
    %4227 = vmatpush.msra.mxu0 %v4226
    %v4228 = vand.u32 %v3927, 4294901760
    %4229 = vmatmul.f32.gmra.mxu0 %v4228
    %v4230 = vpop.f32.mrf.mxu0
    %v4231 = vadd.f32 %v4209, %v4230
    %4232 = vdwg.mxu0
    %4233 = vmatpush.msra.mxu0 0.0
    %4234 = vmatpush.msra.mxu0 0.0
    %4235 = vmatpush.msra.mxu0 0.0
    %4236 = vmatpush.msra.mxu0 0.0
    %4237 = vmatpush.msra.mxu0 0.0
    %4238 = vmatpush.msra.mxu0 0.0
    %4239 = vmatpush.msra.mxu0 0.0
    %4240 = vmatpush.msra.mxu0 0.0
    %4241 = vmatpush.msra.mxu0 0.0
    %4242 = vmatpush.msra.mxu0 0.0
    %4243 = vmatpush.msra.mxu0 0.0
    %4244 = vmatpush.msra.mxu0 0.0
    %4245 = vmatpush.msra.mxu0 0.0
    %4246 = vmatpush.msra.mxu0 0.0
    %4247 = vmatpush.msra.mxu0 0.0
    %v4248 = vand.u32 %v3936, 4294901760
    %4249 = vmatpush.msra.mxu0 %v4248
    %v4250 = vand.u32 %v3927, 4294901760
    %v4251 = vsub.f32 %v3927, %v4250
    %v4252 = vand.u32 %v4251, 4294901760
    %v4253 = vsub.f32 %v4251, %v4252
    %v4254 = vand.u32 %v4253, 4294901760
    %4255 = vmatmul.f32.gmra.mxu0 %v4254
    %v4256 = vpop.f32.mrf.mxu0
    %v4257 = vadd.f32 0.0, %v4256
    %4258 = vdwg.mxu0
    %4259 = vmatpush.msra.mxu0 0.0
    %4260 = vmatpush.msra.mxu0 0.0
    %4261 = vmatpush.msra.mxu0 0.0
    %4262 = vmatpush.msra.mxu0 0.0
    %4263 = vmatpush.msra.mxu0 0.0
    %4264 = vmatpush.msra.mxu0 0.0
    %4265 = vmatpush.msra.mxu0 0.0
    %4266 = vmatpush.msra.mxu0 0.0
    %4267 = vmatpush.msra.mxu0 0.0
    %4268 = vmatpush.msra.mxu0 0.0
    %4269 = vmatpush.msra.mxu0 0.0
    %4270 = vmatpush.msra.mxu0 0.0
    %4271 = vmatpush.msra.mxu0 0.0
    %4272 = vmatpush.msra.mxu0 0.0
    %4273 = vmatpush.msra.mxu0 0.0
    %v4274 = vand.u32 %v3936, 4294901760
    %v4275 = vsub.f32 %v3936, %v4274
    %v4276 = vand.u32 %v4275, 4294901760
    %v4277 = vsub.f32 %v4275, %v4276
    %v4278 = vand.u32 %v4277, 4294901760
    %4279 = vmatpush.msra.mxu0 %v4278
    %v4280 = vand.u32 %v3927, 4294901760
    %4281 = vmatmul.f32.gmra.mxu0 %v4280
    %v4282 = vpop.f32.mrf.mxu0
    %v4283 = vadd.f32 %v4257, %v4282
    %4284 = vdwg.mxu0
    %4285 = vmatpush.msra.mxu0 0.0
    %4286 = vmatpush.msra.mxu0 0.0
    %4287 = vmatpush.msra.mxu0 0.0
    %4288 = vmatpush.msra.mxu0 0.0
    %4289 = vmatpush.msra.mxu0 0.0
    %4290 = vmatpush.msra.mxu0 0.0
    %4291 = vmatpush.msra.mxu0 0.0
    %4292 = vmatpush.msra.mxu0 0.0
    %4293 = vmatpush.msra.mxu0 0.0
    %4294 = vmatpush.msra.mxu0 0.0
    %4295 = vmatpush.msra.mxu0 0.0
    %4296 = vmatpush.msra.mxu0 0.0
    %4297 = vmatpush.msra.mxu0 0.0
    %4298 = vmatpush.msra.mxu0 0.0
    %4299 = vmatpush.msra.mxu0 0.0
    %v4300 = vand.u32 %v3936, 4294901760
    %v4301 = vsub.f32 %v3936, %v4300
    %4302 = vmatpush.msra.mxu0 %v4301
    %v4303 = vand.u32 %v3927, 4294901760
    %v4304 = vsub.f32 %v3927, %v4303
    %4305 = vmatmul.f32.gmra.mxu0 %v4304
    %v4306 = vpop.f32.mrf.mxu0
    %v4307 = vadd.f32 %v4283, %v4306
    %4308 = vdwg.mxu0
    %4309 = vmatpush.msra.mxu0 0.0
    %4310 = vmatpush.msra.mxu0 0.0
    %4311 = vmatpush.msra.mxu0 0.0
    %4312 = vmatpush.msra.mxu0 0.0
    %4313 = vmatpush.msra.mxu0 0.0
    %4314 = vmatpush.msra.mxu0 0.0
    %4315 = vmatpush.msra.mxu0 0.0
    %4316 = vmatpush.msra.mxu0 0.0
    %4317 = vmatpush.msra.mxu0 0.0
    %4318 = vmatpush.msra.mxu0 0.0
    %4319 = vmatpush.msra.mxu0 0.0
    %4320 = vmatpush.msra.mxu0 0.0
    %4321 = vmatpush.msra.mxu0 0.0
    %4322 = vmatpush.msra.mxu0 0.0
    %4323 = vmatpush.msra.mxu0 0.0
    %v4324 = vand.u32 %v3936, 4294901760
    %4325 = vmatpush.msra.mxu0 %v4324
    %v4326 = vand.u32 %v3927, 4294901760
    %v4327 = vsub.f32 %v3927, %v4326
    %v4328 = vand.u32 %v4327, 4294901760
    %4329 = vmatmul.f32.gmra.mxu0 %v4328
    %v4330 = vpop.f32.mrf.mxu0
    %v4331 = vadd.f32 %v4307, %v4330
    %4332 = vdwg.mxu0
    %4333 = vmatpush.msra.mxu0 0.0
    %4334 = vmatpush.msra.mxu0 0.0
    %4335 = vmatpush.msra.mxu0 0.0
    %4336 = vmatpush.msra.mxu0 0.0
    %4337 = vmatpush.msra.mxu0 0.0
    %4338 = vmatpush.msra.mxu0 0.0
    %4339 = vmatpush.msra.mxu0 0.0
    %4340 = vmatpush.msra.mxu0 0.0
    %4341 = vmatpush.msra.mxu0 0.0
    %4342 = vmatpush.msra.mxu0 0.0
    %4343 = vmatpush.msra.mxu0 0.0
    %4344 = vmatpush.msra.mxu0 0.0
    %4345 = vmatpush.msra.mxu0 0.0
    %4346 = vmatpush.msra.mxu0 0.0
    %4347 = vmatpush.msra.mxu0 0.0
    %v4348 = vand.u32 %v3936, 4294901760
    %v4349 = vsub.f32 %v3936, %v4348
    %v4350 = vand.u32 %v4349, 4294901760
    %4351 = vmatpush.msra.mxu0 %v4350
    %v4352 = vand.u32 %v3927, 4294901760
    %4353 = vmatmul.f32.gmra.mxu0 %v4352
    %v4354 = vpop.f32.mrf.mxu0
    %v4355 = vadd.f32 %v4331, %v4354
    %4356 = vdwg.mxu0
    %4357 = vmatpush.msra.mxu0 0.0
    %4358 = vmatpush.msra.mxu0 0.0
    %4359 = vmatpush.msra.mxu0 0.0
    %4360 = vmatpush.msra.mxu0 0.0
    %4361 = vmatpush.msra.mxu0 0.0
    %4362 = vmatpush.msra.mxu0 0.0
    %4363 = vmatpush.msra.mxu0 0.0
    %4364 = vmatpush.msra.mxu0 0.0
    %4365 = vmatpush.msra.mxu0 0.0
    %4366 = vmatpush.msra.mxu0 0.0
    %4367 = vmatpush.msra.mxu0 0.0
    %4368 = vmatpush.msra.mxu0 0.0
    %4369 = vmatpush.msra.mxu0 0.0
    %4370 = vmatpush.msra.mxu0 0.0
    %4371 = vmatpush.msra.mxu0 0.0
    %v4372 = vand.u32 %v3936, 4294901760
    %4373 = vmatpush.msra.mxu0 %v4372
    %v4374 = vand.u32 %v3927, 4294901760
    %4375 = vmatmul.f32.gmra.mxu0 %v4374
    %v4376 = vpop.f32.mrf.mxu0
    %v4377 = vadd.f32 %v4355, %v4376
    %4378 = vdwg.mxu0
    %4379 = vmatpush.msra.mxu0 0.0
    %4380 = vmatpush.msra.mxu0 0.0
    %4381 = vmatpush.msra.mxu0 0.0
    %4382 = vmatpush.msra.mxu0 0.0
    %4383 = vmatpush.msra.mxu0 0.0
    %4384 = vmatpush.msra.mxu0 0.0
    %4385 = vmatpush.msra.mxu0 0.0
    %4386 = vmatpush.msra.mxu0 0.0
    %4387 = vmatpush.msra.mxu0 0.0
    %4388 = vmatpush.msra.mxu0 0.0
    %4389 = vmatpush.msra.mxu0 0.0
    %4390 = vmatpush.msra.mxu0 0.0
    %4391 = vmatpush.msra.mxu0 0.0
    %4392 = vmatpush.msra.mxu0 0.0
    %4393 = vmatpush.msra.mxu0 0.0
    %v4394 = vand.u32 %v3939, 4294901760
    %4395 = vmatpush.msra.mxu0 %v4394
    %v4396 = vand.u32 %v3927, 4294901760
    %v4397 = vsub.f32 %v3927, %v4396
    %v4398 = vand.u32 %v4397, 4294901760
    %v4399 = vsub.f32 %v4397, %v4398
    %v4400 = vand.u32 %v4399, 4294901760
    %4401 = vmatmul.f32.gmra.mxu0 %v4400
    %v4402 = vpop.f32.mrf.mxu0
    %v4403 = vadd.f32 0.0, %v4402
    %4404 = vdwg.mxu0
    %4405 = vmatpush.msra.mxu0 0.0
    %4406 = vmatpush.msra.mxu0 0.0
    %4407 = vmatpush.msra.mxu0 0.0
    %4408 = vmatpush.msra.mxu0 0.0
    %4409 = vmatpush.msra.mxu0 0.0
    %4410 = vmatpush.msra.mxu0 0.0
    %4411 = vmatpush.msra.mxu0 0.0
    %4412 = vmatpush.msra.mxu0 0.0
    %4413 = vmatpush.msra.mxu0 0.0
    %4414 = vmatpush.msra.mxu0 0.0
    %4415 = vmatpush.msra.mxu0 0.0
    %4416 = vmatpush.msra.mxu0 0.0
    %4417 = vmatpush.msra.mxu0 0.0
    %4418 = vmatpush.msra.mxu0 0.0
    %4419 = vmatpush.msra.mxu0 0.0
    %v4420 = vand.u32 %v3939, 4294901760
    %v4421 = vsub.f32 %v3939, %v4420
    %v4422 = vand.u32 %v4421, 4294901760
    %v4423 = vsub.f32 %v4421, %v4422
    %v4424 = vand.u32 %v4423, 4294901760
    %4425 = vmatpush.msra.mxu0 %v4424
    %v4426 = vand.u32 %v3927, 4294901760
    %4427 = vmatmul.f32.gmra.mxu0 %v4426
    %v4428 = vpop.f32.mrf.mxu0
    %v4429 = vadd.f32 %v4403, %v4428
    %4430 = vdwg.mxu0
    %4431 = vmatpush.msra.mxu0 0.0
    %4432 = vmatpush.msra.mxu0 0.0
    %4433 = vmatpush.msra.mxu0 0.0
    %4434 = vmatpush.msra.mxu0 0.0
    %4435 = vmatpush.msra.mxu0 0.0
    %4436 = vmatpush.msra.mxu0 0.0
    %4437 = vmatpush.msra.mxu0 0.0
    %4438 = vmatpush.msra.mxu0 0.0
    %4439 = vmatpush.msra.mxu0 0.0
    %4440 = vmatpush.msra.mxu0 0.0
    %4441 = vmatpush.msra.mxu0 0.0
    %4442 = vmatpush.msra.mxu0 0.0
    %4443 = vmatpush.msra.mxu0 0.0
    %4444 = vmatpush.msra.mxu0 0.0
    %4445 = vmatpush.msra.mxu0 0.0
    %v4446 = vand.u32 %v3939, 4294901760
    %v4447 = vsub.f32 %v3939, %v4446
    %4448 = vmatpush.msra.mxu0 %v4447
    %v4449 = vand.u32 %v3927, 4294901760
    %v4450 = vsub.f32 %v3927, %v4449
    %4451 = vmatmul.f32.gmra.mxu0 %v4450
    %v4452 = vpop.f32.mrf.mxu0
    %v4453 = vadd.f32 %v4429, %v4452
    %4454 = vdwg.mxu0
    %4455 = vmatpush.msra.mxu0 0.0
    %4456 = vmatpush.msra.mxu0 0.0
    %4457 = vmatpush.msra.mxu0 0.0
    %4458 = vmatpush.msra.mxu0 0.0
    %4459 = vmatpush.msra.mxu0 0.0
    %4460 = vmatpush.msra.mxu0 0.0
    %4461 = vmatpush.msra.mxu0 0.0
    %4462 = vmatpush.msra.mxu0 0.0
    %4463 = vmatpush.msra.mxu0 0.0
    %4464 = vmatpush.msra.mxu0 0.0
    %4465 = vmatpush.msra.mxu0 0.0
    %4466 = vmatpush.msra.mxu0 0.0
    %4467 = vmatpush.msra.mxu0 0.0
    %4468 = vmatpush.msra.mxu0 0.0
    %4469 = vmatpush.msra.mxu0 0.0
    %v4470 = vand.u32 %v3939, 4294901760
    %4471 = vmatpush.msra.mxu0 %v4470
    %v4472 = vand.u32 %v3927, 4294901760
    %v4473 = vsub.f32 %v3927, %v4472
    %v4474 = vand.u32 %v4473, 4294901760
    %4475 = vmatmul.f32.gmra.mxu0 %v4474
    %v4476 = vpop.f32.mrf.mxu0
    %v4477 = vadd.f32 %v4453, %v4476
    %4478 = vdwg.mxu0
    %4479 = vmatpush.msra.mxu0 0.0
    %4480 = vmatpush.msra.mxu0 0.0
    %4481 = vmatpush.msra.mxu0 0.0
    %4482 = vmatpush.msra.mxu0 0.0
    %4483 = vmatpush.msra.mxu0 0.0
    %4484 = vmatpush.msra.mxu0 0.0
    %4485 = vmatpush.msra.mxu0 0.0
    %4486 = vmatpush.msra.mxu0 0.0
    %4487 = vmatpush.msra.mxu0 0.0
    %4488 = vmatpush.msra.mxu0 0.0
    %4489 = vmatpush.msra.mxu0 0.0
    %4490 = vmatpush.msra.mxu0 0.0
    %4491 = vmatpush.msra.mxu0 0.0
    %4492 = vmatpush.msra.mxu0 0.0
    %4493 = vmatpush.msra.mxu0 0.0
    %v4494 = vand.u32 %v3939, 4294901760
    %v4495 = vsub.f32 %v3939, %v4494
    %v4496 = vand.u32 %v4495, 4294901760
    %4497 = vmatpush.msra.mxu0 %v4496
    %v4498 = vand.u32 %v3927, 4294901760
    %4499 = vmatmul.f32.gmra.mxu0 %v4498
    %v4500 = vpop.f32.mrf.mxu0
    %v4501 = vadd.f32 %v4477, %v4500
    %4502 = vdwg.mxu0
    %4503 = vmatpush.msra.mxu0 0.0
    %4504 = vmatpush.msra.mxu0 0.0
    %4505 = vmatpush.msra.mxu0 0.0
    %4506 = vmatpush.msra.mxu0 0.0
    %4507 = vmatpush.msra.mxu0 0.0
    %4508 = vmatpush.msra.mxu0 0.0
    %4509 = vmatpush.msra.mxu0 0.0
    %4510 = vmatpush.msra.mxu0 0.0
    %4511 = vmatpush.msra.mxu0 0.0
    %4512 = vmatpush.msra.mxu0 0.0
    %4513 = vmatpush.msra.mxu0 0.0
    %4514 = vmatpush.msra.mxu0 0.0
    %4515 = vmatpush.msra.mxu0 0.0
    %4516 = vmatpush.msra.mxu0 0.0
    %4517 = vmatpush.msra.mxu0 0.0
    %v4518 = vand.u32 %v3939, 4294901760
    %4519 = vmatpush.msra.mxu0 %v4518
    %v4520 = vand.u32 %v3927, 4294901760
    %4521 = vmatmul.f32.gmra.mxu0 %v4520
    %v4522 = vpop.f32.mrf.mxu0
    %v4523 = vadd.f32 %v4501, %v4522
    %4524 = vdwg.mxu0
    %v4529 = vrot.slane %v4231, 4
    %v4530 = vrot.slane %v4523, 4
    %v4531 = vsel %vm82, %v4085, %v4529
    %v4532 = vsel %vm82, %v4377, %v4530
    %4535 = vst [vmem:[#allocation5] sm:$0xff] %v4531
    %4536 = vst [vmem:[#allocation5 + $0x8] sm:$0xff] %v4532
    // Predicated region
    $region18: #{tpu_custom_call.1} parent=1 // pred_check
      _
    $region19: #{tpu_custom_call.1} parent=1 // pred_check_branch
      %4538 = sbr.rel (0) target = $region21
    $region20: #{tpu_custom_call.1} parent=1 // pred_region
      %4540 = vsyncadd [#allocation3], 0
      %s4542 = sshll.u32 [#allocation5], 4
      %s4543 = int_to_ptr.vmem [resolvable:$true] %s4542
      %s4544 = sshll.u32 %s3, 4
      %s4545 = int_to_ptr.hbm [resolvable:$true] %s4544
      %4547 = dma.vmem_to_hbm [thread:$0]  %s4543, 256, %s4545, [#allocation3]
    $region21: #{tpu_custom_call.1} parent=1 // pred_fallthru
      _
    // Predicated region
    $region22: #{tpu_custom_call.1} parent=1 // pred_check
      _
    $region23: #{tpu_custom_call.1} parent=1 // pred_check_branch
      %4549 = sbr.rel (0) target = $region25
    $region24: #{tpu_custom_call.1} parent=1 // pred_region
      %4551 = dma.done [#allocation3], 256
    $region25: #{tpu_custom_call.1} parent=1 // pred_fallthru
      _
    %4552 = vsyncpa [#allocation3], 1
    %4553 = vsyncpa [#allocation4], 1

</llo_original>
